<compile_context>
chip_gen: v5e
topology: v5e:2x2
jax: 0.10.0
libtpu: 0.0.40
codegen_flags: <defaults>
</compile_context>

<pallas_src>
import functools

import jax
import jax.numpy as jnp
from jax.experimental import pallas as pl
from jax.experimental.pallas import tpu as pltpu


# ----------------------------------------------------------------------------
# Fused kernel: one grid step == one group of G packed MyLSTM instances
# ----------------------------------------------------------------------------
def _packed_multilstm_kernel(*refs, num_layers, S, B, H, G, O):
    # ---- unpack refs ---------------------------------------------------------
    x_ref, ln_g_ref, ln_b_ref = refs[0], refs[1], refs[2]
    idx = 3
    lstm_refs = []
    for _ in range(num_layers):
        lstm_refs.append((refs[idx], refs[idx + 1], refs[idx + 2]))
        idx += 3
    dec_refs = [(refs[idx + 2 * i], refs[idx + 2 * i + 1]) for i in range(5)]
    idx += 10
    o_ref = refs[idx]
    hseq_ref = refs[idx + 1]          # VMEM scratch (S, B, G*H) f32

    GH = G * H
    f32 = jnp.float32

    def sig(v):                       # one EUP op per call (no VPU divide)
        return 0.5 * jnp.tanh(0.5 * v) + 0.5

    # ---- LayerNorm over (seq_len, input_dim) per batch row -------------------
    # mean/var depend only on x (shared across stages); the affine (gamma/beta)
    # is per-stage, applied on the lane-packed copy of xhat.
    x = x_ref[...].astype(f32)                                  # (S, B, D)
    mean = jnp.mean(x, axis=(0, 2), keepdims=True)
    var = jnp.mean(jnp.square(x - mean), axis=(0, 2), keepdims=True)  # biased
    xhat = (x - mean) * jax.lax.rsqrt(var + 1e-5)               # (S, B, D)
    xrep = jnp.concatenate([xhat] * G, axis=-1)                 # (S, B, G*D) once
    seq = xrep * ln_g_ref[...][:, None, :] + ln_b_ref[...][:, None, :]

    # ---- packed LSTM stack (PyTorch gate order i, f, g, o; gate-major lanes) --
    h = jnp.zeros((B, GH), f32)
    for (wih_ref, whh_ref, b_ref) in lstm_refs:
        w_ih = wih_ref[...]                                     # (Din_packed, 4*GH)
        w_hh = whh_ref[...]                                     # (GH,        4*GH)
        bias = b_ref[...]                                       # (1,         4*GH)

        # Hoisted input projection: one MXU matmul for all timesteps & stages,
        # reshaped ONCE to time-major (S, B, 4*GH) so gx[t] is a clean slice.
        din = seq.shape[-1]
        gx = (jnp.dot(seq.reshape(S * B, din), w_ih,
                      preferred_element_type=f32) + bias).reshape(S, B, 4 * GH)

        h = jnp.zeros((B, GH), f32)
        c = jnp.zeros((B, GH), f32)
        for t in range(S):                                      # static unroll
            gates = gx[t] + jnp.dot(h, w_hh,
                                    preferred_element_type=f32)  # (B, 4*GH)
            # one full-width EUP pass for the three sigmoid gates,
            # one narrow tanh pass for the g gate
            sig_all = 0.5 * jnp.tanh(0.5 * gates) + 0.5
            i_g = sig_all[:, 0 * GH:1 * GH]
            f_g = sig_all[:, 1 * GH:2 * GH]
            g_g = jnp.tanh(gates[:, 2 * GH:3 * GH])
            o_g = sig_all[:, 3 * GH:4 * GH]
            c = f_g * c + i_g * g_g
            h = o_g * jnp.tanh(c)
            hseq_ref[t] = h                                     # static-index store
        # full hidden sequence feeds the next layer's hoisted projection
        seq = hseq_ref[...]                                     # (S, B, GH)

    # ---- decoder epilogue on hT (last layer, last timestep), per-stage packed -
    z = h                                                       # (B, GH) f32
    for (w_ref, b_ref) in dec_refs:
        z = sig(jnp.dot(z, w_ref[...], preferred_element_type=f32) + b_ref[...])

    # ---- sum the G stages of this group (MultiLSTM accumulation) --------------
    out = z[:, 0:O]
    for s in range(1, G):
        out = out + z[:, s * O:(s + 1) * O]
    o_ref[...] = out.astype(o_ref.dtype)                        # (B, O)


# ----------------------------------------------------------------------------
# Wrapper: builds BlockSpecs for group-packed parameters and calls the kernel
# ----------------------------------------------------------------------------
def multi_lstm_forward(x, packed, *, stage, num_layers, H, O, num_groups=1):
    B, S, D = x.shape
    assert stage % num_groups == 0
    G = stage // num_groups
    GH = G * H

    x_tm = jnp.transpose(x, (1, 0, 2))                          # (S, B, D) once, in XLA

    in_specs = [pl.BlockSpec((S, B, D), lambda g: (0, 0, 0))]   # shared input
    args = [x_tm]

    in_specs += [pl.BlockSpec((None, S, G * D), lambda g: (g, 0, 0)),
                 pl.BlockSpec((None, S, G * D), lambda g: (g, 0, 0))]
    args += [packed["ln_gamma"], packed["ln_beta"]]

    for layer in range(num_layers):
        w_ih, w_hh, b = packed["lstm"][layer]
        din = w_ih.shape[1]
        in_specs += [
            pl.BlockSpec((None, din, 4 * GH), lambda g: (g, 0, 0)),
            pl.BlockSpec((None, GH, 4 * GH), lambda g: (g, 0, 0)),
            pl.BlockSpec((None, 1, 4 * GH), lambda g: (g, 0, 0)),
        ]
        args += [w_ih, w_hh, b]

    for w, b in packed["dec"]:
        din, dout = w.shape[1], w.shape[2]
        in_specs += [
            pl.BlockSpec((None, din, dout), lambda g: (g, 0, 0)),
            pl.BlockSpec((None, 1, dout), lambda g: (g, 0, 0)),
        ]
        args += [w, b]

    kernel = functools.partial(_packed_multilstm_kernel,
                               num_layers=num_layers, S=S, B=B, H=H, G=G, O=O)

    out_groups = pl.pallas_call(
        kernel,
        out_shape=jax.ShapeDtypeStruct((num_groups, B, O), jnp.float32),
        grid_spec=pltpu.PrefetchScalarGridSpec(
            num_scalar_prefetch=0,
            grid=(num_groups,),
            in_specs=in_specs,
            out_specs=pl.BlockSpec((None, B, O), lambda g: (g, 0, 0)),
            scratch_shapes=[pltpu.VMEM((S, B, GH), jnp.float32)],
        ),
        compiler_params=pltpu.CompilerParams(
            dimension_semantics=("parallel",)),
    )(*args)

    # sum over groups (trivial; G stages inside each group already summed
    # in-kernel), then unsqueeze(1) to match (B, 1, O)
    return jnp.sum(out_groups, axis=0)[:, None, :]


# ----------------------------------------------------------------------------
# Deterministic parameter construction (mirrors module __init__ shapes)
# ----------------------------------------------------------------------------
def init_all_params(key, cnt, D, H, O, S, num_layers):
    def nxt():
        nonlocal key
        key, sub = jax.random.split(key)
        return sub

    bound = 1.0 / float(H) ** 0.5
    all_p = []
    for _ in range(cnt):
        ln_gamma = jnp.ones((S, D), jnp.float32)            # PyTorch LN default
        ln_beta = jnp.zeros((S, D), jnp.float32)
        lstm = []
        for layer in range(num_layers):
            in_dim = D if layer == 0 else H
            w_ih = jax.random.uniform(nxt(), (4 * H, in_dim), jnp.float32, -bound, bound)
            w_hh = jax.random.uniform(nxt(), (4 * H, H), jnp.float32, -bound, bound)
            b_ih = jax.random.uniform(nxt(), (4 * H,), jnp.float32, -bound, bound)
            b_hh = jax.random.uniform(nxt(), (4 * H,), jnp.float32, -bound, bound)
            # pre-transpose for right-multiplication; fuse the two biases
            lstm.append((w_ih.T, w_hh.T, b_ih + b_hh))
        dec = []
        for din, dout in [(H, H)] * 4 + [(H, O)]:
            lb = 1.0 / float(din) ** 0.5
            w = jax.random.uniform(nxt(), (din, dout), jnp.float32, -lb, lb)
            b = jax.random.uniform(nxt(), (dout,), jnp.float32, -lb, lb)
            dec.append((w, b))
        all_p.append(dict(ln_gamma=ln_gamma, ln_beta=ln_beta, lstm=lstm, dec=dec))
    return all_p


# ----------------------------------------------------------------------------
# Stage packing: block-diagonal, gate-major lane layout, grouped for the grid
# ----------------------------------------------------------------------------
def _blockdiag(blocks):
    rows = sum(b.shape[0] for b in blocks)
    cols = sum(b.shape[1] for b in blocks)
    out = jnp.zeros((rows, cols), blocks[0].dtype)
    r = c = 0
    for b in blocks:
        out = out.at[r:r + b.shape[0], c:c + b.shape[1]].set(b)
        r += b.shape[0]
        c += b.shape[1]
    return out


def _pack_gatemajor_weight(mats, H):
    """mats: per-stage (din_s, 4H) [cols i|f|g|o].  Returns (sum din_s, 4*G*H):
    block-diagonal over stages, columns reordered gate-major
    [i(all stages) | f | g | o], stage s in lanes [s*H:(s+1)*H] of each gate."""
    gate_blocks = [_blockdiag([m[:, g * H:(g + 1) * H] for m in mats])
                   for g in range(4)]
    return jnp.concatenate(gate_blocks, axis=1)


def _pack_gatemajor_bias(biases, H):
    """biases: per-stage (4H,).  Returns (1, 4*G*H), gate-major layout."""
    parts = [jnp.concatenate([b[g * H:(g + 1) * H] for b in biases])
             for g in range(4)]
    return jnp.concatenate(parts)[None, :]


def pack_params(all_params, stage, num_groups, H):
    assert stage % num_groups == 0
    G = stage // num_groups
    sel = all_params[:stage]
    groups = [sel[g * G:(g + 1) * G] for g in range(num_groups)]
    num_layers = len(sel[0]["lstm"])

    ln_gamma = jnp.stack(
        [jnp.concatenate([p["ln_gamma"] for p in grp], axis=-1) for grp in groups])
    ln_beta = jnp.stack(
        [jnp.concatenate([p["ln_beta"] for p in grp], axis=-1) for grp in groups])

    lstm = []
    for layer in range(num_layers):
        wih = jnp.stack([_pack_gatemajor_weight(
            [p["lstm"][layer][0] for p in grp], H) for grp in groups])
        whh = jnp.stack([_pack_gatemajor_weight(
            [p["lstm"][layer][1] for p in grp], H) for grp in groups])
        b = jnp.stack([_pack_gatemajor_bias(
            [p["lstm"][layer][2] for p in grp], H) for grp in groups])
        lstm.append((wih, whh, b))

    dec = []
    for i in range(5):
        w = jnp.stack([_blockdiag([p["dec"][i][0] for p in grp]) for grp in groups])
        b = jnp.stack([jnp.concatenate([p["dec"][i][1] for p in grp])[None, :]
                       for grp in groups])
        dec.append((w, b))

    return dict(ln_gamma=ln_gamma, ln_beta=ln_beta, lstm=lstm, dec=dec)


if __name__ == "__main__":
    B, S, D, H, O = 2, 8, 4, 32, 4
    num_layers, cnt, stage = 2, 3, 2
    # num_groups=1: pack all stages into one grid step (best on 1-TC v5e/v6e).
    # On v7x with even `stage`, num_groups=2 shards groups across the 2 TCs.
    num_groups = 1

    key = jax.random.PRNGKey(0)
    key, xk = jax.random.split(key)
    x = jax.random.normal(xk, (B, S, D), dtype=jnp.float32)

    params = init_all_params(key, cnt, D, H, O, S, num_layers)
    packed = pack_params(params, stage, num_groups, H)

    fwd = jax.jit(functools.partial(multi_lstm_forward, stage=stage,
                                    num_layers=num_layers, H=H, O=O,
                                    num_groups=num_groups))
    out = fwd(x, packed)
    out = jax.block_until_ready(out)

    assert out.shape == (B, 1, O), out.shape
    assert bool(jnp.all(jnp.isfinite(out)))
    print("KERNEL_OK")
</pallas_src>

<mosaic_0001>
module attributes {stable_mosaic.version = 11 : i64} {
  func.func @_packed_multilstm_kernel(%arg0: i32, %arg1: memref<8x2x4xf32, #tpu.memory_space<vmem>>, %arg2: memref<1x8x8xf32, #tpu.memory_space<vmem>>, %arg3: memref<1x8x8xf32, #tpu.memory_space<vmem>>, %arg4: memref<1x8x256xf32, #tpu.memory_space<vmem>>, %arg5: memref<1x64x256xf32, #tpu.memory_space<vmem>>, %arg6: memref<1x1x256xf32, #tpu.memory_space<vmem>>, %arg7: memref<1x64x256xf32, #tpu.memory_space<vmem>>, %arg8: memref<1x64x256xf32, #tpu.memory_space<vmem>>, %arg9: memref<1x1x256xf32, #tpu.memory_space<vmem>>, %arg10: memref<1x64x64xf32, #tpu.memory_space<vmem>>, %arg11: memref<1x1x64xf32, #tpu.memory_space<vmem>>, %arg12: memref<1x64x64xf32, #tpu.memory_space<vmem>>, %arg13: memref<1x1x64xf32, #tpu.memory_space<vmem>>, %arg14: memref<1x64x64xf32, #tpu.memory_space<vmem>>, %arg15: memref<1x1x64xf32, #tpu.memory_space<vmem>>, %arg16: memref<1x64x64xf32, #tpu.memory_space<vmem>>, %arg17: memref<1x1x64xf32, #tpu.memory_space<vmem>>, %arg18: memref<1x64x8xf32, #tpu.memory_space<vmem>>, %arg19: memref<1x1x8xf32, #tpu.memory_space<vmem>>, %arg20: memref<1x2x4xf32, #tpu.memory_space<vmem>>, %arg21: memref<8x2x64xf32, #tpu.memory_space<vmem>>) attributes {dimension_semantics = [#tpu.dimension_semantics<parallel>], iteration_bounds = array<i64: 1>, scalar_prefetch = 0 : i64, scratch_operands = 1 : i64, tpu.core_type = #tpu.core_type<tc>, window_params = [{pipeline_mode = #tpu.pipeline_mode<synchronous>, transform_indices = @transform_0, window_bounds = array<i64: 8, 2, 4>}, {transform_indices = @transform_1, window_bounds = array<i64: 1, 8, 8>}, {transform_indices = @transform_2, window_bounds = array<i64: 1, 8, 8>}, {transform_indices = @transform_3, window_bounds = array<i64: 1, 8, 256>}, {transform_indices = @transform_4, window_bounds = array<i64: 1, 64, 256>}, {transform_indices = @transform_5, window_bounds = array<i64: 1, 1, 256>}, {transform_indices = @transform_6, window_bounds = array<i64: 1, 64, 256>}, {transform_indices = @transform_7, window_bounds = array<i64: 1, 64, 256>}, {transform_indices = @transform_8, window_bounds = array<i64: 1, 1, 256>}, {transform_indices = @transform_9, window_bounds = array<i64: 1, 64, 64>}, {transform_indices = @transform_10, window_bounds = array<i64: 1, 1, 64>}, {transform_indices = @transform_11, window_bounds = array<i64: 1, 64, 64>}, {transform_indices = @transform_12, window_bounds = array<i64: 1, 1, 64>}, {transform_indices = @transform_13, window_bounds = array<i64: 1, 64, 64>}, {transform_indices = @transform_14, window_bounds = array<i64: 1, 1, 64>}, {transform_indices = @transform_15, window_bounds = array<i64: 1, 64, 64>}, {transform_indices = @transform_16, window_bounds = array<i64: 1, 1, 64>}, {transform_indices = @transform_17, window_bounds = array<i64: 1, 64, 8>}, {transform_indices = @transform_18, window_bounds = array<i64: 1, 1, 8>}, {transform_indices = @transform_19, window_bounds = array<i64: 1, 2, 4>}]} {
    %c0 = arith.constant 0 : index
    %c0_0 = arith.constant 0 : index
    %c0_1 = arith.constant 0 : index
    %0 = vector.load %arg1[%c0, %c0_0, %c0_1] : memref<8x2x4xf32, #tpu.memory_space<vmem>>, vector<8x2x4xf32>
    %cst = arith.constant dense<0.000000e+00> : vector<2xf32>
    %1 = vector.multi_reduction <add>, %0, %cst [0, 2] : vector<8x2x4xf32> to vector<2xf32>
    %2 = vector.shape_cast %1 : vector<2xf32> to vector<1x2x1xf32>
    %cst_2 = arith.constant 3.200000e+01 : f32
    %3 = vector.broadcast %cst_2 : f32 to vector<1x2x1xf32>
    %4 = arith.divf %2, %3 : vector<1x2x1xf32>
    %5 = vector.broadcast %4 : vector<1x2x1xf32> to vector<8x2x4xf32>
    %6 = arith.subf %0, %5 : vector<8x2x4xf32>
    %7 = arith.mulf %6, %6 : vector<8x2x4xf32>
    %cst_3 = arith.constant dense<0.000000e+00> : vector<2xf32>
    %8 = vector.multi_reduction <add>, %7, %cst_3 [0, 2] : vector<8x2x4xf32> to vector<2xf32>
    %9 = vector.shape_cast %8 : vector<2xf32> to vector<1x2x1xf32>
    %cst_4 = arith.constant 3.200000e+01 : f32
    %10 = vector.broadcast %cst_4 : f32 to vector<1x2x1xf32>
    %11 = arith.divf %9, %10 : vector<1x2x1xf32>
    %12 = vector.broadcast %4 : vector<1x2x1xf32> to vector<8x2x4xf32>
    %13 = arith.subf %0, %12 : vector<8x2x4xf32>
    %cst_5 = arith.constant 9.99999974E-6 : f32
    %14 = vector.broadcast %cst_5 : f32 to vector<1x2x1xf32>
    %15 = arith.addf %11, %14 : vector<1x2x1xf32>
    %16 = math.rsqrt %15 : vector<1x2x1xf32>
    %17 = vector.broadcast %16 : vector<1x2x1xf32> to vector<8x2x4xf32>
    %18 = arith.mulf %13, %17 : vector<8x2x4xf32>
    %19 = tpu.concatenate %18, %18 in 2 : vector<8x2x4xf32>, vector<8x2x4xf32> -> vector<8x2x8xf32>
    %c0_6 = arith.constant 0 : index
    %c0_7 = arith.constant 0 : index
    %c0_8 = arith.constant 0 : index
    %20 = vector.load %arg2[%c0_6, %c0_7, %c0_8] : memref<1x8x8xf32, #tpu.memory_space<vmem>>, vector<1x8x8xf32>
    %21 = vector.shape_cast %20 : vector<1x8x8xf32> to vector<8x8xf32>
    %22 = vector.shape_cast %21 : vector<8x8xf32> to vector<8x1x8xf32>
    %23 = vector.broadcast %22 : vector<8x1x8xf32> to vector<8x2x8xf32>
    %24 = arith.mulf %19, %23 : vector<8x2x8xf32>
    %c0_9 = arith.constant 0 : index
    %c0_10 = arith.constant 0 : index
    %c0_11 = arith.constant 0 : index
    %25 = vector.load %arg3[%c0_9, %c0_10, %c0_11] : memref<1x8x8xf32, #tpu.memory_space<vmem>>, vector<1x8x8xf32>
    %26 = vector.shape_cast %25 : vector<1x8x8xf32> to vector<8x8xf32>
    %27 = vector.shape_cast %26 : vector<8x8xf32> to vector<8x1x8xf32>
    %28 = vector.broadcast %27 : vector<8x1x8xf32> to vector<8x2x8xf32>
    %29 = arith.addf %24, %28 : vector<8x2x8xf32>
    %c0_12 = arith.constant 0 : index
    %c0_13 = arith.constant 0 : index
    %c0_14 = arith.constant 0 : index
    %30 = vector.load %arg4[%c0_12, %c0_13, %c0_14] : memref<1x8x256xf32, #tpu.memory_space<vmem>>, vector<1x8x256xf32>
    %31 = vector.shape_cast %30 : vector<1x8x256xf32> to vector<8x256xf32>
    %c0_15 = arith.constant 0 : index
    %c0_16 = arith.constant 0 : index
    %c0_17 = arith.constant 0 : index
    %32 = vector.load %arg5[%c0_15, %c0_16, %c0_17] : memref<1x64x256xf32, #tpu.memory_space<vmem>>, vector<1x64x256xf32>
    %33 = vector.shape_cast %32 : vector<1x64x256xf32> to vector<64x256xf32>
    %c0_18 = arith.constant 0 : index
    %c0_19 = arith.constant 0 : index
    %c0_20 = arith.constant 0 : index
    %34 = vector.load %arg6[%c0_18, %c0_19, %c0_20] : memref<1x1x256xf32, #tpu.memory_space<vmem>>, vector<1x1x256xf32>
    %35 = vector.shape_cast %34 : vector<1x1x256xf32> to vector<1x256xf32>
    %36 = vector.shape_cast %29 : vector<8x2x8xf32> to vector<16x8xf32>
    %cst_21 = arith.constant dense<0.000000e+00> : vector<16x256xf32>
    %37 = tpu.matmul %36, %31, %cst_21 {dimension_numbers = #tpu.dot_dimension_numbers<[1], [0], [0], [1], [0, 0, 1, 1], [], []>} : vector<16x8xf32>, vector<8x256xf32>, vector<16x256xf32> -> vector<16x256xf32>
    %38 = vector.broadcast %35 : vector<1x256xf32> to vector<16x256xf32>
    %39 = arith.addf %37, %38 : vector<16x256xf32>
    %40 = vector.shape_cast %39 : vector<16x256xf32> to vector<8x2x256xf32>
    %cst_22 = arith.constant 0.000000e+00 : f32
    %41 = vector.broadcast %cst_22 : f32 to vector<2x64xf32>
    %cst_23 = arith.constant 0.000000e+00 : f32
    %42 = vector.broadcast %cst_23 : f32 to vector<2x64xf32>
    %43 = vector.extract_strided_slice %40 {offsets = [0, 0, 0], sizes = [1, 2, 256], strides = [1, 1, 1]} : vector<8x2x256xf32> to vector<1x2x256xf32>
    %44 = vector.shape_cast %43 : vector<1x2x256xf32> to vector<2x256xf32>
    %cst_24 = arith.constant dense<0.000000e+00> : vector<2x256xf32>
    %45 = tpu.matmul %41, %33, %cst_24 {dimension_numbers = #tpu.dot_dimension_numbers<[1], [0], [0], [1], [0, 0, 1, 1], [], []>} : vector<2x64xf32>, vector<64x256xf32>, vector<2x256xf32> -> vector<2x256xf32>
    %46 = arith.addf %44, %45 : vector<2x256xf32>
    %cst_25 = arith.constant 5.000000e-01 : f32
    %47 = vector.broadcast %cst_25 : f32 to vector<2x256xf32>
    %48 = arith.mulf %47, %46 : vector<2x256xf32>
    %49 = math.tanh %48 : vector<2x256xf32>
    %cst_26 = arith.constant 5.000000e-01 : f32
    %50 = vector.broadcast %cst_26 : f32 to vector<2x256xf32>
    %51 = arith.mulf %50, %49 : vector<2x256xf32>
    %cst_27 = arith.constant 5.000000e-01 : f32
    %52 = vector.broadcast %cst_27 : f32 to vector<2x256xf32>
    %53 = arith.addf %51, %52 : vector<2x256xf32>
    %54 = vector.extract_strided_slice %53 {offsets = [0, 0], sizes = [2, 64], strides = [1, 1]} : vector<2x256xf32> to vector<2x64xf32>
    %55 = vector.extract_strided_slice %53 {offsets = [0, 64], sizes = [2, 64], strides = [1, 1]} : vector<2x256xf32> to vector<2x64xf32>
    %56 = vector.extract_strided_slice %46 {offsets = [0, 128], sizes = [2, 64], strides = [1, 1]} : vector<2x256xf32> to vector<2x64xf32>
    %57 = math.tanh %56 : vector<2x64xf32>
    %58 = vector.extract_strided_slice %53 {offsets = [0, 192], sizes = [2, 64], strides = [1, 1]} : vector<2x256xf32> to vector<2x64xf32>
    %59 = arith.mulf %55, %42 : vector<2x64xf32>
    %60 = arith.mulf %54, %57 : vector<2x64xf32>
    %61 = arith.addf %59, %60 : vector<2x64xf32>
    %62 = math.tanh %61 : vector<2x64xf32>
    %63 = arith.mulf %58, %62 : vector<2x64xf32>
    %c0_28 = arith.constant 0 : index
    %c0_29 = arith.constant 0 : index
    %c0_30 = arith.constant 0 : index
    %64 = vector.load %arg21[%c0_28, %c0_29, %c0_30] : memref<8x2x64xf32, #tpu.memory_space<vmem>>, vector<1x2x64xf32>
    %65 = vector.shape_cast %64 : vector<1x2x64xf32> to vector<2x64xf32>
    %66 = vector.shape_cast %63 : vector<2x64xf32> to vector<1x2x64xf32>
    tpu.vector_store %arg21[%c0_28, %c0_29, %c0_30], %66 {strides = array<i32>} : memref<8x2x64xf32, #tpu.memory_space<vmem>>, vector<1x2x64xf32>,
    %67 = vector.extract_strided_slice %40 {offsets = [1, 0, 0], sizes = [1, 2, 256], strides = [1, 1, 1]} : vector<8x2x256xf32> to vector<1x2x256xf32>
    %68 = vector.shape_cast %67 : vector<1x2x256xf32> to vector<2x256xf32>
    %cst_31 = arith.constant dense<0.000000e+00> : vector<2x256xf32>
    %69 = tpu.matmul %63, %33, %cst_31 {dimension_numbers = #tpu.dot_dimension_numbers<[1], [0], [0], [1], [0, 0, 1, 1], [], []>} : vector<2x64xf32>, vector<64x256xf32>, vector<2x256xf32> -> vector<2x256xf32>
    %70 = arith.addf %68, %69 : vector<2x256xf32>
    %cst_32 = arith.constant 5.000000e-01 : f32
    %71 = vector.broadcast %cst_32 : f32 to vector<2x256xf32>
    %72 = arith.mulf %71, %70 : vector<2x256xf32>
    %73 = math.tanh %72 : vector<2x256xf32>
    %cst_33 = arith.constant 5.000000e-01 : f32
    %74 = vector.broadcast %cst_33 : f32 to vector<2x256xf32>
    %75 = arith.mulf %74, %73 : vector<2x256xf32>
    %cst_34 = arith.constant 5.000000e-01 : f32
    %76 = vector.broadcast %cst_34 : f32 to vector<2x256xf32>
    %77 = arith.addf %75, %76 : vector<2x256xf32>
    %78 = vector.extract_strided_slice %77 {offsets = [0, 0], sizes = [2, 64], strides = [1, 1]} : vector<2x256xf32> to vector<2x64xf32>
    %79 = vector.extract_strided_slice %77 {offsets = [0, 64], sizes = [2, 64], strides = [1, 1]} : vector<2x256xf32> to vector<2x64xf32>
    %80 = vector.extract_strided_slice %70 {offsets = [0, 128], sizes = [2, 64], strides = [1, 1]} : vector<2x256xf32> to vector<2x64xf32>
    %81 = math.tanh %80 : vector<2x64xf32>
    %82 = vector.extract_strided_slice %77 {offsets = [0, 192], sizes = [2, 64], strides = [1, 1]} : vector<2x256xf32> to vector<2x64xf32>
    %83 = arith.mulf %79, %61 : vector<2x64xf32>
    %84 = arith.mulf %78, %81 : vector<2x64xf32>
    %85 = arith.addf %83, %84 : vector<2x64xf32>
    %86 = math.tanh %85 : vector<2x64xf32>
    %87 = arith.mulf %82, %86 : vector<2x64xf32>
    %c1 = arith.constant 1 : index
    %c0_35 = arith.constant 0 : index
    %c0_36 = arith.constant 0 : index
    %88 = vector.load %arg21[%c1, %c0_35, %c0_36] : memref<8x2x64xf32, #tpu.memory_space<vmem>>, vector<1x2x64xf32>
    %89 = vector.shape_cast %88 : vector<1x2x64xf32> to vector<2x64xf32>
    %90 = vector.shape_cast %87 : vector<2x64xf32> to vector<1x2x64xf32>
    tpu.vector_store %arg21[%c1, %c0_35, %c0_36], %90 {strides = array<i32>} : memref<8x2x64xf32, #tpu.memory_space<vmem>>, vector<1x2x64xf32>,
    %91 = vector.extract_strided_slice %40 {offsets = [2, 0, 0], sizes = [1, 2, 256], strides = [1, 1, 1]} : vector<8x2x256xf32> to vector<1x2x256xf32>
    %92 = vector.shape_cast %91 : vector<1x2x256xf32> to vector<2x256xf32>
    %cst_37 = arith.constant dense<0.000000e+00> : vector<2x256xf32>
    %93 = tpu.matmul %87, %33, %cst_37 {dimension_numbers = #tpu.dot_dimension_numbers<[1], [0], [0], [1], [0, 0, 1, 1], [], []>} : vector<2x64xf32>, vector<64x256xf32>, vector<2x256xf32> -> vector<2x256xf32>
    %94 = arith.addf %92, %93 : vector<2x256xf32>
    %cst_38 = arith.constant 5.000000e-01 : f32
    %95 = vector.broadcast %cst_38 : f32 to vector<2x256xf32>
    %96 = arith.mulf %95, %94 : vector<2x256xf32>
    %97 = math.tanh %96 : vector<2x256xf32>
    %cst_39 = arith.constant 5.000000e-01 : f32
    %98 = vector.broadcast %cst_39 : f32 to vector<2x256xf32>
    %99 = arith.mulf %98, %97 : vector<2x256xf32>
    %cst_40 = arith.constant 5.000000e-01 : f32
    %100 = vector.broadcast %cst_40 : f32 to vector<2x256xf32>
    %101 = arith.addf %99, %100 : vector<2x256xf32>
    %102 = vector.extract_strided_slice %101 {offsets = [0, 0], sizes = [2, 64], strides = [1, 1]} : vector<2x256xf32> to vector<2x64xf32>
    %103 = vector.extract_strided_slice %101 {offsets = [0, 64], sizes = [2, 64], strides = [1, 1]} : vector<2x256xf32> to vector<2x64xf32>
    %104 = vector.extract_strided_slice %94 {offsets = [0, 128], sizes = [2, 64], strides = [1, 1]} : vector<2x256xf32> to vector<2x64xf32>
    %105 = math.tanh %104 : vector<2x64xf32>
    %106 = vector.extract_strided_slice %101 {offsets = [0, 192], sizes = [2, 64], strides = [1, 1]} : vector<2x256xf32> to vector<2x64xf32>
    %107 = arith.mulf %103, %85 : vector<2x64xf32>
    %108 = arith.mulf %102, %105 : vector<2x64xf32>
    %109 = arith.addf %107, %108 : vector<2x64xf32>
    %110 = math.tanh %109 : vector<2x64xf32>
    %111 = arith.mulf %106, %110 : vector<2x64xf32>
    %c2 = arith.constant 2 : index
    %c0_41 = arith.constant 0 : index
    %c0_42 = arith.constant 0 : index
    %112 = vector.load %arg21[%c2, %c0_41, %c0_42] : memref<8x2x64xf32, #tpu.memory_space<vmem>>, vector<1x2x64xf32>
    %113 = vector.shape_cast %112 : vector<1x2x64xf32> to vector<2x64xf32>
    %114 = vector.shape_cast %111 : vector<2x64xf32> to vector<1x2x64xf32>
    tpu.vector_store %arg21[%c2, %c0_41, %c0_42], %114 {strides = array<i32>} : memref<8x2x64xf32, #tpu.memory_space<vmem>>, vector<1x2x64xf32>,
    %115 = vector.extract_strided_slice %40 {offsets = [3, 0, 0], sizes = [1, 2, 256], strides = [1, 1, 1]} : vector<8x2x256xf32> to vector<1x2x256xf32>
    %116 = vector.shape_cast %115 : vector<1x2x256xf32> to vector<2x256xf32>
    %cst_43 = arith.constant dense<0.000000e+00> : vector<2x256xf32>
    %117 = tpu.matmul %111, %33, %cst_43 {dimension_numbers = #tpu.dot_dimension_numbers<[1], [0], [0], [1], [0, 0, 1, 1], [], []>} : vector<2x64xf32>, vector<64x256xf32>, vector<2x256xf32> -> vector<2x256xf32>
    %118 = arith.addf %116, %117 : vector<2x256xf32>
    %cst_44 = arith.constant 5.000000e-01 : f32
    %119 = vector.broadcast %cst_44 : f32 to vector<2x256xf32>
    %120 = arith.mulf %119, %118 : vector<2x256xf32>
    %121 = math.tanh %120 : vector<2x256xf32>
    %cst_45 = arith.constant 5.000000e-01 : f32
    %122 = vector.broadcast %cst_45 : f32 to vector<2x256xf32>
    %123 = arith.mulf %122, %121 : vector<2x256xf32>
    %cst_46 = arith.constant 5.000000e-01 : f32
    %124 = vector.broadcast %cst_46 : f32 to vector<2x256xf32>
    %125 = arith.addf %123, %124 : vector<2x256xf32>
    %126 = vector.extract_strided_slice %125 {offsets = [0, 0], sizes = [2, 64], strides = [1, 1]} : vector<2x256xf32> to vector<2x64xf32>
    %127 = vector.extract_strided_slice %125 {offsets = [0, 64], sizes = [2, 64], strides = [1, 1]} : vector<2x256xf32> to vector<2x64xf32>
    %128 = vector.extract_strided_slice %118 {offsets = [0, 128], sizes = [2, 64], strides = [1, 1]} : vector<2x256xf32> to vector<2x64xf32>
    %129 = math.tanh %128 : vector<2x64xf32>
    %130 = vector.extract_strided_slice %125 {offsets = [0, 192], sizes = [2, 64], strides = [1, 1]} : vector<2x256xf32> to vector<2x64xf32>
    %131 = arith.mulf %127, %109 : vector<2x64xf32>
    %132 = arith.mulf %126, %129 : vector<2x64xf32>
    %133 = arith.addf %131, %132 : vector<2x64xf32>
    %134 = math.tanh %133 : vector<2x64xf32>
    %135 = arith.mulf %130, %134 : vector<2x64xf32>
    %c3 = arith.constant 3 : index
    %c0_47 = arith.constant 0 : index
    %c0_48 = arith.constant 0 : index
    %136 = vector.load %arg21[%c3, %c0_47, %c0_48] : memref<8x2x64xf32, #tpu.memory_space<vmem>>, vector<1x2x64xf32>
    %137 = vector.shape_cast %136 : vector<1x2x64xf32> to vector<2x64xf32>
    %138 = vector.shape_cast %135 : vector<2x64xf32> to vector<1x2x64xf32>
    tpu.vector_store %arg21[%c3, %c0_47, %c0_48], %138 {strides = array<i32>} : memref<8x2x64xf32, #tpu.memory_space<vmem>>, vector<1x2x64xf32>,
    %139 = vector.extract_strided_slice %40 {offsets = [4, 0, 0], sizes = [1, 2, 256], strides = [1, 1, 1]} : vector<8x2x256xf32> to vector<1x2x256xf32>
    %140 = vector.shape_cast %139 : vector<1x2x256xf32> to vector<2x256xf32>
    %cst_49 = arith.constant dense<0.000000e+00> : vector<2x256xf32>
    %141 = tpu.matmul %135, %33, %cst_49 {dimension_numbers = #tpu.dot_dimension_numbers<[1], [0], [0], [1], [0, 0, 1, 1], [], []>} : vector<2x64xf32>, vector<64x256xf32>, vector<2x256xf32> -> vector<2x256xf32>
    %142 = arith.addf %140, %141 : vector<2x256xf32>
    %cst_50 = arith.constant 5.000000e-01 : f32
    %143 = vector.broadcast %cst_50 : f32 to vector<2x256xf32>
    %144 = arith.mulf %143, %142 : vector<2x256xf32>
    %145 = math.tanh %144 : vector<2x256xf32>
    %cst_51 = arith.constant 5.000000e-01 : f32
    %146 = vector.broadcast %cst_51 : f32 to vector<2x256xf32>
    %147 = arith.mulf %146, %145 : vector<2x256xf32>
    %cst_52 = arith.constant 5.000000e-01 : f32
    %148 = vector.broadcast %cst_52 : f32 to vector<2x256xf32>
    %149 = arith.addf %147, %148 : vector<2x256xf32>
    %150 = vector.extract_strided_slice %149 {offsets = [0, 0], sizes = [2, 64], strides = [1, 1]} : vector<2x256xf32> to vector<2x64xf32>
    %151 = vector.extract_strided_slice %149 {offsets = [0, 64], sizes = [2, 64], strides = [1, 1]} : vector<2x256xf32> to vector<2x64xf32>
    %152 = vector.extract_strided_slice %142 {offsets = [0, 128], sizes = [2, 64], strides = [1, 1]} : vector<2x256xf32> to vector<2x64xf32>
    %153 = math.tanh %152 : vector<2x64xf32>
    %154 = vector.extract_strided_slice %149 {offsets = [0, 192], sizes = [2, 64], strides = [1, 1]} : vector<2x256xf32> to vector<2x64xf32>
    %155 = arith.mulf %151, %133 : vector<2x64xf32>
    %156 = arith.mulf %150, %153 : vector<2x64xf32>
    %157 = arith.addf %155, %156 : vector<2x64xf32>
    %158 = math.tanh %157 : vector<2x64xf32>
    %159 = arith.mulf %154, %158 : vector<2x64xf32>
    %c4 = arith.constant 4 : index
    %c0_53 = arith.constant 0 : index
    %c0_54 = arith.constant 0 : index
    %160 = vector.load %arg21[%c4, %c0_53, %c0_54] : memref<8x2x64xf32, #tpu.memory_space<vmem>>, vector<1x2x64xf32>
    %161 = vector.shape_cast %160 : vector<1x2x64xf32> to vector<2x64xf32>
    %162 = vector.shape_cast %159 : vector<2x64xf32> to vector<1x2x64xf32>
    tpu.vector_store %arg21[%c4, %c0_53, %c0_54], %162 {strides = array<i32>} : memref<8x2x64xf32, #tpu.memory_space<vmem>>, vector<1x2x64xf32>,
    %163 = vector.extract_strided_slice %40 {offsets = [5, 0, 0], sizes = [1, 2, 256], strides = [1, 1, 1]} : vector<8x2x256xf32> to vector<1x2x256xf32>
    %164 = vector.shape_cast %163 : vector<1x2x256xf32> to vector<2x256xf32>
    %cst_55 = arith.constant dense<0.000000e+00> : vector<2x256xf32>
    %165 = tpu.matmul %159, %33, %cst_55 {dimension_numbers = #tpu.dot_dimension_numbers<[1], [0], [0], [1], [0, 0, 1, 1], [], []>} : vector<2x64xf32>, vector<64x256xf32>, vector<2x256xf32> -> vector<2x256xf32>
    %166 = arith.addf %164, %165 : vector<2x256xf32>
    %cst_56 = arith.constant 5.000000e-01 : f32
    %167 = vector.broadcast %cst_56 : f32 to vector<2x256xf32>
    %168 = arith.mulf %167, %166 : vector<2x256xf32>
    %169 = math.tanh %168 : vector<2x256xf32>
    %cst_57 = arith.constant 5.000000e-01 : f32
    %170 = vector.broadcast %cst_57 : f32 to vector<2x256xf32>
    %171 = arith.mulf %170, %169 : vector<2x256xf32>
    %cst_58 = arith.constant 5.000000e-01 : f32
    %172 = vector.broadcast %cst_58 : f32 to vector<2x256xf32>
    %173 = arith.addf %171, %172 : vector<2x256xf32>
    %174 = vector.extract_strided_slice %173 {offsets = [0, 0], sizes = [2, 64], strides = [1, 1]} : vector<2x256xf32> to vector<2x64xf32>
    %175 = vector.extract_strided_slice %173 {offsets = [0, 64], sizes = [2, 64], strides = [1, 1]} : vector<2x256xf32> to vector<2x64xf32>
    %176 = vector.extract_strided_slice %166 {offsets = [0, 128], sizes = [2, 64], strides = [1, 1]} : vector<2x256xf32> to vector<2x64xf32>
    %177 = math.tanh %176 : vector<2x64xf32>
    %178 = vector.extract_strided_slice %173 {offsets = [0, 192], sizes = [2, 64], strides = [1, 1]} : vector<2x256xf32> to vector<2x64xf32>
    %179 = arith.mulf %175, %157 : vector<2x64xf32>
    %180 = arith.mulf %174, %177 : vector<2x64xf32>
    %181 = arith.addf %179, %180 : vector<2x64xf32>
    %182 = math.tanh %181 : vector<2x64xf32>
    %183 = arith.mulf %178, %182 : vector<2x64xf32>
    %c5 = arith.constant 5 : index
    %c0_59 = arith.constant 0 : index
    %c0_60 = arith.constant 0 : index
    %184 = vector.load %arg21[%c5, %c0_59, %c0_60] : memref<8x2x64xf32, #tpu.memory_space<vmem>>, vector<1x2x64xf32>
    %185 = vector.shape_cast %184 : vector<1x2x64xf32> to vector<2x64xf32>
    %186 = vector.shape_cast %183 : vector<2x64xf32> to vector<1x2x64xf32>
    tpu.vector_store %arg21[%c5, %c0_59, %c0_60], %186 {strides = array<i32>} : memref<8x2x64xf32, #tpu.memory_space<vmem>>, vector<1x2x64xf32>,
    %187 = vector.extract_strided_slice %40 {offsets = [6, 0, 0], sizes = [1, 2, 256], strides = [1, 1, 1]} : vector<8x2x256xf32> to vector<1x2x256xf32>
    %188 = vector.shape_cast %187 : vector<1x2x256xf32> to vector<2x256xf32>
    %cst_61 = arith.constant dense<0.000000e+00> : vector<2x256xf32>
    %189 = tpu.matmul %183, %33, %cst_61 {dimension_numbers = #tpu.dot_dimension_numbers<[1], [0], [0], [1], [0, 0, 1, 1], [], []>} : vector<2x64xf32>, vector<64x256xf32>, vector<2x256xf32> -> vector<2x256xf32>
    %190 = arith.addf %188, %189 : vector<2x256xf32>
    %cst_62 = arith.constant 5.000000e-01 : f32
    %191 = vector.broadcast %cst_62 : f32 to vector<2x256xf32>
    %192 = arith.mulf %191, %190 : vector<2x256xf32>
    %193 = math.tanh %192 : vector<2x256xf32>
    %cst_63 = arith.constant 5.000000e-01 : f32
    %194 = vector.broadcast %cst_63 : f32 to vector<2x256xf32>
    %195 = arith.mulf %194, %193 : vector<2x256xf32>
    %cst_64 = arith.constant 5.000000e-01 : f32
    %196 = vector.broadcast %cst_64 : f32 to vector<2x256xf32>
    %197 = arith.addf %195, %196 : vector<2x256xf32>
    %198 = vector.extract_strided_slice %197 {offsets = [0, 0], sizes = [2, 64], strides = [1, 1]} : vector<2x256xf32> to vector<2x64xf32>
    %199 = vector.extract_strided_slice %197 {offsets = [0, 64], sizes = [2, 64], strides = [1, 1]} : vector<2x256xf32> to vector<2x64xf32>
    %200 = vector.extract_strided_slice %190 {offsets = [0, 128], sizes = [2, 64], strides = [1, 1]} : vector<2x256xf32> to vector<2x64xf32>
    %201 = math.tanh %200 : vector<2x64xf32>
    %202 = vector.extract_strided_slice %197 {offsets = [0, 192], sizes = [2, 64], strides = [1, 1]} : vector<2x256xf32> to vector<2x64xf32>
    %203 = arith.mulf %199, %181 : vector<2x64xf32>
    %204 = arith.mulf %198, %201 : vector<2x64xf32>
    %205 = arith.addf %203, %204 : vector<2x64xf32>
    %206 = math.tanh %205 : vector<2x64xf32>
    %207 = arith.mulf %202, %206 : vector<2x64xf32>
    %c6 = arith.constant 6 : index
    %c0_65 = arith.constant 0 : index
    %c0_66 = arith.constant 0 : index
    %208 = vector.load %arg21[%c6, %c0_65, %c0_66] : memref<8x2x64xf32, #tpu.memory_space<vmem>>, vector<1x2x64xf32>
    %209 = vector.shape_cast %208 : vector<1x2x64xf32> to vector<2x64xf32>
    %210 = vector.shape_cast %207 : vector<2x64xf32> to vector<1x2x64xf32>
    tpu.vector_store %arg21[%c6, %c0_65, %c0_66], %210 {strides = array<i32>} : memref<8x2x64xf32, #tpu.memory_space<vmem>>, vector<1x2x64xf32>,
    %211 = vector.extract_strided_slice %40 {offsets = [7, 0, 0], sizes = [1, 2, 256], strides = [1, 1, 1]} : vector<8x2x256xf32> to vector<1x2x256xf32>
    %212 = vector.shape_cast %211 : vector<1x2x256xf32> to vector<2x256xf32>
    %cst_67 = arith.constant dense<0.000000e+00> : vector<2x256xf32>
    %213 = tpu.matmul %207, %33, %cst_67 {dimension_numbers = #tpu.dot_dimension_numbers<[1], [0], [0], [1], [0, 0, 1, 1], [], []>} : vector<2x64xf32>, vector<64x256xf32>, vector<2x256xf32> -> vector<2x256xf32>
    %214 = arith.addf %212, %213 : vector<2x256xf32>
    %cst_68 = arith.constant 5.000000e-01 : f32
    %215 = vector.broadcast %cst_68 : f32 to vector<2x256xf32>
    %216 = arith.mulf %215, %214 : vector<2x256xf32>
    %217 = math.tanh %216 : vector<2x256xf32>
    %cst_69 = arith.constant 5.000000e-01 : f32
    %218 = vector.broadcast %cst_69 : f32 to vector<2x256xf32>
    %219 = arith.mulf %218, %217 : vector<2x256xf32>
    %cst_70 = arith.constant 5.000000e-01 : f32
    %220 = vector.broadcast %cst_70 : f32 to vector<2x256xf32>
    %221 = arith.addf %219, %220 : vector<2x256xf32>
    %222 = vector.extract_strided_slice %221 {offsets = [0, 0], sizes = [2, 64], strides = [1, 1]} : vector<2x256xf32> to vector<2x64xf32>
    %223 = vector.extract_strided_slice %221 {offsets = [0, 64], sizes = [2, 64], strides = [1, 1]} : vector<2x256xf32> to vector<2x64xf32>
    %224 = vector.extract_strided_slice %214 {offsets = [0, 128], sizes = [2, 64], strides = [1, 1]} : vector<2x256xf32> to vector<2x64xf32>
    %225 = math.tanh %224 : vector<2x64xf32>
    %226 = vector.extract_strided_slice %221 {offsets = [0, 192], sizes = [2, 64], strides = [1, 1]} : vector<2x256xf32> to vector<2x64xf32>
    %227 = arith.mulf %223, %205 : vector<2x64xf32>
    %228 = arith.mulf %222, %225 : vector<2x64xf32>
    %229 = arith.addf %227, %228 : vector<2x64xf32>
    %230 = math.tanh %229 : vector<2x64xf32>
    %231 = arith.mulf %226, %230 : vector<2x64xf32>
    %c7 = arith.constant 7 : index
    %c0_71 = arith.constant 0 : index
    %c0_72 = arith.constant 0 : index
    %232 = vector.load %arg21[%c7, %c0_71, %c0_72] : memref<8x2x64xf32, #tpu.memory_space<vmem>>, vector<1x2x64xf32>
    %233 = vector.shape_cast %232 : vector<1x2x64xf32> to vector<2x64xf32>
    %234 = vector.shape_cast %231 : vector<2x64xf32> to vector<1x2x64xf32>
    tpu.vector_store %arg21[%c7, %c0_71, %c0_72], %234 {strides = array<i32>} : memref<8x2x64xf32, #tpu.memory_space<vmem>>, vector<1x2x64xf32>,
    %c0_73 = arith.constant 0 : index
    %c0_74 = arith.constant 0 : index
    %c0_75 = arith.constant 0 : index
    %235 = vector.load %arg21[%c0_73, %c0_74, %c0_75] : memref<8x2x64xf32, #tpu.memory_space<vmem>>, vector<8x2x64xf32>
    %c0_76 = arith.constant 0 : index
    %c0_77 = arith.constant 0 : index
    %c0_78 = arith.constant 0 : index
    %236 = vector.load %arg7[%c0_76, %c0_77, %c0_78] : memref<1x64x256xf32, #tpu.memory_space<vmem>>, vector<1x64x256xf32>
    %237 = vector.shape_cast %236 : vector<1x64x256xf32> to vector<64x256xf32>
    %c0_79 = arith.constant 0 : index
    %c0_80 = arith.constant 0 : index
    %c0_81 = arith.constant 0 : index
    %238 = vector.load %arg8[%c0_79, %c0_80, %c0_81] : memref<1x64x256xf32, #tpu.memory_space<vmem>>, vector<1x64x256xf32>
    %239 = vector.shape_cast %238 : vector<1x64x256xf32> to vector<64x256xf32>
    %c0_82 = arith.constant 0 : index
    %c0_83 = arith.constant 0 : index
    %c0_84 = arith.constant 0 : index
    %240 = vector.load %arg9[%c0_82, %c0_83, %c0_84] : memref<1x1x256xf32, #tpu.memory_space<vmem>>, vector<1x1x256xf32>
    %241 = vector.shape_cast %240 : vector<1x1x256xf32> to vector<1x256xf32>
    %242 = vector.shape_cast %235 : vector<8x2x64xf32> to vector<16x64xf32>
    %cst_85 = arith.constant dense<0.000000e+00> : vector<16x256xf32>
    %243 = tpu.matmul %242, %237, %cst_85 {dimension_numbers = #tpu.dot_dimension_numbers<[1], [0], [0], [1], [0, 0, 1, 1], [], []>} : vector<16x64xf32>, vector<64x256xf32>, vector<16x256xf32> -> vector<16x256xf32>
    %244 = vector.broadcast %241 : vector<1x256xf32> to vector<16x256xf32>
    %245 = arith.addf %243, %244 : vector<16x256xf32>
    %246 = vector.shape_cast %245 : vector<16x256xf32> to vector<8x2x256xf32>
    %cst_86 = arith.constant 0.000000e+00 : f32
    %247 = vector.broadcast %cst_86 : f32 to vector<2x64xf32>
    %cst_87 = arith.constant 0.000000e+00 : f32
    %248 = vector.broadcast %cst_87 : f32 to vector<2x64xf32>
    %249 = vector.extract_strided_slice %246 {offsets = [0, 0, 0], sizes = [1, 2, 256], strides = [1, 1, 1]} : vector<8x2x256xf32> to vector<1x2x256xf32>
    %250 = vector.shape_cast %249 : vector<1x2x256xf32> to vector<2x256xf32>
    %cst_88 = arith.constant dense<0.000000e+00> : vector<2x256xf32>
    %251 = tpu.matmul %247, %239, %cst_88 {dimension_numbers = #tpu.dot_dimension_numbers<[1], [0], [0], [1], [0, 0, 1, 1], [], []>} : vector<2x64xf32>, vector<64x256xf32>, vector<2x256xf32> -> vector<2x256xf32>
    %252 = arith.addf %250, %251 : vector<2x256xf32>
    %cst_89 = arith.constant 5.000000e-01 : f32
    %253 = vector.broadcast %cst_89 : f32 to vector<2x256xf32>
    %254 = arith.mulf %253, %252 : vector<2x256xf32>
    %255 = math.tanh %254 : vector<2x256xf32>
    %cst_90 = arith.constant 5.000000e-01 : f32
    %256 = vector.broadcast %cst_90 : f32 to vector<2x256xf32>
    %257 = arith.mulf %256, %255 : vector<2x256xf32>
    %cst_91 = arith.constant 5.000000e-01 : f32
    %258 = vector.broadcast %cst_91 : f32 to vector<2x256xf32>
    %259 = arith.addf %257, %258 : vector<2x256xf32>
    %260 = vector.extract_strided_slice %259 {offsets = [0, 0], sizes = [2, 64], strides = [1, 1]} : vector<2x256xf32> to vector<2x64xf32>
    %261 = vector.extract_strided_slice %259 {offsets = [0, 64], sizes = [2, 64], strides = [1, 1]} : vector<2x256xf32> to vector<2x64xf32>
    %262 = vector.extract_strided_slice %252 {offsets = [0, 128], sizes = [2, 64], strides = [1, 1]} : vector<2x256xf32> to vector<2x64xf32>
    %263 = math.tanh %262 : vector<2x64xf32>
    %264 = vector.extract_strided_slice %259 {offsets = [0, 192], sizes = [2, 64], strides = [1, 1]} : vector<2x256xf32> to vector<2x64xf32>
    %265 = arith.mulf %261, %248 : vector<2x64xf32>
    %266 = arith.mulf %260, %263 : vector<2x64xf32>
    %267 = arith.addf %265, %266 : vector<2x64xf32>
    %268 = math.tanh %267 : vector<2x64xf32>
    %269 = arith.mulf %264, %268 : vector<2x64xf32>
    %c0_92 = arith.constant 0 : index
    %c0_93 = arith.constant 0 : index
    %c0_94 = arith.constant 0 : index
    %270 = vector.load %arg21[%c0_92, %c0_93, %c0_94] : memref<8x2x64xf32, #tpu.memory_space<vmem>>, vector<1x2x64xf32>
    %271 = vector.shape_cast %270 : vector<1x2x64xf32> to vector<2x64xf32>
    %272 = vector.shape_cast %269 : vector<2x64xf32> to vector<1x2x64xf32>
    tpu.vector_store %arg21[%c0_92, %c0_93, %c0_94], %272 {strides = array<i32>} : memref<8x2x64xf32, #tpu.memory_space<vmem>>, vector<1x2x64xf32>,
    %273 = vector.extract_strided_slice %246 {offsets = [1, 0, 0], sizes = [1, 2, 256], strides = [1, 1, 1]} : vector<8x2x256xf32> to vector<1x2x256xf32>
    %274 = vector.shape_cast %273 : vector<1x2x256xf32> to vector<2x256xf32>
    %cst_95 = arith.constant dense<0.000000e+00> : vector<2x256xf32>
    %275 = tpu.matmul %269, %239, %cst_95 {dimension_numbers = #tpu.dot_dimension_numbers<[1], [0], [0], [1], [0, 0, 1, 1], [], []>} : vector<2x64xf32>, vector<64x256xf32>, vector<2x256xf32> -> vector<2x256xf32>
    %276 = arith.addf %274, %275 : vector<2x256xf32>
    %cst_96 = arith.constant 5.000000e-01 : f32
    %277 = vector.broadcast %cst_96 : f32 to vector<2x256xf32>
    %278 = arith.mulf %277, %276 : vector<2x256xf32>
    %279 = math.tanh %278 : vector<2x256xf32>
    %cst_97 = arith.constant 5.000000e-01 : f32
    %280 = vector.broadcast %cst_97 : f32 to vector<2x256xf32>
    %281 = arith.mulf %280, %279 : vector<2x256xf32>
    %cst_98 = arith.constant 5.000000e-01 : f32
    %282 = vector.broadcast %cst_98 : f32 to vector<2x256xf32>
    %283 = arith.addf %281, %282 : vector<2x256xf32>
    %284 = vector.extract_strided_slice %283 {offsets = [0, 0], sizes = [2, 64], strides = [1, 1]} : vector<2x256xf32> to vector<2x64xf32>
    %285 = vector.extract_strided_slice %283 {offsets = [0, 64], sizes = [2, 64], strides = [1, 1]} : vector<2x256xf32> to vector<2x64xf32>
    %286 = vector.extract_strided_slice %276 {offsets = [0, 128], sizes = [2, 64], strides = [1, 1]} : vector<2x256xf32> to vector<2x64xf32>
    %287 = math.tanh %286 : vector<2x64xf32>
    %288 = vector.extract_strided_slice %283 {offsets = [0, 192], sizes = [2, 64], strides = [1, 1]} : vector<2x256xf32> to vector<2x64xf32>
    %289 = arith.mulf %285, %267 : vector<2x64xf32>
    %290 = arith.mulf %284, %287 : vector<2x64xf32>
    %291 = arith.addf %289, %290 : vector<2x64xf32>
    %292 = math.tanh %291 : vector<2x64xf32>
    %293 = arith.mulf %288, %292 : vector<2x64xf32>
    %c1_99 = arith.constant 1 : index
    %c0_100 = arith.constant 0 : index
    %c0_101 = arith.constant 0 : index
    %294 = vector.load %arg21[%c1_99, %c0_100, %c0_101] : memref<8x2x64xf32, #tpu.memory_space<vmem>>, vector<1x2x64xf32>
    %295 = vector.shape_cast %294 : vector<1x2x64xf32> to vector<2x64xf32>
    %296 = vector.shape_cast %293 : vector<2x64xf32> to vector<1x2x64xf32>
    tpu.vector_store %arg21[%c1_99, %c0_100, %c0_101], %296 {strides = array<i32>} : memref<8x2x64xf32, #tpu.memory_space<vmem>>, vector<1x2x64xf32>,
    %297 = vector.extract_strided_slice %246 {offsets = [2, 0, 0], sizes = [1, 2, 256], strides = [1, 1, 1]} : vector<8x2x256xf32> to vector<1x2x256xf32>
    %298 = vector.shape_cast %297 : vector<1x2x256xf32> to vector<2x256xf32>
    %cst_102 = arith.constant dense<0.000000e+00> : vector<2x256xf32>
    %299 = tpu.matmul %293, %239, %cst_102 {dimension_numbers = #tpu.dot_dimension_numbers<[1], [0], [0], [1], [0, 0, 1, 1], [], []>} : vector<2x64xf32>, vector<64x256xf32>, vector<2x256xf32> -> vector<2x256xf32>
    %300 = arith.addf %298, %299 : vector<2x256xf32>
    %cst_103 = arith.constant 5.000000e-01 : f32
    %301 = vector.broadcast %cst_103 : f32 to vector<2x256xf32>
    %302 = arith.mulf %301, %300 : vector<2x256xf32>
    %303 = math.tanh %302 : vector<2x256xf32>
    %cst_104 = arith.constant 5.000000e-01 : f32
    %304 = vector.broadcast %cst_104 : f32 to vector<2x256xf32>
    %305 = arith.mulf %304, %303 : vector<2x256xf32>
    %cst_105 = arith.constant 5.000000e-01 : f32
    %306 = vector.broadcast %cst_105 : f32 to vector<2x256xf32>
    %307 = arith.addf %305, %306 : vector<2x256xf32>
    %308 = vector.extract_strided_slice %307 {offsets = [0, 0], sizes = [2, 64], strides = [1, 1]} : vector<2x256xf32> to vector<2x64xf32>
    %309 = vector.extract_strided_slice %307 {offsets = [0, 64], sizes = [2, 64], strides = [1, 1]} : vector<2x256xf32> to vector<2x64xf32>
    %310 = vector.extract_strided_slice %300 {offsets = [0, 128], sizes = [2, 64], strides = [1, 1]} : vector<2x256xf32> to vector<2x64xf32>
    %311 = math.tanh %310 : vector<2x64xf32>
    %312 = vector.extract_strided_slice %307 {offsets = [0, 192], sizes = [2, 64], strides = [1, 1]} : vector<2x256xf32> to vector<2x64xf32>
    %313 = arith.mulf %309, %291 : vector<2x64xf32>
    %314 = arith.mulf %308, %311 : vector<2x64xf32>
    %315 = arith.addf %313, %314 : vector<2x64xf32>
    %316 = math.tanh %315 : vector<2x64xf32>
    %317 = arith.mulf %312, %316 : vector<2x64xf32>
    %c2_106 = arith.constant 2 : index
    %c0_107 = arith.constant 0 : index
    %c0_108 = arith.constant 0 : index
    %318 = vector.load %arg21[%c2_106, %c0_107, %c0_108] : memref<8x2x64xf32, #tpu.memory_space<vmem>>, vector<1x2x64xf32>
    %319 = vector.shape_cast %318 : vector<1x2x64xf32> to vector<2x64xf32>
    %320 = vector.shape_cast %317 : vector<2x64xf32> to vector<1x2x64xf32>
    tpu.vector_store %arg21[%c2_106, %c0_107, %c0_108], %320 {strides = array<i32>} : memref<8x2x64xf32, #tpu.memory_space<vmem>>, vector<1x2x64xf32>,
    %321 = vector.extract_strided_slice %246 {offsets = [3, 0, 0], sizes = [1, 2, 256], strides = [1, 1, 1]} : vector<8x2x256xf32> to vector<1x2x256xf32>
    %322 = vector.shape_cast %321 : vector<1x2x256xf32> to vector<2x256xf32>
    %cst_109 = arith.constant dense<0.000000e+00> : vector<2x256xf32>
    %323 = tpu.matmul %317, %239, %cst_109 {dimension_numbers = #tpu.dot_dimension_numbers<[1], [0], [0], [1], [0, 0, 1, 1], [], []>} : vector<2x64xf32>, vector<64x256xf32>, vector<2x256xf32> -> vector<2x256xf32>
    %324 = arith.addf %322, %323 : vector<2x256xf32>
    %cst_110 = arith.constant 5.000000e-01 : f32
    %325 = vector.broadcast %cst_110 : f32 to vector<2x256xf32>
    %326 = arith.mulf %325, %324 : vector<2x256xf32>
    %327 = math.tanh %326 : vector<2x256xf32>
    %cst_111 = arith.constant 5.000000e-01 : f32
    %328 = vector.broadcast %cst_111 : f32 to vector<2x256xf32>
    %329 = arith.mulf %328, %327 : vector<2x256xf32>
    %cst_112 = arith.constant 5.000000e-01 : f32
    %330 = vector.broadcast %cst_112 : f32 to vector<2x256xf32>
    %331 = arith.addf %329, %330 : vector<2x256xf32>
    %332 = vector.extract_strided_slice %331 {offsets = [0, 0], sizes = [2, 64], strides = [1, 1]} : vector<2x256xf32> to vector<2x64xf32>
    %333 = vector.extract_strided_slice %331 {offsets = [0, 64], sizes = [2, 64], strides = [1, 1]} : vector<2x256xf32> to vector<2x64xf32>
    %334 = vector.extract_strided_slice %324 {offsets = [0, 128], sizes = [2, 64], strides = [1, 1]} : vector<2x256xf32> to vector<2x64xf32>
    %335 = math.tanh %334 : vector<2x64xf32>
    %336 = vector.extract_strided_slice %331 {offsets = [0, 192], sizes = [2, 64], strides = [1, 1]} : vector<2x256xf32> to vector<2x64xf32>
    %337 = arith.mulf %333, %315 : vector<2x64xf32>
    %338 = arith.mulf %332, %335 : vector<2x64xf32>
    %339 = arith.addf %337, %338 : vector<2x64xf32>
    %340 = math.tanh %339 : vector<2x64xf32>
    %341 = arith.mulf %336, %340 : vector<2x64xf32>
    %c3_113 = arith.constant 3 : index
    %c0_114 = arith.constant 0 : index
    %c0_115 = arith.constant 0 : index
    %342 = vector.load %arg21[%c3_113, %c0_114, %c0_115] : memref<8x2x64xf32, #tpu.memory_space<vmem>>, vector<1x2x64xf32>
    %343 = vector.shape_cast %342 : vector<1x2x64xf32> to vector<2x64xf32>
    %344 = vector.shape_cast %341 : vector<2x64xf32> to vector<1x2x64xf32>
    tpu.vector_store %arg21[%c3_113, %c0_114, %c0_115], %344 {strides = array<i32>} : memref<8x2x64xf32, #tpu.memory_space<vmem>>, vector<1x2x64xf32>,
    %345 = vector.extract_strided_slice %246 {offsets = [4, 0, 0], sizes = [1, 2, 256], strides = [1, 1, 1]} : vector<8x2x256xf32> to vector<1x2x256xf32>
    %346 = vector.shape_cast %345 : vector<1x2x256xf32> to vector<2x256xf32>
    %cst_116 = arith.constant dense<0.000000e+00> : vector<2x256xf32>
    %347 = tpu.matmul %341, %239, %cst_116 {dimension_numbers = #tpu.dot_dimension_numbers<[1], [0], [0], [1], [0, 0, 1, 1], [], []>} : vector<2x64xf32>, vector<64x256xf32>, vector<2x256xf32> -> vector<2x256xf32>
    %348 = arith.addf %346, %347 : vector<2x256xf32>
    %cst_117 = arith.constant 5.000000e-01 : f32
    %349 = vector.broadcast %cst_117 : f32 to vector<2x256xf32>
    %350 = arith.mulf %349, %348 : vector<2x256xf32>
    %351 = math.tanh %350 : vector<2x256xf32>
    %cst_118 = arith.constant 5.000000e-01 : f32
    %352 = vector.broadcast %cst_118 : f32 to vector<2x256xf32>
    %353 = arith.mulf %352, %351 : vector<2x256xf32>
    %cst_119 = arith.constant 5.000000e-01 : f32
    %354 = vector.broadcast %cst_119 : f32 to vector<2x256xf32>
    %355 = arith.addf %353, %354 : vector<2x256xf32>
    %356 = vector.extract_strided_slice %355 {offsets = [0, 0], sizes = [2, 64], strides = [1, 1]} : vector<2x256xf32> to vector<2x64xf32>
    %357 = vector.extract_strided_slice %355 {offsets = [0, 64], sizes = [2, 64], strides = [1, 1]} : vector<2x256xf32> to vector<2x64xf32>
    %358 = vector.extract_strided_slice %348 {offsets = [0, 128], sizes = [2, 64], strides = [1, 1]} : vector<2x256xf32> to vector<2x64xf32>
    %359 = math.tanh %358 : vector<2x64xf32>
    %360 = vector.extract_strided_slice %355 {offsets = [0, 192], sizes = [2, 64], strides = [1, 1]} : vector<2x256xf32> to vector<2x64xf32>
    %361 = arith.mulf %357, %339 : vector<2x64xf32>
    %362 = arith.mulf %356, %359 : vector<2x64xf32>
    %363 = arith.addf %361, %362 : vector<2x64xf32>
    %364 = math.tanh %363 : vector<2x64xf32>
    %365 = arith.mulf %360, %364 : vector<2x64xf32>
    %c4_120 = arith.constant 4 : index
    %c0_121 = arith.constant 0 : index
    %c0_122 = arith.constant 0 : index
    %366 = vector.load %arg21[%c4_120, %c0_121, %c0_122] : memref<8x2x64xf32, #tpu.memory_space<vmem>>, vector<1x2x64xf32>
    %367 = vector.shape_cast %366 : vector<1x2x64xf32> to vector<2x64xf32>
    %368 = vector.shape_cast %365 : vector<2x64xf32> to vector<1x2x64xf32>
    tpu.vector_store %arg21[%c4_120, %c0_121, %c0_122], %368 {strides = array<i32>} : memref<8x2x64xf32, #tpu.memory_space<vmem>>, vector<1x2x64xf32>,
    %369 = vector.extract_strided_slice %246 {offsets = [5, 0, 0], sizes = [1, 2, 256], strides = [1, 1, 1]} : vector<8x2x256xf32> to vector<1x2x256xf32>
    %370 = vector.shape_cast %369 : vector<1x2x256xf32> to vector<2x256xf32>
    %cst_123 = arith.constant dense<0.000000e+00> : vector<2x256xf32>
    %371 = tpu.matmul %365, %239, %cst_123 {dimension_numbers = #tpu.dot_dimension_numbers<[1], [0], [0], [1], [0, 0, 1, 1], [], []>} : vector<2x64xf32>, vector<64x256xf32>, vector<2x256xf32> -> vector<2x256xf32>
    %372 = arith.addf %370, %371 : vector<2x256xf32>
    %cst_124 = arith.constant 5.000000e-01 : f32
    %373 = vector.broadcast %cst_124 : f32 to vector<2x256xf32>
    %374 = arith.mulf %373, %372 : vector<2x256xf32>
    %375 = math.tanh %374 : vector<2x256xf32>
    %cst_125 = arith.constant 5.000000e-01 : f32
    %376 = vector.broadcast %cst_125 : f32 to vector<2x256xf32>
    %377 = arith.mulf %376, %375 : vector<2x256xf32>
    %cst_126 = arith.constant 5.000000e-01 : f32
    %378 = vector.broadcast %cst_126 : f32 to vector<2x256xf32>
    %379 = arith.addf %377, %378 : vector<2x256xf32>
    %380 = vector.extract_strided_slice %379 {offsets = [0, 0], sizes = [2, 64], strides = [1, 1]} : vector<2x256xf32> to vector<2x64xf32>
    %381 = vector.extract_strided_slice %379 {offsets = [0, 64], sizes = [2, 64], strides = [1, 1]} : vector<2x256xf32> to vector<2x64xf32>
    %382 = vector.extract_strided_slice %372 {offsets = [0, 128], sizes = [2, 64], strides = [1, 1]} : vector<2x256xf32> to vector<2x64xf32>
    %383 = math.tanh %382 : vector<2x64xf32>
    %384 = vector.extract_strided_slice %379 {offsets = [0, 192], sizes = [2, 64], strides = [1, 1]} : vector<2x256xf32> to vector<2x64xf32>
    %385 = arith.mulf %381, %363 : vector<2x64xf32>
    %386 = arith.mulf %380, %383 : vector<2x64xf32>
    %387 = arith.addf %385, %386 : vector<2x64xf32>
    %388 = math.tanh %387 : vector<2x64xf32>
    %389 = arith.mulf %384, %388 : vector<2x64xf32>
    %c5_127 = arith.constant 5 : index
    %c0_128 = arith.constant 0 : index
    %c0_129 = arith.constant 0 : index
    %390 = vector.load %arg21[%c5_127, %c0_128, %c0_129] : memref<8x2x64xf32, #tpu.memory_space<vmem>>, vector<1x2x64xf32>
    %391 = vector.shape_cast %390 : vector<1x2x64xf32> to vector<2x64xf32>
    %392 = vector.shape_cast %389 : vector<2x64xf32> to vector<1x2x64xf32>
    tpu.vector_store %arg21[%c5_127, %c0_128, %c0_129], %392 {strides = array<i32>} : memref<8x2x64xf32, #tpu.memory_space<vmem>>, vector<1x2x64xf32>,
    %393 = vector.extract_strided_slice %246 {offsets = [6, 0, 0], sizes = [1, 2, 256], strides = [1, 1, 1]} : vector<8x2x256xf32> to vector<1x2x256xf32>
    %394 = vector.shape_cast %393 : vector<1x2x256xf32> to vector<2x256xf32>
    %cst_130 = arith.constant dense<0.000000e+00> : vector<2x256xf32>
    %395 = tpu.matmul %389, %239, %cst_130 {dimension_numbers = #tpu.dot_dimension_numbers<[1], [0], [0], [1], [0, 0, 1, 1], [], []>} : vector<2x64xf32>, vector<64x256xf32>, vector<2x256xf32> -> vector<2x256xf32>
    %396 = arith.addf %394, %395 : vector<2x256xf32>
    %cst_131 = arith.constant 5.000000e-01 : f32
    %397 = vector.broadcast %cst_131 : f32 to vector<2x256xf32>
    %398 = arith.mulf %397, %396 : vector<2x256xf32>
    %399 = math.tanh %398 : vector<2x256xf32>
    %cst_132 = arith.constant 5.000000e-01 : f32
    %400 = vector.broadcast %cst_132 : f32 to vector<2x256xf32>
    %401 = arith.mulf %400, %399 : vector<2x256xf32>
    %cst_133 = arith.constant 5.000000e-01 : f32
    %402 = vector.broadcast %cst_133 : f32 to vector<2x256xf32>
    %403 = arith.addf %401, %402 : vector<2x256xf32>
    %404 = vector.extract_strided_slice %403 {offsets = [0, 0], sizes = [2, 64], strides = [1, 1]} : vector<2x256xf32> to vector<2x64xf32>
    %405 = vector.extract_strided_slice %403 {offsets = [0, 64], sizes = [2, 64], strides = [1, 1]} : vector<2x256xf32> to vector<2x64xf32>
    %406 = vector.extract_strided_slice %396 {offsets = [0, 128], sizes = [2, 64], strides = [1, 1]} : vector<2x256xf32> to vector<2x64xf32>
    %407 = math.tanh %406 : vector<2x64xf32>
    %408 = vector.extract_strided_slice %403 {offsets = [0, 192], sizes = [2, 64], strides = [1, 1]} : vector<2x256xf32> to vector<2x64xf32>
    %409 = arith.mulf %405, %387 : vector<2x64xf32>
    %410 = arith.mulf %404, %407 : vector<2x64xf32>
    %411 = arith.addf %409, %410 : vector<2x64xf32>
    %412 = math.tanh %411 : vector<2x64xf32>
    %413 = arith.mulf %408, %412 : vector<2x64xf32>
    %c6_134 = arith.constant 6 : index
    %c0_135 = arith.constant 0 : index
    %c0_136 = arith.constant 0 : index
    %414 = vector.load %arg21[%c6_134, %c0_135, %c0_136] : memref<8x2x64xf32, #tpu.memory_space<vmem>>, vector<1x2x64xf32>
    %415 = vector.shape_cast %414 : vector<1x2x64xf32> to vector<2x64xf32>
    %416 = vector.shape_cast %413 : vector<2x64xf32> to vector<1x2x64xf32>
    tpu.vector_store %arg21[%c6_134, %c0_135, %c0_136], %416 {strides = array<i32>} : memref<8x2x64xf32, #tpu.memory_space<vmem>>, vector<1x2x64xf32>,
    %417 = vector.extract_strided_slice %246 {offsets = [7, 0, 0], sizes = [1, 2, 256], strides = [1, 1, 1]} : vector<8x2x256xf32> to vector<1x2x256xf32>
    %418 = vector.shape_cast %417 : vector<1x2x256xf32> to vector<2x256xf32>
    %cst_137 = arith.constant dense<0.000000e+00> : vector<2x256xf32>
    %419 = tpu.matmul %413, %239, %cst_137 {dimension_numbers = #tpu.dot_dimension_numbers<[1], [0], [0], [1], [0, 0, 1, 1], [], []>} : vector<2x64xf32>, vector<64x256xf32>, vector<2x256xf32> -> vector<2x256xf32>
    %420 = arith.addf %418, %419 : vector<2x256xf32>
    %cst_138 = arith.constant 5.000000e-01 : f32
    %421 = vector.broadcast %cst_138 : f32 to vector<2x256xf32>
    %422 = arith.mulf %421, %420 : vector<2x256xf32>
    %423 = math.tanh %422 : vector<2x256xf32>
    %cst_139 = arith.constant 5.000000e-01 : f32
    %424 = vector.broadcast %cst_139 : f32 to vector<2x256xf32>
    %425 = arith.mulf %424, %423 : vector<2x256xf32>
    %cst_140 = arith.constant 5.000000e-01 : f32
    %426 = vector.broadcast %cst_140 : f32 to vector<2x256xf32>
    %427 = arith.addf %425, %426 : vector<2x256xf32>
    %428 = vector.extract_strided_slice %427 {offsets = [0, 0], sizes = [2, 64], strides = [1, 1]} : vector<2x256xf32> to vector<2x64xf32>
    %429 = vector.extract_strided_slice %427 {offsets = [0, 64], sizes = [2, 64], strides = [1, 1]} : vector<2x256xf32> to vector<2x64xf32>
    %430 = vector.extract_strided_slice %420 {offsets = [0, 128], sizes = [2, 64], strides = [1, 1]} : vector<2x256xf32> to vector<2x64xf32>
    %431 = math.tanh %430 : vector<2x64xf32>
    %432 = vector.extract_strided_slice %427 {offsets = [0, 192], sizes = [2, 64], strides = [1, 1]} : vector<2x256xf32> to vector<2x64xf32>
    %433 = arith.mulf %429, %411 : vector<2x64xf32>
    %434 = arith.mulf %428, %431 : vector<2x64xf32>
    %435 = arith.addf %433, %434 : vector<2x64xf32>
    %436 = math.tanh %435 : vector<2x64xf32>
    %437 = arith.mulf %432, %436 : vector<2x64xf32>
    %c7_141 = arith.constant 7 : index
    %c0_142 = arith.constant 0 : index
    %c0_143 = arith.constant 0 : index
    %438 = vector.load %arg21[%c7_141, %c0_142, %c0_143] : memref<8x2x64xf32, #tpu.memory_space<vmem>>, vector<1x2x64xf32>
    %439 = vector.shape_cast %438 : vector<1x2x64xf32> to vector<2x64xf32>
    %440 = vector.shape_cast %437 : vector<2x64xf32> to vector<1x2x64xf32>
    tpu.vector_store %arg21[%c7_141, %c0_142, %c0_143], %440 {strides = array<i32>} : memref<8x2x64xf32, #tpu.memory_space<vmem>>, vector<1x2x64xf32>,
    %c0_144 = arith.constant 0 : index
    %c0_145 = arith.constant 0 : index
    %c0_146 = arith.constant 0 : index
    %441 = vector.load %arg10[%c0_144, %c0_145, %c0_146] : memref<1x64x64xf32, #tpu.memory_space<vmem>>, vector<1x64x64xf32>
    %442 = vector.shape_cast %441 : vector<1x64x64xf32> to vector<64x64xf32>
    %cst_147 = arith.constant dense<0.000000e+00> : vector<2x64xf32>
    %443 = tpu.matmul %437, %442, %cst_147 {dimension_numbers = #tpu.dot_dimension_numbers<[1], [0], [0], [1], [0, 0, 1, 1], [], []>} : vector<2x64xf32>, vector<64x64xf32>, vector<2x64xf32> -> vector<2x64xf32>
    %c0_148 = arith.constant 0 : index
    %c0_149 = arith.constant 0 : index
    %c0_150 = arith.constant 0 : index
    %444 = vector.load %arg11[%c0_148, %c0_149, %c0_150] : memref<1x1x64xf32, #tpu.memory_space<vmem>>, vector<1x1x64xf32>
    %445 = vector.shape_cast %444 : vector<1x1x64xf32> to vector<1x64xf32>
    %446 = vector.broadcast %445 : vector<1x64xf32> to vector<2x64xf32>
    %447 = arith.addf %443, %446 : vector<2x64xf32>
    %cst_151 = arith.constant 5.000000e-01 : f32
    %448 = vector.broadcast %cst_151 : f32 to vector<2x64xf32>
    %449 = arith.mulf %448, %447 : vector<2x64xf32>
    %450 = math.tanh %449 : vector<2x64xf32>
    %cst_152 = arith.constant 5.000000e-01 : f32
    %451 = vector.broadcast %cst_152 : f32 to vector<2x64xf32>
    %452 = arith.mulf %451, %450 : vector<2x64xf32>
    %cst_153 = arith.constant 5.000000e-01 : f32
    %453 = vector.broadcast %cst_153 : f32 to vector<2x64xf32>
    %454 = arith.addf %452, %453 : vector<2x64xf32>
    %c0_154 = arith.constant 0 : index
    %c0_155 = arith.constant 0 : index
    %c0_156 = arith.constant 0 : index
    %455 = vector.load %arg12[%c0_154, %c0_155, %c0_156] : memref<1x64x64xf32, #tpu.memory_space<vmem>>, vector<1x64x64xf32>
    %456 = vector.shape_cast %455 : vector<1x64x64xf32> to vector<64x64xf32>
    %cst_157 = arith.constant dense<0.000000e+00> : vector<2x64xf32>
    %457 = tpu.matmul %454, %456, %cst_157 {dimension_numbers = #tpu.dot_dimension_numbers<[1], [0], [0], [1], [0, 0, 1, 1], [], []>} : vector<2x64xf32>, vector<64x64xf32>, vector<2x64xf32> -> vector<2x64xf32>
    %c0_158 = arith.constant 0 : index
    %c0_159 = arith.constant 0 : index
    %c0_160 = arith.constant 0 : index
    %458 = vector.load %arg13[%c0_158, %c0_159, %c0_160] : memref<1x1x64xf32, #tpu.memory_space<vmem>>, vector<1x1x64xf32>
    %459 = vector.shape_cast %458 : vector<1x1x64xf32> to vector<1x64xf32>
    %460 = vector.broadcast %459 : vector<1x64xf32> to vector<2x64xf32>
    %461 = arith.addf %457, %460 : vector<2x64xf32>
    %cst_161 = arith.constant 5.000000e-01 : f32
    %462 = vector.broadcast %cst_161 : f32 to vector<2x64xf32>
    %463 = arith.mulf %462, %461 : vector<2x64xf32>
    %464 = math.tanh %463 : vector<2x64xf32>
    %cst_162 = arith.constant 5.000000e-01 : f32
    %465 = vector.broadcast %cst_162 : f32 to vector<2x64xf32>
    %466 = arith.mulf %465, %464 : vector<2x64xf32>
    %cst_163 = arith.constant 5.000000e-01 : f32
    %467 = vector.broadcast %cst_163 : f32 to vector<2x64xf32>
    %468 = arith.addf %466, %467 : vector<2x64xf32>
    %c0_164 = arith.constant 0 : index
    %c0_165 = arith.constant 0 : index
    %c0_166 = arith.constant 0 : index
    %469 = vector.load %arg14[%c0_164, %c0_165, %c0_166] : memref<1x64x64xf32, #tpu.memory_space<vmem>>, vector<1x64x64xf32>
    %470 = vector.shape_cast %469 : vector<1x64x64xf32> to vector<64x64xf32>
    %cst_167 = arith.constant dense<0.000000e+00> : vector<2x64xf32>
    %471 = tpu.matmul %468, %470, %cst_167 {dimension_numbers = #tpu.dot_dimension_numbers<[1], [0], [0], [1], [0, 0, 1, 1], [], []>} : vector<2x64xf32>, vector<64x64xf32>, vector<2x64xf32> -> vector<2x64xf32>
    %c0_168 = arith.constant 0 : index
    %c0_169 = arith.constant 0 : index
    %c0_170 = arith.constant 0 : index
    %472 = vector.load %arg15[%c0_168, %c0_169, %c0_170] : memref<1x1x64xf32, #tpu.memory_space<vmem>>, vector<1x1x64xf32>
    %473 = vector.shape_cast %472 : vector<1x1x64xf32> to vector<1x64xf32>
    %474 = vector.broadcast %473 : vector<1x64xf32> to vector<2x64xf32>
    %475 = arith.addf %471, %474 : vector<2x64xf32>
    %cst_171 = arith.constant 5.000000e-01 : f32
    %476 = vector.broadcast %cst_171 : f32 to vector<2x64xf32>
    %477 = arith.mulf %476, %475 : vector<2x64xf32>
    %478 = math.tanh %477 : vector<2x64xf32>
    %cst_172 = arith.constant 5.000000e-01 : f32
    %479 = vector.broadcast %cst_172 : f32 to vector<2x64xf32>
    %480 = arith.mulf %479, %478 : vector<2x64xf32>
    %cst_173 = arith.constant 5.000000e-01 : f32
    %481 = vector.broadcast %cst_173 : f32 to vector<2x64xf32>
    %482 = arith.addf %480, %481 : vector<2x64xf32>
    %c0_174 = arith.constant 0 : index
    %c0_175 = arith.constant 0 : index
    %c0_176 = arith.constant 0 : index
    %483 = vector.load %arg16[%c0_174, %c0_175, %c0_176] : memref<1x64x64xf32, #tpu.memory_space<vmem>>, vector<1x64x64xf32>
    %484 = vector.shape_cast %483 : vector<1x64x64xf32> to vector<64x64xf32>
    %cst_177 = arith.constant dense<0.000000e+00> : vector<2x64xf32>
    %485 = tpu.matmul %482, %484, %cst_177 {dimension_numbers = #tpu.dot_dimension_numbers<[1], [0], [0], [1], [0, 0, 1, 1], [], []>} : vector<2x64xf32>, vector<64x64xf32>, vector<2x64xf32> -> vector<2x64xf32>
    %c0_178 = arith.constant 0 : index
    %c0_179 = arith.constant 0 : index
    %c0_180 = arith.constant 0 : index
    %486 = vector.load %arg17[%c0_178, %c0_179, %c0_180] : memref<1x1x64xf32, #tpu.memory_space<vmem>>, vector<1x1x64xf32>
    %487 = vector.shape_cast %486 : vector<1x1x64xf32> to vector<1x64xf32>
    %488 = vector.broadcast %487 : vector<1x64xf32> to vector<2x64xf32>
    %489 = arith.addf %485, %488 : vector<2x64xf32>
    %cst_181 = arith.constant 5.000000e-01 : f32
    %490 = vector.broadcast %cst_181 : f32 to vector<2x64xf32>
    %491 = arith.mulf %490, %489 : vector<2x64xf32>
    %492 = math.tanh %491 : vector<2x64xf32>
    %cst_182 = arith.constant 5.000000e-01 : f32
    %493 = vector.broadcast %cst_182 : f32 to vector<2x64xf32>
    %494 = arith.mulf %493, %492 : vector<2x64xf32>
    %cst_183 = arith.constant 5.000000e-01 : f32
    %495 = vector.broadcast %cst_183 : f32 to vector<2x64xf32>
    %496 = arith.addf %494, %495 : vector<2x64xf32>
    %c0_184 = arith.constant 0 : index
    %c0_185 = arith.constant 0 : index
    %c0_186 = arith.constant 0 : index
    %497 = vector.load %arg18[%c0_184, %c0_185, %c0_186] : memref<1x64x8xf32, #tpu.memory_space<vmem>>, vector<1x64x8xf32>
    %498 = vector.shape_cast %497 : vector<1x64x8xf32> to vector<64x8xf32>
    %cst_187 = arith.constant dense<0.000000e+00> : vector<2x8xf32>
    %499 = tpu.matmul %496, %498, %cst_187 {dimension_numbers = #tpu.dot_dimension_numbers<[1], [0], [0], [1], [0, 0, 1, 1], [], []>} : vector<2x64xf32>, vector<64x8xf32>, vector<2x8xf32> -> vector<2x8xf32>
    %c0_188 = arith.constant 0 : index
    %c0_189 = arith.constant 0 : index
    %c0_190 = arith.constant 0 : index
    %500 = vector.load %arg19[%c0_188, %c0_189, %c0_190] : memref<1x1x8xf32, #tpu.memory_space<vmem>>, vector<1x1x8xf32>
    %501 = vector.shape_cast %500 : vector<1x1x8xf32> to vector<1x8xf32>
    %502 = vector.broadcast %501 : vector<1x8xf32> to vector<2x8xf32>
    %503 = arith.addf %499, %502 : vector<2x8xf32>
    %cst_191 = arith.constant 5.000000e-01 : f32
    %504 = vector.broadcast %cst_191 : f32 to vector<2x8xf32>
    %505 = arith.mulf %504, %503 : vector<2x8xf32>
    %506 = math.tanh %505 : vector<2x8xf32>
    %cst_192 = arith.constant 5.000000e-01 : f32
    %507 = vector.broadcast %cst_192 : f32 to vector<2x8xf32>
    %508 = arith.mulf %507, %506 : vector<2x8xf32>
    %cst_193 = arith.constant 5.000000e-01 : f32
    %509 = vector.broadcast %cst_193 : f32 to vector<2x8xf32>
    %510 = arith.addf %508, %509 : vector<2x8xf32>
    %511 = vector.extract_strided_slice %510 {offsets = [0, 0], sizes = [2, 4], strides = [1, 1]} : vector<2x8xf32> to vector<2x4xf32>
    %512 = vector.extract_strided_slice %510 {offsets = [0, 4], sizes = [2, 4], strides = [1, 1]} : vector<2x8xf32> to vector<2x4xf32>
    %513 = arith.addf %511, %512 : vector<2x4xf32>
    %c0_194 = arith.constant 0 : index
    %c0_195 = arith.constant 0 : index
    %c0_196 = arith.constant 0 : index
    %514 = vector.load %arg20[%c0_194, %c0_195, %c0_196] : memref<1x2x4xf32, #tpu.memory_space<vmem>>, vector<1x2x4xf32>
    %515 = vector.shape_cast %514 : vector<1x2x4xf32> to vector<2x4xf32>
    %516 = vector.shape_cast %513 : vector<2x4xf32> to vector<1x2x4xf32>
    tpu.vector_store %arg20[%c0_194, %c0_195, %c0_196], %516 {strides = array<i32>} : memref<1x2x4xf32, #tpu.memory_space<vmem>>, vector<1x2x4xf32>,
    return
  }
  func.func @transform_0(%arg0: i32) -> (i32, i32, i32) {
    %c0_i32 = arith.constant 0 : i32
    %c0_i32_0 = arith.constant 0 : i32
    %c0_i32_1 = arith.constant 0 : i32
    %c0_i32_2 = arith.constant 0 : i32
    return %c0_i32, %c0_i32_0, %c0_i32_1 : i32, i32, i32
  }
  func.func @transform_1(%arg0: i32) -> (i32, i32, i32) {
    %c0_i32 = arith.constant 0 : i32
    %c0_i32_0 = arith.constant 0 : i32
    %c0_i32_1 = arith.constant 0 : i32
    return %arg0, %c0_i32, %c0_i32_0 : i32, i32, i32
  }
  func.func @transform_2(%arg0: i32) -> (i32, i32, i32) {
    %c0_i32 = arith.constant 0 : i32
    %c0_i32_0 = arith.constant 0 : i32
    %c0_i32_1 = arith.constant 0 : i32
    return %arg0, %c0_i32, %c0_i32_0 : i32, i32, i32
  }
  func.func @transform_3(%arg0: i32) -> (i32, i32, i32) {
    %c0_i32 = arith.constant 0 : i32
    %c0_i32_0 = arith.constant 0 : i32
    %c0_i32_1 = arith.constant 0 : i32
    return %arg0, %c0_i32, %c0_i32_0 : i32, i32, i32
  }
  func.func @transform_4(%arg0: i32) -> (i32, i32, i32) {
    %c0_i32 = arith.constant 0 : i32
    %c0_i32_0 = arith.constant 0 : i32
    %c0_i32_1 = arith.constant 0 : i32
    return %arg0, %c0_i32, %c0_i32_0 : i32, i32, i32
  }
  func.func @transform_5(%arg0: i32) -> (i32, i32, i32) {
    %c0_i32 = arith.constant 0 : i32
    %c0_i32_0 = arith.constant 0 : i32
    %c0_i32_1 = arith.constant 0 : i32
    return %arg0, %c0_i32, %c0_i32_0 : i32, i32, i32
  }
  func.func @transform_6(%arg0: i32) -> (i32, i32, i32) {
    %c0_i32 = arith.constant 0 : i32
    %c0_i32_0 = arith.constant 0 : i32
    %c0_i32_1 = arith.constant 0 : i32
    return %arg0, %c0_i32, %c0_i32_0 : i32, i32, i32
  }
  func.func @transform_7(%arg0: i32) -> (i32, i32, i32) {
    %c0_i32 = arith.constant 0 : i32
    %c0_i32_0 = arith.constant 0 : i32
    %c0_i32_1 = arith.constant 0 : i32
    return %arg0, %c0_i32, %c0_i32_0 : i32, i32, i32
  }
  func.func @transform_8(%arg0: i32) -> (i32, i32, i32) {
    %c0_i32 = arith.constant 0 : i32
    %c0_i32_0 = arith.constant 0 : i32
    %c0_i32_1 = arith.constant 0 : i32
    return %arg0, %c0_i32, %c0_i32_0 : i32, i32, i32
  }
  func.func @transform_9(%arg0: i32) -> (i32, i32, i32) {
    %c0_i32 = arith.constant 0 : i32
    %c0_i32_0 = arith.constant 0 : i32
    %c0_i32_1 = arith.constant 0 : i32
    return %arg0, %c0_i32, %c0_i32_0 : i32, i32, i32
  }
  func.func @transform_10(%arg0: i32) -> (i32, i32, i32) {
    %c0_i32 = arith.constant 0 : i32
    %c0_i32_0 = arith.constant 0 : i32
    %c0_i32_1 = arith.constant 0 : i32
    return %arg0, %c0_i32, %c0_i32_0 : i32, i32, i32
  }
  func.func @transform_11(%arg0: i32) -> (i32, i32, i32) {
    %c0_i32 = arith.constant 0 : i32
    %c0_i32_0 = arith.constant 0 : i32
    %c0_i32_1 = arith.constant 0 : i32
    return %arg0, %c0_i32, %c0_i32_0 : i32, i32, i32
  }
  func.func @transform_12(%arg0: i32) -> (i32, i32, i32) {
    %c0_i32 = arith.constant 0 : i32
    %c0_i32_0 = arith.constant 0 : i32
    %c0_i32_1 = arith.constant 0 : i32
    return %arg0, %c0_i32, %c0_i32_0 : i32, i32, i32
  }
  func.func @transform_13(%arg0: i32) -> (i32, i32, i32) {
    %c0_i32 = arith.constant 0 : i32
    %c0_i32_0 = arith.constant 0 : i32
    %c0_i32_1 = arith.constant 0 : i32
    return %arg0, %c0_i32, %c0_i32_0 : i32, i32, i32
  }
  func.func @transform_14(%arg0: i32) -> (i32, i32, i32) {
    %c0_i32 = arith.constant 0 : i32
    %c0_i32_0 = arith.constant 0 : i32
    %c0_i32_1 = arith.constant 0 : i32
    return %arg0, %c0_i32, %c0_i32_0 : i32, i32, i32
  }
  func.func @transform_15(%arg0: i32) -> (i32, i32, i32) {
    %c0_i32 = arith.constant 0 : i32
    %c0_i32_0 = arith.constant 0 : i32
    %c0_i32_1 = arith.constant 0 : i32
    return %arg0, %c0_i32, %c0_i32_0 : i32, i32, i32
  }
  func.func @transform_16(%arg0: i32) -> (i32, i32, i32) {
    %c0_i32 = arith.constant 0 : i32
    %c0_i32_0 = arith.constant 0 : i32
    %c0_i32_1 = arith.constant 0 : i32
    return %arg0, %c0_i32, %c0_i32_0 : i32, i32, i32
  }
  func.func @transform_17(%arg0: i32) -> (i32, i32, i32) {
    %c0_i32 = arith.constant 0 : i32
    %c0_i32_0 = arith.constant 0 : i32
    %c0_i32_1 = arith.constant 0 : i32
    return %arg0, %c0_i32, %c0_i32_0 : i32, i32, i32
  }
  func.func @transform_18(%arg0: i32) -> (i32, i32, i32) {
    %c0_i32 = arith.constant 0 : i32
    %c0_i32_0 = arith.constant 0 : i32
    %c0_i32_1 = arith.constant 0 : i32
    return %arg0, %c0_i32, %c0_i32_0 : i32, i32, i32
  }
  func.func @transform_19(%arg0: i32) -> (i32, i32, i32) {
    %c0_i32 = arith.constant 0 : i32
    %c0_i32_0 = arith.constant 0 : i32
    %c0_i32_1 = arith.constant 0 : i32
    return %arg0, %c0_i32, %c0_i32_0 : i32, i32, i32
  }
}

</mosaic_0001>

<llo_original>
// kernel: multi_lstm_forward.1
$region0: #{multi_lstm_forward.1}
  #allocation0 [shape = 'u32[]', space=smem, size = 0x4, offset = 0x4, fixed_abs, tag = 'smem constant byte address 0x4 - core index']
  #allocation1 [shape = 'u32[72,128]{1,0:T(1,128)}', space=vmem, size = 0x9000, scoped, tag = 'internal scratch']
  #allocation2 [shape = 'f32[8,2,64]{2,1,0:T(2,128)}', space=vmem, size = 0x2000, scoped, tag = 'scratch operand']
  %s0 = inlined_call_operand.vmem [shape: f32[8,2,4], index: 0, kind: input, shape index: {}]
  %s1 = inlined_call_operand.vmem [shape: f32[1,8,8], index: 1, kind: input, shape index: {}]
  %s2 = inlined_call_operand.vmem [shape: f32[1,8,8], index: 2, kind: input, shape index: {}]
  %s3 = inlined_call_operand.vmem [shape: f32[1,8,256], index: 3, kind: input, shape index: {}]
  %s4 = inlined_call_operand.hbm [shape: f32[1,64,256], index: 4, kind: input, shape index: {}]
  %s5 = inlined_call_operand.vmem [shape: f32[1,1,256], index: 5, kind: input, shape index: {}]
  %s6 = inlined_call_operand.hbm [shape: f32[1,64,256], index: 6, kind: input, shape index: {}]
  %s7 = inlined_call_operand.hbm [shape: f32[1,64,256], index: 7, kind: input, shape index: {}]
  %s8 = inlined_call_operand.vmem [shape: f32[1,1,256], index: 8, kind: input, shape index: {}]
  %s9 = inlined_call_operand.vmem [shape: f32[1,64,64], index: 9, kind: input, shape index: {}]
  %s10 = inlined_call_operand.hbm [shape: f32[1,1,64], index: 10, kind: input, shape index: {}]
  %s11 = inlined_call_operand.hbm [shape: f32[1,64,64], index: 11, kind: input, shape index: {}]
  %s12 = inlined_call_operand.hbm [shape: f32[1,1,64], index: 12, kind: input, shape index: {}]
  %s13 = inlined_call_operand.hbm [shape: f32[1,64,64], index: 13, kind: input, shape index: {}]
  %s14 = inlined_call_operand.hbm [shape: f32[1,1,64], index: 14, kind: input, shape index: {}]
  %s15 = inlined_call_operand.hbm [shape: f32[1,64,64], index: 15, kind: input, shape index: {}]
  %s16 = inlined_call_operand.hbm [shape: f32[1,1,64], index: 16, kind: input, shape index: {}]
  %s17 = inlined_call_operand.vmem [shape: f32[1,64,8], index: 17, kind: input, shape index: {}]
  %s18 = inlined_call_operand.hbm [shape: f32[1,1,8], index: 18, kind: input, shape index: {}]
  %s19 = inlined_call_operand.hbm [shape: f32[1,2,4], index: 19, kind: output, shape index: {}]
  %s20 = sld [smem:[#allocation0]]
  $region130: #{multi_lstm_forward.1} parent=0
    _
  %s22 = ssub.s32 1, %s20
  %s23 = scalar_select 0, %s22, %s20
  $region1: #{multi_lstm_forward.1} parent=0
    #allocation3 [shape = 'u8[65536]{0}', space=vmem, size = 0x10000, scoped, tag = 'input window, operand 4, single buffered']
    #allocation4 [shape = 's32[1]{0}', space=sflag, size = 0x4, scoped, tag = 'scoped memory for multi_lstm_forward.1']
    #allocation5 [shape = 's32[1]{0}', space=sflag, size = 0x4, scoped, tag = 'scoped memory for multi_lstm_forward.1']
    #allocation6 [shape = 'u8[65536]{0}', space=vmem, size = 0x10000, scoped, tag = 'input window, operand 6, single buffered']
    #allocation7 [shape = 's32[1]{0}', space=sflag, size = 0x4, scoped, tag = 'scoped memory for multi_lstm_forward.1']
    #allocation8 [shape = 'u8[65536]{0}', space=vmem, size = 0x10000, scoped, tag = 'input window, operand 7, single buffered']
    #allocation9 [shape = 'u8[512]{0}', space=vmem, size = 0x400, scoped, tag = 'input window, operand 10, single buffered']
    #allocation10 [shape = 's32[1]{0}', space=sflag, size = 0x4, scoped, tag = 'scoped memory for multi_lstm_forward.1']
    #allocation11 [shape = 'u8[32768]{0}', space=vmem, size = 0x8000, scoped, tag = 'input window, operand 11, single buffered']
    #allocation12 [shape = 'u8[512]{0}', space=vmem, size = 0x400, scoped, tag = 'input window, operand 12, single buffered']
    #allocation13 [shape = 's32[1]{0}', space=sflag, size = 0x4, scoped, tag = 'scoped memory for multi_lstm_forward.1']
    #allocation14 [shape = 'u8[32768]{0}', space=vmem, size = 0x8000, scoped, tag = 'input window, operand 13, single buffered']
    #allocation15 [shape = 'u8[512]{0}', space=vmem, size = 0x400, scoped, tag = 'input window, operand 14, single buffered']
    #allocation16 [shape = 's32[1]{0}', space=sflag, size = 0x4, scoped, tag = 'scoped memory for multi_lstm_forward.1']
    #allocation17 [shape = 'u8[32768]{0}', space=vmem, size = 0x8000, scoped, tag = 'input window, operand 15, single buffered']
    #allocation18 [shape = 'u8[512]{0}', space=vmem, size = 0x400, scoped, tag = 'input window, operand 16, single buffered']
    #allocation19 [shape = 's32[1]{0}', space=sflag, size = 0x4, scoped, tag = 'scoped memory for multi_lstm_forward.1']
    #allocation20 [shape = 'u8[512]{0}', space=vmem, size = 0x400, scoped, tag = 'input window, operand 18, single buffered']
    #allocation21 [shape = 'u8[1024]{0}', space=vmem, size = 0x400, scoped, tag = 'output window, operand 0, single buffered']
    %24 = vsyncpa [#allocation4], 0
    %25 = vsyncpa [#allocation7], 0
    %26 = vsyncpa [#allocation10], 0
    %27 = vsyncpa [#allocation13], 0
    %28 = vsyncpa [#allocation16], 0
    %29 = vsyncpa [#allocation19], 0
    %30 = vsyncpa [#allocation5], 0
    // Predicated region
    $region2: #{multi_lstm_forward.1} parent=1 // pred_check
      _
    $region3: #{multi_lstm_forward.1} parent=1 // pred_check_branch
      %32 = sbr.rel (0) target = $region5
    $region4: #{multi_lstm_forward.1} parent=1 // pred_region
      _
    $region5: #{multi_lstm_forward.1} parent=1 // pred_fallthru
      _
    // Predicated region
    $region6: #{multi_lstm_forward.1} parent=1 // pred_check
      _
    $region7: #{multi_lstm_forward.1} parent=1 // pred_check_branch
      %34 = sbr.rel (0) target = $region9
    $region8: #{multi_lstm_forward.1} parent=1 // pred_region
      _
    $region9: #{multi_lstm_forward.1} parent=1 // pred_fallthru
      _
    // Predicated region
    $region10: #{multi_lstm_forward.1} parent=1 // pred_check
      _
    $region11: #{multi_lstm_forward.1} parent=1 // pred_check_branch
      %36 = sbr.rel (0) target = $region13
    $region12: #{multi_lstm_forward.1} parent=1 // pred_region
      _
    $region13: #{multi_lstm_forward.1} parent=1 // pred_fallthru
      _
    // Predicated region
    $region14: #{multi_lstm_forward.1} parent=1 // pred_check
      _
    $region15: #{multi_lstm_forward.1} parent=1 // pred_check_branch
      %38 = sbr.rel (0) target = $region17
    $region16: #{multi_lstm_forward.1} parent=1 // pred_region
      _
    $region17: #{multi_lstm_forward.1} parent=1 // pred_fallthru
      _
    // Predicated region
    $region18: #{multi_lstm_forward.1} parent=1 // pred_check
      _
    $region19: #{multi_lstm_forward.1} parent=1 // pred_check_branch
      %40 = sbr.rel (0) target = $region21
    $region20: #{multi_lstm_forward.1} parent=1 // pred_region
      %42 = vsyncadd [#allocation4], 0
      %s43 = sshll.u32 %s4, 4
      %s44 = int_to_ptr.hbm [resolvable:$true] %s43
      %s45 = sshll.u32 [#allocation3], 4
      %s46 = int_to_ptr.vmem [resolvable:$true] %s45
      %51 = dma.hbm_to_vmem [thread:$0]  %s44, 2048, %s46, [#allocation4], 256, 256, 16
    $region21: #{multi_lstm_forward.1} parent=1 // pred_fallthru
      _
    // Predicated region
    $region22: #{multi_lstm_forward.1} parent=1 // pred_check
      _
    $region23: #{multi_lstm_forward.1} parent=1 // pred_check_branch
      %53 = sbr.rel (0) target = $region25
    $region24: #{multi_lstm_forward.1} parent=1 // pred_region
      _
    $region25: #{multi_lstm_forward.1} parent=1 // pred_fallthru
      _
    // Predicated region
    $region26: #{multi_lstm_forward.1} parent=1 // pred_check
      _
    $region27: #{multi_lstm_forward.1} parent=1 // pred_check_branch
      %55 = sbr.rel (0) target = $region29
    $region28: #{multi_lstm_forward.1} parent=1 // pred_region
      %57 = vsyncadd [#allocation7], 0
      %s58 = sshll.u32 %s6, 4
      %s59 = int_to_ptr.hbm [resolvable:$true] %s58
      %s60 = sshll.u32 [#allocation6], 4
      %s61 = int_to_ptr.vmem [resolvable:$true] %s60
      %66 = dma.hbm_to_vmem [thread:$0]  %s59, 2048, %s61, [#allocation7], 256, 256, 16
    $region29: #{multi_lstm_forward.1} parent=1 // pred_fallthru
      _
    // Predicated region
    $region30: #{multi_lstm_forward.1} parent=1 // pred_check
      _
    $region31: #{multi_lstm_forward.1} parent=1 // pred_check_branch
      %68 = sbr.rel (0) target = $region33
    $region32: #{multi_lstm_forward.1} parent=1 // pred_region
      %70 = vsyncadd [#allocation7], 0
      %s71 = sshll.u32 %s7, 4
      %s72 = int_to_ptr.hbm [resolvable:$true] %s71
      %s73 = sshll.u32 [#allocation8], 4
      %s74 = int_to_ptr.vmem [resolvable:$true] %s73
      %79 = dma.hbm_to_vmem [thread:$0]  %s72, 2048, %s74, [#allocation7], 256, 256, 16
    $region33: #{multi_lstm_forward.1} parent=1 // pred_fallthru
      _
    // Predicated region
    $region34: #{multi_lstm_forward.1} parent=1 // pred_check
      _
    $region35: #{multi_lstm_forward.1} parent=1 // pred_check_branch
      %81 = sbr.rel (0) target = $region37
    $region36: #{multi_lstm_forward.1} parent=1 // pred_region
      _
    $region37: #{multi_lstm_forward.1} parent=1 // pred_fallthru
      _
    // Predicated region
    $region38: #{multi_lstm_forward.1} parent=1 // pred_check
      _
    $region39: #{multi_lstm_forward.1} parent=1 // pred_check_branch
      %83 = sbr.rel (0) target = $region41
    $region40: #{multi_lstm_forward.1} parent=1 // pred_region
      _
    $region41: #{multi_lstm_forward.1} parent=1 // pred_fallthru
      _
    // Predicated region
    $region42: #{multi_lstm_forward.1} parent=1 // pred_check
      _
    $region43: #{multi_lstm_forward.1} parent=1 // pred_check_branch
      %85 = sbr.rel (0) target = $region45
    $region44: #{multi_lstm_forward.1} parent=1 // pred_region
      %87 = vsyncadd [#allocation10], 0
      %s89 = sshll.u32 %s10, 4
      %s90 = int_to_ptr.hbm [resolvable:$true] %s89
      %s91 = sshll.u32 [#allocation9], 4
      %s92 = int_to_ptr.vmem [resolvable:$true] %s91
      %94 = dma.hbm_to_vmem [thread:$0]  %s90, 16, %s92, [#allocation10]
    $region45: #{multi_lstm_forward.1} parent=1 // pred_fallthru
      _
    // Predicated region
    $region46: #{multi_lstm_forward.1} parent=1 // pred_check
      _
    $region47: #{multi_lstm_forward.1} parent=1 // pred_check_branch
      %96 = sbr.rel (0) target = $region49
    $region48: #{multi_lstm_forward.1} parent=1 // pred_region
      %98 = vsyncadd [#allocation10], 0
      %s99 = sshll.u32 %s11, 4
      %s100 = int_to_ptr.hbm [resolvable:$true] %s99
      %s101 = sshll.u32 [#allocation11], 4
      %s102 = int_to_ptr.vmem [resolvable:$true] %s101
      %107 = dma.hbm_to_vmem [thread:$0]  %s100, 1024, %s102, [#allocation10], 128, 128, 8
    $region49: #{multi_lstm_forward.1} parent=1 // pred_fallthru
      _
    // Predicated region
    $region50: #{multi_lstm_forward.1} parent=1 // pred_check
      _
    $region51: #{multi_lstm_forward.1} parent=1 // pred_check_branch
      %109 = sbr.rel (0) target = $region53
    $region52: #{multi_lstm_forward.1} parent=1 // pred_region
      %111 = vsyncadd [#allocation13], 0
      %s113 = sshll.u32 %s12, 4
      %s114 = int_to_ptr.hbm [resolvable:$true] %s113
      %s115 = sshll.u32 [#allocation12], 4
      %s116 = int_to_ptr.vmem [resolvable:$true] %s115
      %118 = dma.hbm_to_vmem [thread:$0]  %s114, 16, %s116, [#allocation13]
    $region53: #{multi_lstm_forward.1} parent=1 // pred_fallthru
      _
    // Predicated region
    $region54: #{multi_lstm_forward.1} parent=1 // pred_check
      _
    $region55: #{multi_lstm_forward.1} parent=1 // pred_check_branch
      %120 = sbr.rel (0) target = $region57
    $region56: #{multi_lstm_forward.1} parent=1 // pred_region
      %122 = vsyncadd [#allocation13], 0
      %s123 = sshll.u32 %s13, 4
      %s124 = int_to_ptr.hbm [resolvable:$true] %s123
      %s125 = sshll.u32 [#allocation14], 4
      %s126 = int_to_ptr.vmem [resolvable:$true] %s125
      %131 = dma.hbm_to_vmem [thread:$0]  %s124, 1024, %s126, [#allocation13], 128, 128, 8
    $region57: #{multi_lstm_forward.1} parent=1 // pred_fallthru
      _
    // Predicated region
    $region58: #{multi_lstm_forward.1} parent=1 // pred_check
      _
    $region59: #{multi_lstm_forward.1} parent=1 // pred_check_branch
      %133 = sbr.rel (0) target = $region61
    $region60: #{multi_lstm_forward.1} parent=1 // pred_region
      %135 = vsyncadd [#allocation16], 0
      %s137 = sshll.u32 %s14, 4
      %s138 = int_to_ptr.hbm [resolvable:$true] %s137
      %s139 = sshll.u32 [#allocation15], 4
      %s140 = int_to_ptr.vmem [resolvable:$true] %s139
      %142 = dma.hbm_to_vmem [thread:$0]  %s138, 16, %s140, [#allocation16]
    $region61: #{multi_lstm_forward.1} parent=1 // pred_fallthru
      _
    // Predicated region
    $region62: #{multi_lstm_forward.1} parent=1 // pred_check
      _
    $region63: #{multi_lstm_forward.1} parent=1 // pred_check_branch
      %144 = sbr.rel (0) target = $region65
    $region64: #{multi_lstm_forward.1} parent=1 // pred_region
      %146 = vsyncadd [#allocation16], 0
      %s147 = sshll.u32 %s15, 4
      %s148 = int_to_ptr.hbm [resolvable:$true] %s147
      %s149 = sshll.u32 [#allocation17], 4
      %s150 = int_to_ptr.vmem [resolvable:$true] %s149
      %155 = dma.hbm_to_vmem [thread:$0]  %s148, 1024, %s150, [#allocation16], 128, 128, 8
    $region65: #{multi_lstm_forward.1} parent=1 // pred_fallthru
      _
    // Predicated region
    $region66: #{multi_lstm_forward.1} parent=1 // pred_check
      _
    $region67: #{multi_lstm_forward.1} parent=1 // pred_check_branch
      %157 = sbr.rel (0) target = $region69
    $region68: #{multi_lstm_forward.1} parent=1 // pred_region
      %159 = vsyncadd [#allocation19], 0
      %s161 = sshll.u32 %s16, 4
      %s162 = int_to_ptr.hbm [resolvable:$true] %s161
      %s163 = sshll.u32 [#allocation18], 4
      %s164 = int_to_ptr.vmem [resolvable:$true] %s163
      %166 = dma.hbm_to_vmem [thread:$0]  %s162, 16, %s164, [#allocation19]
    $region69: #{multi_lstm_forward.1} parent=1 // pred_fallthru
      _
    // Predicated region
    $region70: #{multi_lstm_forward.1} parent=1 // pred_check
      _
    $region71: #{multi_lstm_forward.1} parent=1 // pred_check_branch
      %168 = sbr.rel (0) target = $region73
    $region72: #{multi_lstm_forward.1} parent=1 // pred_region
      _
    $region73: #{multi_lstm_forward.1} parent=1 // pred_fallthru
      _
    // Predicated region
    $region74: #{multi_lstm_forward.1} parent=1 // pred_check
      _
    $region75: #{multi_lstm_forward.1} parent=1 // pred_check_branch
      %170 = sbr.rel (0) target = $region77
    $region76: #{multi_lstm_forward.1} parent=1 // pred_region
      %172 = vsyncadd [#allocation19], 0
      %s174 = sshll.u32 %s18, 4
      %s175 = int_to_ptr.hbm [resolvable:$true] %s174
      %s176 = sshll.u32 [#allocation20], 4
      %s177 = int_to_ptr.vmem [resolvable:$true] %s176
      %179 = dma.hbm_to_vmem [thread:$0]  %s175, 16, %s177, [#allocation19]
    $region77: #{multi_lstm_forward.1} parent=1 // pred_fallthru
      _
    // Predicated region
    $region78: #{multi_lstm_forward.1} parent=1 // pred_check
      _
    $region79: #{multi_lstm_forward.1} parent=1 // pred_check_branch
      %181 = sbr.rel (0) target = $region81
    $region80: #{multi_lstm_forward.1} parent=1 // pred_region
      %183 = dma.done [#allocation4], 2048
    $region81: #{multi_lstm_forward.1} parent=1 // pred_fallthru
      _
    // Predicated region
    $region82: #{multi_lstm_forward.1} parent=1 // pred_check
      _
    $region83: #{multi_lstm_forward.1} parent=1 // pred_check_branch
      %185 = sbr.rel (0) target = $region85
    $region84: #{multi_lstm_forward.1} parent=1 // pred_region
      %187 = dma.done [#allocation7], 2048
    $region85: #{multi_lstm_forward.1} parent=1 // pred_fallthru
      _
    // Predicated region
    $region86: #{multi_lstm_forward.1} parent=1 // pred_check
      _
    $region87: #{multi_lstm_forward.1} parent=1 // pred_check_branch
      %189 = sbr.rel (0) target = $region89
    $region88: #{multi_lstm_forward.1} parent=1 // pred_region
      %191 = dma.done [#allocation7], 2048
    $region89: #{multi_lstm_forward.1} parent=1 // pred_fallthru
      _
    // Predicated region
    $region90: #{multi_lstm_forward.1} parent=1 // pred_check
      _
    $region91: #{multi_lstm_forward.1} parent=1 // pred_check_branch
      %193 = sbr.rel (0) target = $region93
    $region92: #{multi_lstm_forward.1} parent=1 // pred_region
      %195 = dma.done [#allocation10], 16
    $region93: #{multi_lstm_forward.1} parent=1 // pred_fallthru
      _
    // Predicated region
    $region94: #{multi_lstm_forward.1} parent=1 // pred_check
      _
    $region95: #{multi_lstm_forward.1} parent=1 // pred_check_branch
      %197 = sbr.rel (0) target = $region97
    $region96: #{multi_lstm_forward.1} parent=1 // pred_region
      %199 = dma.done [#allocation10], 1024
    $region97: #{multi_lstm_forward.1} parent=1 // pred_fallthru
      _
    // Predicated region
    $region98: #{multi_lstm_forward.1} parent=1 // pred_check
      _
    $region99: #{multi_lstm_forward.1} parent=1 // pred_check_branch
      %201 = sbr.rel (0) target = $region101
    $region100: #{multi_lstm_forward.1} parent=1 // pred_region
      %203 = dma.done [#allocation13], 16
    $region101: #{multi_lstm_forward.1} parent=1 // pred_fallthru
      _
    // Predicated region
    $region102: #{multi_lstm_forward.1} parent=1 // pred_check
      _
    $region103: #{multi_lstm_forward.1} parent=1 // pred_check_branch
      %205 = sbr.rel (0) target = $region105
    $region104: #{multi_lstm_forward.1} parent=1 // pred_region
      %207 = dma.done [#allocation13], 1024
    $region105: #{multi_lstm_forward.1} parent=1 // pred_fallthru
      _
    // Predicated region
    $region106: #{multi_lstm_forward.1} parent=1 // pred_check
      _
    $region107: #{multi_lstm_forward.1} parent=1 // pred_check_branch
      %209 = sbr.rel (0) target = $region109
    $region108: #{multi_lstm_forward.1} parent=1 // pred_region
      %211 = dma.done [#allocation16], 16
    $region109: #{multi_lstm_forward.1} parent=1 // pred_fallthru
      _
    // Predicated region
    $region110: #{multi_lstm_forward.1} parent=1 // pred_check
      _
    $region111: #{multi_lstm_forward.1} parent=1 // pred_check_branch
      %213 = sbr.rel (0) target = $region113
    $region112: #{multi_lstm_forward.1} parent=1 // pred_region
      %215 = dma.done [#allocation16], 1024
    $region113: #{multi_lstm_forward.1} parent=1 // pred_fallthru
      _
    // Predicated region
    $region114: #{multi_lstm_forward.1} parent=1 // pred_check
      _
    $region115: #{multi_lstm_forward.1} parent=1 // pred_check_branch
      %217 = sbr.rel (0) target = $region117
    $region116: #{multi_lstm_forward.1} parent=1 // pred_region
      %219 = dma.done [#allocation19], 16
    $region117: #{multi_lstm_forward.1} parent=1 // pred_fallthru
      _
    // Predicated region
    $region118: #{multi_lstm_forward.1} parent=1 // pred_check
      _
    $region119: #{multi_lstm_forward.1} parent=1 // pred_check_branch
      %221 = sbr.rel (0) target = $region121
    $region120: #{multi_lstm_forward.1} parent=1 // pred_region
      %223 = dma.done [#allocation19], 16
    $region121: #{multi_lstm_forward.1} parent=1 // pred_fallthru
      _
    %v224 = vld [vmem:[%s0] sm:$0x3]
    %v225 = vld [vmem:[%s0 + $0x2] sm:$0x3]
    %v226 = vld [vmem:[%s0 + $0x4] sm:$0x3]
    %v227 = vld [vmem:[%s0 + $0x6] sm:$0x3]
    %v228 = vld [vmem:[%s0 + $0x8] sm:$0x3]
    %v229 = vld [vmem:[%s0 + $0xa] sm:$0x3]
    %v230 = vld [vmem:[%s0 + $0xc] sm:$0x3]
    %v231 = vld [vmem:[%s0 + $0xe] sm:$0x3]
    %vm232 = vcmask 25600
    %v233 = vsel %vm232, %v224, 0.0
    %v234 = vsel %vm232, %v225, 0.0
    %v235 = vadd.f32 %v233, %v234
    %v236 = vsel %vm232, %v226, 0.0
    %v237 = vadd.f32 %v235, %v236
    %v238 = vsel %vm232, %v227, 0.0
    %v239 = vadd.f32 %v237, %v238
    %v240 = vsel %vm232, %v228, 0.0
    %v241 = vadd.f32 %v239, %v240
    %v242 = vsel %vm232, %v229, 0.0
    %v243 = vadd.f32 %v241, %v242
    %v244 = vsel %vm232, %v230, 0.0
    %v245 = vadd.f32 %v243, %v244
    %v246 = vsel %vm232, %v231, 0.0
    %v247 = vadd.f32 %v245, %v246
    %248 = vadd.xlane.f32.xlu0 %v247
    %v249 = vpop.xlane.xlu0 %248
    %v250 = vrcp.pop 32.0
    %v251 = vmul.f32 32.0, %v250
    %v252 = vsub.f32 1.0, %v251
    %v253 = vmul.f32 %v250, %v252
    %v254 = vadd.f32 %v250, %v253
    %vm255 = vweird.f32 %v250
    %v256 = vsel %vm255, %v250, %v254
    %v257 = vmul.f32 %v249, %v256
    %v258 = vsub.f32 %v224, %v257
    %v259 = vsub.f32 %v225, %v257
    %v260 = vsub.f32 %v226, %v257
    %v261 = vsub.f32 %v227, %v257
    %v262 = vsub.f32 %v228, %v257
    %v263 = vsub.f32 %v229, %v257
    %v264 = vsub.f32 %v230, %v257
    %v265 = vsub.f32 %v231, %v257
    %v266 = vmul.f32 %v258, %v258
    %v267 = vmul.f32 %v259, %v259
    %v268 = vmul.f32 %v260, %v260
    %v269 = vmul.f32 %v261, %v261
    %v270 = vmul.f32 %v262, %v262
    %v271 = vmul.f32 %v263, %v263
    %v272 = vmul.f32 %v264, %v264
    %v273 = vmul.f32 %v265, %v265
    %v274 = vsel %vm232, %v266, 0.0
    %v275 = vsel %vm232, %v267, 0.0
    %v276 = vadd.f32 %v274, %v275
    %v277 = vsel %vm232, %v268, 0.0
    %v278 = vadd.f32 %v276, %v277
    %v279 = vsel %vm232, %v269, 0.0
    %v280 = vadd.f32 %v278, %v279
    %v281 = vsel %vm232, %v270, 0.0
    %v282 = vadd.f32 %v280, %v281
    %v283 = vsel %vm232, %v271, 0.0
    %v284 = vadd.f32 %v282, %v283
    %v285 = vsel %vm232, %v272, 0.0
    %v286 = vadd.f32 %v284, %v285
    %v287 = vsel %vm232, %v273, 0.0
    %v288 = vadd.f32 %v286, %v287
    %289 = vadd.xlane.f32.xlu0 %v288
    %v290 = vpop.xlane.xlu0 %289
    %v291 = vmul.f32 %v290, %v256
    %v292 = vadd.f32 %v291, 1e-05
    %v293 = vrsqrt.pop %v292
    %v294 = vmul.f32 %v293, %v292
    %v295 = vmul.f32 %v294, %v293
    %v296 = vmul.f32 0.5, %v295
    %v297 = vsub.f32 1.5, %v296
    %v298 = vmul.f32 %v293, %v297
    %vm299 = vweird.f32 %v292
    %vm300 = vweird.f32 %v293
    %vm301 = vmor %vm299, %vm300
    %v302 = vsel %vm301, %v293, %v298
    %v303 = vmul.f32 %v258, %v302
    %v304 = vmul.f32 %v259, %v302
    %v305 = vmul.f32 %v260, %v302
    %v306 = vmul.f32 %v261, %v302
    %v307 = vmul.f32 %v262, %v302
    %v308 = vmul.f32 %v263, %v302
    %v309 = vmul.f32 %v264, %v302
    %v310 = vmul.f32 %v265, %v302
    %319 = vrot.lane.b32.xlu0 %v303, 4
    %v320 = vpop.permute.xlu0 %319
    %321 = vrot.lane.b32.xlu0 %v304, 4
    %v322 = vpop.permute.xlu0 %321
    %323 = vrot.lane.b32.xlu0 %v305, 4
    %v324 = vpop.permute.xlu0 %323
    %325 = vrot.lane.b32.xlu0 %v306, 4
    %v326 = vpop.permute.xlu0 %325
    %327 = vrot.lane.b32.xlu0 %v307, 4
    %v328 = vpop.permute.xlu0 %327
    %329 = vrot.lane.b32.xlu0 %v308, 4
    %v330 = vpop.permute.xlu0 %329
    %331 = vrot.lane.b32.xlu0 %v309, 4
    %v332 = vpop.permute.xlu0 %331
    %333 = vrot.lane.b32.xlu0 %v310, 4
    %v334 = vpop.permute.xlu0 %333
    %vm343 = vcmask 31744
    %v344 = vsel %vm343, %v303, %v320
    %v345 = vsel %vm343, %v304, %v322
    %v346 = vsel %vm343, %v305, %v324
    %v347 = vsel %vm343, %v306, %v326
    %v348 = vsel %vm343, %v307, %v328
    %v349 = vsel %vm343, %v308, %v330
    %v350 = vsel %vm343, %v309, %v332
    %v351 = vsel %vm343, %v310, %v334
    %v352 = vld [vmem:[%s1] sm:$0xff]
    %v354 = vrot.slane %v352, 1
    %v355 = vrot.slane %v352, 2
    %v356 = vrot.slane %v352, 3
    %v357 = vrot.slane %v352, 4
    %v358 = vrot.slane %v352, 5
    %v359 = vrot.slane %v352, 6
    %v360 = vrot.slane %v352, 7
    %v361 = vperm.slane %v352, 0
    %v362 = vperm.slane %v354, 0
    %v363 = vperm.slane %v355, 0
    %v364 = vperm.slane %v356, 0
    %v365 = vperm.slane %v357, 0
    %v366 = vperm.slane %v358, 0
    %v367 = vperm.slane %v359, 0
    %v368 = vperm.slane %v360, 0
    %v377 = vmul.f32 %v344, %v361
    %v378 = vmul.f32 %v345, %v362
    %v379 = vmul.f32 %v346, %v363
    %v380 = vmul.f32 %v347, %v364
    %v381 = vmul.f32 %v348, %v365
    %v382 = vmul.f32 %v349, %v366
    %v383 = vmul.f32 %v350, %v367
    %v384 = vmul.f32 %v351, %v368
    %v385 = vld [vmem:[%s2] sm:$0xff]
    %v387 = vrot.slane %v385, 1
    %v388 = vrot.slane %v385, 2
    %v389 = vrot.slane %v385, 3
    %v390 = vrot.slane %v385, 4
    %v391 = vrot.slane %v385, 5
    %v392 = vrot.slane %v385, 6
    %v393 = vrot.slane %v385, 7
    %v394 = vperm.slane %v385, 0
    %v395 = vperm.slane %v387, 0
    %v396 = vperm.slane %v388, 0
    %v397 = vperm.slane %v389, 0
    %v398 = vperm.slane %v390, 0
    %v399 = vperm.slane %v391, 0
    %v400 = vperm.slane %v392, 0
    %v401 = vperm.slane %v393, 0
    %v410 = vadd.f32 %v377, %v394
    %v411 = vadd.f32 %v378, %v395
    %v412 = vadd.f32 %v379, %v396
    %v413 = vadd.f32 %v380, %v397
    %v414 = vadd.f32 %v381, %v398
    %v415 = vadd.f32 %v382, %v399
    %v416 = vadd.f32 %v383, %v400
    %v417 = vadd.f32 %v384, %v401
    %v418 = vld [vmem:[%s3] sm:$0xff]
    %v419 = vld [vmem:[%s3 + $0x8] sm:$0xff]
    %v420 = vld [vmem:[#allocation3] sm:$0xff]
    %v421 = vld [vmem:[#allocation3 + $0x8] sm:$0xff]
    %v422 = vld [vmem:[#allocation3 + $0x10] sm:$0xff]
    %v423 = vld [vmem:[#allocation3 + $0x18] sm:$0xff]
    %v424 = vld [vmem:[#allocation3 + $0x20] sm:$0xff]
    %v425 = vld [vmem:[#allocation3 + $0x28] sm:$0xff]
    %v426 = vld [vmem:[#allocation3 + $0x30] sm:$0xff]
    %v427 = vld [vmem:[#allocation3 + $0x38] sm:$0xff]
    %v428 = vld [vmem:[#allocation3 + $0x40] sm:$0xff]
    %v429 = vld [vmem:[#allocation3 + $0x48] sm:$0xff]
    %v430 = vld [vmem:[#allocation3 + $0x50] sm:$0xff]
    %v431 = vld [vmem:[#allocation3 + $0x58] sm:$0xff]
    %v432 = vld [vmem:[#allocation3 + $0x60] sm:$0xff]
    %v433 = vld [vmem:[#allocation3 + $0x68] sm:$0xff]
    %v434 = vld [vmem:[#allocation3 + $0x70] sm:$0xff]
    %v435 = vld [vmem:[#allocation3 + $0x78] sm:$0xff]
    %v436 = vld [vmem:[%s5] sm:$0x3]
    %v438 = vperm.slane %v436, 0
    %v439 = vperm.slane %v436, 1
    %450 = vst [vmem:[#allocation1] ss:$4 sm:$0xff] %v410
    %s451 = scalar_lea.vmem [#allocation1], 1
    %452 = vst [vmem:[%s451] ss:$4 sm:$0xff] %v411
    %s453 = scalar_lea.vmem [#allocation1], 2
    %454 = vst [vmem:[%s453] ss:$4 sm:$0xff] %v412
    %s455 = scalar_lea.vmem [#allocation1], 3
    %456 = vst [vmem:[%s455] ss:$4 sm:$0xff] %v413
    %s457 = scalar_lea.vmem [#allocation1], 32
    %458 = vst [vmem:[%s457] ss:$4 sm:$0xff] %v414
    %s459 = scalar_lea.vmem [#allocation1], 33
    %460 = vst [vmem:[%s459] ss:$4 sm:$0xff] %v415
    %s461 = scalar_lea.vmem [#allocation1], 34
    %462 = vst [vmem:[%s461] ss:$4 sm:$0xff] %v416
    %s463 = scalar_lea.vmem [#allocation1], 35
    %464 = vst [vmem:[%s463] ss:$4 sm:$0xff] %v417
    %v465 = vld.sshfl [vmem:[#allocation1] sm:$0xff pattern:$0x73625140]
    %v466 = vld.sshfl [vmem:[#allocation1 + $0x20] sm:$0xff pattern:$0x73625140]
    %vm467 = vcmask 64512
    %v468 = vsel %vm467, %v465, 0
    %v470 = vsel %vm467, %v466, 0
    %472 = vmatpush.msra.mxu0 0.0
    %473 = vmatpush.msra.mxu0 0.0
    %474 = vmatpush.msra.mxu0 0.0
    %475 = vmatpush.msra.mxu0 0.0
    %476 = vmatpush.msra.mxu0 0.0
    %477 = vmatpush.msra.mxu0 0.0
    %478 = vmatpush.msra.mxu0 0.0
    %479 = vmatpush.msra.mxu0 0.0
    %480 = vmatpush.msra.mxu0 0.0
    %481 = vmatpush.msra.mxu0 0.0
    %482 = vmatpush.msra.mxu0 0.0
    %483 = vmatpush.msra.mxu0 0.0
    %484 = vmatpush.msra.mxu0 0.0
    %485 = vmatpush.msra.mxu0 0.0
    %486 = vmatpush.msra.mxu0 0.0
    %487 = vmatpush.msra.mxu0 %v418
    %488 = vmatmul.f32.gmra.mxu0 %v468
    %v489 = vpop.f32.mrf.mxu0
    %v490 = vadd.f32 %v438, %v489
    %491 = vmatmul.f32.gmra.mxu0 %v470
    %v492 = vpop.f32.mrf.mxu0
    %v493 = vadd.f32 %v438, %v492
    %494 = vdwg.mxu0
    %495 = vmatpush.msra.mxu0 0.0
    %496 = vmatpush.msra.mxu0 0.0
    %497 = vmatpush.msra.mxu0 0.0
    %498 = vmatpush.msra.mxu0 0.0
    %499 = vmatpush.msra.mxu0 0.0
    %500 = vmatpush.msra.mxu0 0.0
    %501 = vmatpush.msra.mxu0 0.0
    %502 = vmatpush.msra.mxu0 0.0
    %503 = vmatpush.msra.mxu0 0.0
    %504 = vmatpush.msra.mxu0 0.0
    %505 = vmatpush.msra.mxu0 0.0
    %506 = vmatpush.msra.mxu0 0.0
    %507 = vmatpush.msra.mxu0 0.0
    %508 = vmatpush.msra.mxu0 0.0
    %509 = vmatpush.msra.mxu0 0.0
    %510 = vmatpush.msra.mxu0 %v419
    %511 = vmatmul.f32.gmra.mxu0 %v468
    %v512 = vpop.f32.mrf.mxu0
    %v513 = vadd.f32 %v439, %v512
    %514 = vmatmul.f32.gmra.mxu0 %v470
    %v515 = vpop.f32.mrf.mxu0
    %v516 = vadd.f32 %v439, %v515
    %517 = vdwg.mxu0
    %v522 = vrot.slane %v513, 6
    %v523 = vrot.slane %v516, 6
    %vm524 = vcmask 1041408
    %v525 = vsel %vm524, %v490, %v522
    %vm526 = vcmask 1043458
    %v527 = vsel %vm526, %v490, %v522
    %v528 = vrot.slane %v527, 2
    %vm529 = vcmask 1045508
    %v530 = vsel %vm529, %v490, %v522
    %v531 = vrot.slane %v530, 4
    %vm532 = vcmask 1045504
    %v533 = vsel %vm532, %v522, %v490
    %v534 = vrot.slane %v533, 6
    %v535 = vsel %vm524, %v493, %v523
    %v536 = vsel %vm526, %v493, %v523
    %v537 = vrot.slane %v536, 2
    %v538 = vsel %vm529, %v493, %v523
    %v539 = vrot.slane %v538, 4
    %v540 = vsel %vm532, %v523, %v493
    %v541 = vrot.slane %v540, 6
    %vm550 = vcmask 523264
    %v552 = vsel %vm550, 0.0, 0
    %554 = vmatpush.msra.mxu0 0.0
    %555 = vmatpush.msra.mxu0 0.0
    %556 = vmatpush.msra.mxu0 0.0
    %557 = vmatpush.msra.mxu0 0.0
    %558 = vmatpush.msra.mxu0 0.0
    %559 = vmatpush.msra.mxu0 0.0
    %560 = vmatpush.msra.mxu0 0.0
    %561 = vmatpush.msra.mxu0 0.0
    %562 = vmatpush.msra.mxu0 %v434
    %563 = vmatpush.msra.mxu0 %v432
    %564 = vmatpush.msra.mxu0 %v430
    %565 = vmatpush.msra.mxu0 %v428
    %566 = vmatpush.msra.mxu0 %v426
    %567 = vmatpush.msra.mxu0 %v424
    %568 = vmatpush.msra.mxu0 %v422
    %569 = vmatpush.msra.mxu0 %v420
    %570 = vmatmul.f32.gmra.mxu0 %v552
    %v571 = vpop.f32.mrf.mxu0
    %v572 = vadd.f32 0.0, %v571
    %573 = vdwg.mxu0
    %574 = vmatpush.msra.mxu0 0.0
    %575 = vmatpush.msra.mxu0 0.0
    %576 = vmatpush.msra.mxu0 0.0
    %577 = vmatpush.msra.mxu0 0.0
    %578 = vmatpush.msra.mxu0 0.0
    %579 = vmatpush.msra.mxu0 0.0
    %580 = vmatpush.msra.mxu0 0.0
    %581 = vmatpush.msra.mxu0 0.0
    %582 = vmatpush.msra.mxu0 %v435
    %583 = vmatpush.msra.mxu0 %v433
    %584 = vmatpush.msra.mxu0 %v431
    %585 = vmatpush.msra.mxu0 %v429
    %586 = vmatpush.msra.mxu0 %v427
    %587 = vmatpush.msra.mxu0 %v425
    %588 = vmatpush.msra.mxu0 %v423
    %589 = vmatpush.msra.mxu0 %v421
    %590 = vmatmul.f32.gmra.mxu0 %v552
    %v591 = vpop.f32.mrf.mxu0
    %v592 = vadd.f32 0.0, %v591
    %593 = vdwg.mxu0
    %v596 = vrot.slane %v592, 6
    %v597 = vsel %vm524, %v572, %v596
    %v599 = vadd.f32 %v525, %v597
    %v600 = vmul.f32 %v599, 0.5
    %v601 = vtanh.pop %v600
    %v602 = vmul.f32 %v601, 0.5
    %v603 = vadd.f32 %v602, 0.5
    %v605 = vrot.slane %v599, 2
    %v607 = vtanh.pop %v605
    %v608 = vmul.f32 %v603, 0.0
    %v609 = vmul.f32 %v603, %v607
    %611 = vrot.lane.b32.xlu0 %v609, 64
    %v612 = vpop.permute.xlu0 %611
    %v614 = vadd.f32 %v608, %v612
    %v615 = vtanh.pop %v614
    %617 = vrot.lane.b32.xlu0 %v603, 64
    %v618 = vpop.permute.xlu0 %617
    %v619 = vrot.slane %v618, 2
    %622 = vrot.lane.b32.xlu0 %v615, 64
    %v623 = vpop.permute.xlu0 %622
    %v625 = vmul.f32 %v619, %v623
    %vm626 = vcmask 517120
    %627 = vst.msk [vmem:[#allocation2] sm:$0x3] %vm626, %v625
    %v629 = vsel %vm550, %v625, 0
    %631 = vmatpush.msra.mxu0 0.0
    %632 = vmatpush.msra.mxu0 0.0
    %633 = vmatpush.msra.mxu0 0.0
    %634 = vmatpush.msra.mxu0 0.0
    %635 = vmatpush.msra.mxu0 0.0
    %636 = vmatpush.msra.mxu0 0.0
    %637 = vmatpush.msra.mxu0 0.0
    %638 = vmatpush.msra.mxu0 0.0
    %639 = vmatpush.msra.mxu0 %v434
    %640 = vmatpush.msra.mxu0 %v432
    %641 = vmatpush.msra.mxu0 %v430
    %642 = vmatpush.msra.mxu0 %v428
    %643 = vmatpush.msra.mxu0 %v426
    %644 = vmatpush.msra.mxu0 %v424
    %645 = vmatpush.msra.mxu0 %v422
    %646 = vmatpush.msra.mxu0 %v420
    %647 = vmatmul.f32.gmra.mxu0 %v629
    %v648 = vpop.f32.mrf.mxu0
    %v649 = vadd.f32 0.0, %v648
    %650 = vdwg.mxu0
    %651 = vmatpush.msra.mxu0 0.0
    %652 = vmatpush.msra.mxu0 0.0
    %653 = vmatpush.msra.mxu0 0.0
    %654 = vmatpush.msra.mxu0 0.0
    %655 = vmatpush.msra.mxu0 0.0
    %656 = vmatpush.msra.mxu0 0.0
    %657 = vmatpush.msra.mxu0 0.0
    %658 = vmatpush.msra.mxu0 0.0
    %659 = vmatpush.msra.mxu0 %v435
    %660 = vmatpush.msra.mxu0 %v433
    %661 = vmatpush.msra.mxu0 %v431
    %662 = vmatpush.msra.mxu0 %v429
    %663 = vmatpush.msra.mxu0 %v427
    %664 = vmatpush.msra.mxu0 %v425
    %665 = vmatpush.msra.mxu0 %v423
    %666 = vmatpush.msra.mxu0 %v421
    %667 = vmatmul.f32.gmra.mxu0 %v629
    %v668 = vpop.f32.mrf.mxu0
    %v669 = vadd.f32 0.0, %v668
    %670 = vdwg.mxu0
    %v673 = vrot.slane %v669, 6
    %v674 = vsel %vm524, %v649, %v673
    %v676 = vadd.f32 %v528, %v674
    %v677 = vmul.f32 %v676, 0.5
    %v678 = vtanh.pop %v677
    %v679 = vmul.f32 %v678, 0.5
    %v680 = vadd.f32 %v679, 0.5
    %v682 = vrot.slane %v676, 2
    %v684 = vtanh.pop %v682
    %v685 = vmul.f32 %v680, %v614
    %v686 = vmul.f32 %v680, %v684
    %688 = vrot.lane.b32.xlu0 %v686, 64
    %v689 = vpop.permute.xlu0 %688
    %v691 = vadd.f32 %v685, %v689
    %v692 = vtanh.pop %v691
    %694 = vrot.lane.b32.xlu0 %v680, 64
    %v695 = vpop.permute.xlu0 %694
    %v696 = vrot.slane %v695, 2
    %699 = vrot.lane.b32.xlu0 %v692, 64
    %v700 = vpop.permute.xlu0 %699
    %v702 = vmul.f32 %v696, %v700
    %s703 = scalar_lea.vmem [#allocation2], 2
    %704 = vst.msk [vmem:[%s703] sm:$0x3] %vm626, %v702
    %v706 = vsel %vm550, %v702, 0
    %708 = vmatpush.msra.mxu0 0.0
    %709 = vmatpush.msra.mxu0 0.0
    %710 = vmatpush.msra.mxu0 0.0
    %711 = vmatpush.msra.mxu0 0.0
    %712 = vmatpush.msra.mxu0 0.0
    %713 = vmatpush.msra.mxu0 0.0
    %714 = vmatpush.msra.mxu0 0.0
    %715 = vmatpush.msra.mxu0 0.0
    %716 = vmatpush.msra.mxu0 %v434
    %717 = vmatpush.msra.mxu0 %v432
    %718 = vmatpush.msra.mxu0 %v430
    %719 = vmatpush.msra.mxu0 %v428
    %720 = vmatpush.msra.mxu0 %v426
    %721 = vmatpush.msra.mxu0 %v424
    %722 = vmatpush.msra.mxu0 %v422
    %723 = vmatpush.msra.mxu0 %v420
    %724 = vmatmul.f32.gmra.mxu0 %v706
    %v725 = vpop.f32.mrf.mxu0
    %v726 = vadd.f32 0.0, %v725
    %727 = vdwg.mxu0
    %728 = vmatpush.msra.mxu0 0.0
    %729 = vmatpush.msra.mxu0 0.0
    %730 = vmatpush.msra.mxu0 0.0
    %731 = vmatpush.msra.mxu0 0.0
    %732 = vmatpush.msra.mxu0 0.0
    %733 = vmatpush.msra.mxu0 0.0
    %734 = vmatpush.msra.mxu0 0.0
    %735 = vmatpush.msra.mxu0 0.0
    %736 = vmatpush.msra.mxu0 %v435
    %737 = vmatpush.msra.mxu0 %v433
    %738 = vmatpush.msra.mxu0 %v431
    %739 = vmatpush.msra.mxu0 %v429
    %740 = vmatpush.msra.mxu0 %v427
    %741 = vmatpush.msra.mxu0 %v425
    %742 = vmatpush.msra.mxu0 %v423
    %743 = vmatpush.msra.mxu0 %v421
    %744 = vmatmul.f32.gmra.mxu0 %v706
    %v745 = vpop.f32.mrf.mxu0
    %v746 = vadd.f32 0.0, %v745
    %747 = vdwg.mxu0
    %v750 = vrot.slane %v746, 6
    %v751 = vsel %vm524, %v726, %v750
    %v753 = vadd.f32 %v531, %v751
    %v754 = vmul.f32 %v753, 0.5
    %v755 = vtanh.pop %v754
    %v756 = vmul.f32 %v755, 0.5
    %v757 = vadd.f32 %v756, 0.5
    %v759 = vrot.slane %v753, 2
    %v761 = vtanh.pop %v759
    %v762 = vmul.f32 %v757, %v691
    %v763 = vmul.f32 %v757, %v761
    %765 = vrot.lane.b32.xlu0 %v763, 64
    %v766 = vpop.permute.xlu0 %765
    %v768 = vadd.f32 %v762, %v766
    %v769 = vtanh.pop %v768
    %771 = vrot.lane.b32.xlu0 %v757, 64
    %v772 = vpop.permute.xlu0 %771
    %v773 = vrot.slane %v772, 2
    %776 = vrot.lane.b32.xlu0 %v769, 64
    %v777 = vpop.permute.xlu0 %776
    %v779 = vmul.f32 %v773, %v777
    %s780 = scalar_lea.vmem [#allocation2], 4
    %781 = vst.msk [vmem:[%s780] sm:$0x3] %vm626, %v779
    %v783 = vsel %vm550, %v779, 0
    %785 = vmatpush.msra.mxu0 0.0
    %786 = vmatpush.msra.mxu0 0.0
    %787 = vmatpush.msra.mxu0 0.0
    %788 = vmatpush.msra.mxu0 0.0
    %789 = vmatpush.msra.mxu0 0.0
    %790 = vmatpush.msra.mxu0 0.0
    %791 = vmatpush.msra.mxu0 0.0
    %792 = vmatpush.msra.mxu0 0.0
    %793 = vmatpush.msra.mxu0 %v434
    %794 = vmatpush.msra.mxu0 %v432
    %795 = vmatpush.msra.mxu0 %v430
    %796 = vmatpush.msra.mxu0 %v428
    %797 = vmatpush.msra.mxu0 %v426
    %798 = vmatpush.msra.mxu0 %v424
    %799 = vmatpush.msra.mxu0 %v422
    %800 = vmatpush.msra.mxu0 %v420
    %801 = vmatmul.f32.gmra.mxu0 %v783
    %v802 = vpop.f32.mrf.mxu0
    %v803 = vadd.f32 0.0, %v802
    %804 = vdwg.mxu0
    %805 = vmatpush.msra.mxu0 0.0
    %806 = vmatpush.msra.mxu0 0.0
    %807 = vmatpush.msra.mxu0 0.0
    %808 = vmatpush.msra.mxu0 0.0
    %809 = vmatpush.msra.mxu0 0.0
    %810 = vmatpush.msra.mxu0 0.0
    %811 = vmatpush.msra.mxu0 0.0
    %812 = vmatpush.msra.mxu0 0.0
    %813 = vmatpush.msra.mxu0 %v435
    %814 = vmatpush.msra.mxu0 %v433
    %815 = vmatpush.msra.mxu0 %v431
    %816 = vmatpush.msra.mxu0 %v429
    %817 = vmatpush.msra.mxu0 %v427
    %818 = vmatpush.msra.mxu0 %v425
    %819 = vmatpush.msra.mxu0 %v423
    %820 = vmatpush.msra.mxu0 %v421
    %821 = vmatmul.f32.gmra.mxu0 %v783
    %v822 = vpop.f32.mrf.mxu0
    %v823 = vadd.f32 0.0, %v822
    %824 = vdwg.mxu0
    %v827 = vrot.slane %v823, 6
    %v828 = vsel %vm524, %v803, %v827
    %v830 = vadd.f32 %v534, %v828
    %v831 = vmul.f32 %v830, 0.5
    %v832 = vtanh.pop %v831
    %v833 = vmul.f32 %v832, 0.5
    %v834 = vadd.f32 %v833, 0.5
    %v836 = vrot.slane %v830, 2
    %v838 = vtanh.pop %v836
    %v839 = vmul.f32 %v834, %v768
    %v840 = vmul.f32 %v834, %v838
    %842 = vrot.lane.b32.xlu0 %v840, 64
    %v843 = vpop.permute.xlu0 %842
    %v845 = vadd.f32 %v839, %v843
    %v846 = vtanh.pop %v845
    %848 = vrot.lane.b32.xlu0 %v834, 64
    %v849 = vpop.permute.xlu0 %848
    %v850 = vrot.slane %v849, 2
    %853 = vrot.lane.b32.xlu0 %v846, 64
    %v854 = vpop.permute.xlu0 %853
    %v856 = vmul.f32 %v850, %v854
    %s857 = scalar_lea.vmem [#allocation2], 6
    %858 = vst.msk [vmem:[%s857] sm:$0x3] %vm626, %v856
    %v860 = vsel %vm550, %v856, 0
    %862 = vmatpush.msra.mxu0 0.0
    %863 = vmatpush.msra.mxu0 0.0
    %864 = vmatpush.msra.mxu0 0.0
    %865 = vmatpush.msra.mxu0 0.0
    %866 = vmatpush.msra.mxu0 0.0
    %867 = vmatpush.msra.mxu0 0.0
    %868 = vmatpush.msra.mxu0 0.0
    %869 = vmatpush.msra.mxu0 0.0
    %870 = vmatpush.msra.mxu0 %v434
    %871 = vmatpush.msra.mxu0 %v432
    %872 = vmatpush.msra.mxu0 %v430
    %873 = vmatpush.msra.mxu0 %v428
    %874 = vmatpush.msra.mxu0 %v426
    %875 = vmatpush.msra.mxu0 %v424
    %876 = vmatpush.msra.mxu0 %v422
    %877 = vmatpush.msra.mxu0 %v420
    %878 = vmatmul.f32.gmra.mxu0 %v860
    %v879 = vpop.f32.mrf.mxu0
    %v880 = vadd.f32 0.0, %v879
    %881 = vdwg.mxu0
    %882 = vmatpush.msra.mxu0 0.0
    %883 = vmatpush.msra.mxu0 0.0
    %884 = vmatpush.msra.mxu0 0.0
    %885 = vmatpush.msra.mxu0 0.0
    %886 = vmatpush.msra.mxu0 0.0
    %887 = vmatpush.msra.mxu0 0.0
    %888 = vmatpush.msra.mxu0 0.0
    %889 = vmatpush.msra.mxu0 0.0
    %890 = vmatpush.msra.mxu0 %v435
    %891 = vmatpush.msra.mxu0 %v433
    %892 = vmatpush.msra.mxu0 %v431
    %893 = vmatpush.msra.mxu0 %v429
    %894 = vmatpush.msra.mxu0 %v427
    %895 = vmatpush.msra.mxu0 %v425
    %896 = vmatpush.msra.mxu0 %v423
    %897 = vmatpush.msra.mxu0 %v421
    %898 = vmatmul.f32.gmra.mxu0 %v860
    %v899 = vpop.f32.mrf.mxu0
    %v900 = vadd.f32 0.0, %v899
    %901 = vdwg.mxu0
    %v904 = vrot.slane %v900, 6
    %v905 = vsel %vm524, %v880, %v904
    %v907 = vadd.f32 %v535, %v905
    %v908 = vmul.f32 %v907, 0.5
    %v909 = vtanh.pop %v908
    %v910 = vmul.f32 %v909, 0.5
    %v911 = vadd.f32 %v910, 0.5
    %v913 = vrot.slane %v907, 2
    %v915 = vtanh.pop %v913
    %v916 = vmul.f32 %v911, %v845
    %v917 = vmul.f32 %v911, %v915
    %919 = vrot.lane.b32.xlu0 %v917, 64
    %v920 = vpop.permute.xlu0 %919
    %v922 = vadd.f32 %v916, %v920
    %v923 = vtanh.pop %v922
    %925 = vrot.lane.b32.xlu0 %v911, 64
    %v926 = vpop.permute.xlu0 %925
    %v927 = vrot.slane %v926, 2
    %930 = vrot.lane.b32.xlu0 %v923, 64
    %v931 = vpop.permute.xlu0 %930
    %v933 = vmul.f32 %v927, %v931
    %s934 = scalar_lea.vmem [#allocation2], 8
    %935 = vst.msk [vmem:[%s934] sm:$0x3] %vm626, %v933
    %v937 = vsel %vm550, %v933, 0
    %939 = vmatpush.msra.mxu0 0.0
    %940 = vmatpush.msra.mxu0 0.0
    %941 = vmatpush.msra.mxu0 0.0
    %942 = vmatpush.msra.mxu0 0.0
    %943 = vmatpush.msra.mxu0 0.0
    %944 = vmatpush.msra.mxu0 0.0
    %945 = vmatpush.msra.mxu0 0.0
    %946 = vmatpush.msra.mxu0 0.0
    %947 = vmatpush.msra.mxu0 %v434
    %948 = vmatpush.msra.mxu0 %v432
    %949 = vmatpush.msra.mxu0 %v430
    %950 = vmatpush.msra.mxu0 %v428
    %951 = vmatpush.msra.mxu0 %v426
    %952 = vmatpush.msra.mxu0 %v424
    %953 = vmatpush.msra.mxu0 %v422
    %954 = vmatpush.msra.mxu0 %v420
    %955 = vmatmul.f32.gmra.mxu0 %v937
    %v956 = vpop.f32.mrf.mxu0
    %v957 = vadd.f32 0.0, %v956
    %958 = vdwg.mxu0
    %959 = vmatpush.msra.mxu0 0.0
    %960 = vmatpush.msra.mxu0 0.0
    %961 = vmatpush.msra.mxu0 0.0
    %962 = vmatpush.msra.mxu0 0.0
    %963 = vmatpush.msra.mxu0 0.0
    %964 = vmatpush.msra.mxu0 0.0
    %965 = vmatpush.msra.mxu0 0.0
    %966 = vmatpush.msra.mxu0 0.0
    %967 = vmatpush.msra.mxu0 %v435
    %968 = vmatpush.msra.mxu0 %v433
    %969 = vmatpush.msra.mxu0 %v431
    %970 = vmatpush.msra.mxu0 %v429
    %971 = vmatpush.msra.mxu0 %v427
    %972 = vmatpush.msra.mxu0 %v425
    %973 = vmatpush.msra.mxu0 %v423
    %974 = vmatpush.msra.mxu0 %v421
    %975 = vmatmul.f32.gmra.mxu0 %v937
    %v976 = vpop.f32.mrf.mxu0
    %v977 = vadd.f32 0.0, %v976
    %978 = vdwg.mxu0
    %v981 = vrot.slane %v977, 6
    %v982 = vsel %vm524, %v957, %v981
    %v984 = vadd.f32 %v537, %v982
    %v985 = vmul.f32 %v984, 0.5
    %v986 = vtanh.pop %v985
    %v987 = vmul.f32 %v986, 0.5
    %v988 = vadd.f32 %v987, 0.5
    %v990 = vrot.slane %v984, 2
    %v992 = vtanh.pop %v990
    %v993 = vmul.f32 %v988, %v922
    %v994 = vmul.f32 %v988, %v992
    %996 = vrot.lane.b32.xlu0 %v994, 64
    %v997 = vpop.permute.xlu0 %996
    %v999 = vadd.f32 %v993, %v997
    %v1000 = vtanh.pop %v999
    %1002 = vrot.lane.b32.xlu0 %v988, 64
    %v1003 = vpop.permute.xlu0 %1002
    %v1004 = vrot.slane %v1003, 2
    %1007 = vrot.lane.b32.xlu0 %v1000, 64
    %v1008 = vpop.permute.xlu0 %1007
    %v1010 = vmul.f32 %v1004, %v1008
    %s1011 = scalar_lea.vmem [#allocation2], 10
    %1012 = vst.msk [vmem:[%s1011] sm:$0x3] %vm626, %v1010
    %v1014 = vsel %vm550, %v1010, 0
    %1016 = vmatpush.msra.mxu0 0.0
    %1017 = vmatpush.msra.mxu0 0.0
    %1018 = vmatpush.msra.mxu0 0.0
    %1019 = vmatpush.msra.mxu0 0.0
    %1020 = vmatpush.msra.mxu0 0.0
    %1021 = vmatpush.msra.mxu0 0.0
    %1022 = vmatpush.msra.mxu0 0.0
    %1023 = vmatpush.msra.mxu0 0.0
    %1024 = vmatpush.msra.mxu0 %v434
    %1025 = vmatpush.msra.mxu0 %v432
    %1026 = vmatpush.msra.mxu0 %v430
    %1027 = vmatpush.msra.mxu0 %v428
    %1028 = vmatpush.msra.mxu0 %v426
    %1029 = vmatpush.msra.mxu0 %v424
    %1030 = vmatpush.msra.mxu0 %v422
    %1031 = vmatpush.msra.mxu0 %v420
    %1032 = vmatmul.f32.gmra.mxu0 %v1014
    %v1033 = vpop.f32.mrf.mxu0
    %v1034 = vadd.f32 0.0, %v1033
    %1035 = vdwg.mxu0
    %1036 = vmatpush.msra.mxu0 0.0
    %1037 = vmatpush.msra.mxu0 0.0
    %1038 = vmatpush.msra.mxu0 0.0
    %1039 = vmatpush.msra.mxu0 0.0
    %1040 = vmatpush.msra.mxu0 0.0
    %1041 = vmatpush.msra.mxu0 0.0
    %1042 = vmatpush.msra.mxu0 0.0
    %1043 = vmatpush.msra.mxu0 0.0
    %1044 = vmatpush.msra.mxu0 %v435
    %1045 = vmatpush.msra.mxu0 %v433
    %1046 = vmatpush.msra.mxu0 %v431
    %1047 = vmatpush.msra.mxu0 %v429
    %1048 = vmatpush.msra.mxu0 %v427
    %1049 = vmatpush.msra.mxu0 %v425
    %1050 = vmatpush.msra.mxu0 %v423
    %1051 = vmatpush.msra.mxu0 %v421
    %1052 = vmatmul.f32.gmra.mxu0 %v1014
    %v1053 = vpop.f32.mrf.mxu0
    %v1054 = vadd.f32 0.0, %v1053
    %1055 = vdwg.mxu0
    %v1058 = vrot.slane %v1054, 6
    %v1059 = vsel %vm524, %v1034, %v1058
    %v1061 = vadd.f32 %v539, %v1059
    %v1062 = vmul.f32 %v1061, 0.5
    %v1063 = vtanh.pop %v1062
    %v1064 = vmul.f32 %v1063, 0.5
    %v1065 = vadd.f32 %v1064, 0.5
    %v1067 = vrot.slane %v1061, 2
    %v1069 = vtanh.pop %v1067
    %v1070 = vmul.f32 %v1065, %v999
    %v1071 = vmul.f32 %v1065, %v1069
    %1073 = vrot.lane.b32.xlu0 %v1071, 64
    %v1074 = vpop.permute.xlu0 %1073
    %v1076 = vadd.f32 %v1070, %v1074
    %v1077 = vtanh.pop %v1076
    %1079 = vrot.lane.b32.xlu0 %v1065, 64
    %v1080 = vpop.permute.xlu0 %1079
    %v1081 = vrot.slane %v1080, 2
    %1084 = vrot.lane.b32.xlu0 %v1077, 64
    %v1085 = vpop.permute.xlu0 %1084
    %v1087 = vmul.f32 %v1081, %v1085
    %s1088 = scalar_lea.vmem [#allocation2], 12
    %1089 = vst.msk [vmem:[%s1088] sm:$0x3] %vm626, %v1087
    %v1091 = vsel %vm550, %v1087, 0
    %1093 = vmatpush.msra.mxu0 0.0
    %1094 = vmatpush.msra.mxu0 0.0
    %1095 = vmatpush.msra.mxu0 0.0
    %1096 = vmatpush.msra.mxu0 0.0
    %1097 = vmatpush.msra.mxu0 0.0
    %1098 = vmatpush.msra.mxu0 0.0
    %1099 = vmatpush.msra.mxu0 0.0
    %1100 = vmatpush.msra.mxu0 0.0
    %1101 = vmatpush.msra.mxu0 %v434
    %1102 = vmatpush.msra.mxu0 %v432
    %1103 = vmatpush.msra.mxu0 %v430
    %1104 = vmatpush.msra.mxu0 %v428
    %1105 = vmatpush.msra.mxu0 %v426
    %1106 = vmatpush.msra.mxu0 %v424
    %1107 = vmatpush.msra.mxu0 %v422
    %1108 = vmatpush.msra.mxu0 %v420
    %1109 = vmatmul.f32.gmra.mxu0 %v1091
    %v1110 = vpop.f32.mrf.mxu0
    %v1111 = vadd.f32 0.0, %v1110
    %1112 = vdwg.mxu0
    %1113 = vmatpush.msra.mxu0 0.0
    %1114 = vmatpush.msra.mxu0 0.0
    %1115 = vmatpush.msra.mxu0 0.0
    %1116 = vmatpush.msra.mxu0 0.0
    %1117 = vmatpush.msra.mxu0 0.0
    %1118 = vmatpush.msra.mxu0 0.0
    %1119 = vmatpush.msra.mxu0 0.0
    %1120 = vmatpush.msra.mxu0 0.0
    %1121 = vmatpush.msra.mxu0 %v435
    %1122 = vmatpush.msra.mxu0 %v433
    %1123 = vmatpush.msra.mxu0 %v431
    %1124 = vmatpush.msra.mxu0 %v429
    %1125 = vmatpush.msra.mxu0 %v427
    %1126 = vmatpush.msra.mxu0 %v425
    %1127 = vmatpush.msra.mxu0 %v423
    %1128 = vmatpush.msra.mxu0 %v421
    %1129 = vmatmul.f32.gmra.mxu0 %v1091
    %v1130 = vpop.f32.mrf.mxu0
    %v1131 = vadd.f32 0.0, %v1130
    %1132 = vdwg.mxu0
    %v1135 = vrot.slane %v1131, 6
    %v1136 = vsel %vm524, %v1111, %v1135
    %v1138 = vadd.f32 %v541, %v1136
    %v1139 = vmul.f32 %v1138, 0.5
    %v1140 = vtanh.pop %v1139
    %v1141 = vmul.f32 %v1140, 0.5
    %v1142 = vadd.f32 %v1141, 0.5
    %v1144 = vrot.slane %v1138, 2
    %v1146 = vtanh.pop %v1144
    %v1147 = vmul.f32 %v1142, %v1076
    %v1148 = vmul.f32 %v1142, %v1146
    %1150 = vrot.lane.b32.xlu0 %v1148, 64
    %v1151 = vpop.permute.xlu0 %1150
    %v1153 = vadd.f32 %v1147, %v1151
    %v1154 = vtanh.pop %v1153
    %1156 = vrot.lane.b32.xlu0 %v1142, 64
    %v1157 = vpop.permute.xlu0 %1156
    %v1158 = vrot.slane %v1157, 2
    %1161 = vrot.lane.b32.xlu0 %v1154, 64
    %v1162 = vpop.permute.xlu0 %1161
    %v1164 = vmul.f32 %v1158, %v1162
    %s1165 = scalar_lea.vmem [#allocation2], 14
    %1166 = vst.msk [vmem:[%s1165] sm:$0x3] %vm626, %v1164
    %v1167 = vld [vmem:[#allocation2] sm:$0x3]
    %v1168 = vld [vmem:[#allocation2 + $0x2] sm:$0x3]
    %v1169 = vld [vmem:[#allocation2 + $0x4] sm:$0x3]
    %v1170 = vld [vmem:[#allocation2 + $0x6] sm:$0x3]
    %v1171 = vld [vmem:[#allocation2 + $0x8] sm:$0x3]
    %v1172 = vld [vmem:[#allocation2 + $0xa] sm:$0x3]
    %v1173 = vld [vmem:[#allocation2 + $0xc] sm:$0x3]
    %v1174 = vld [vmem:[#allocation2 + $0xe] sm:$0x3]
    %v1175 = vld [vmem:[#allocation6] sm:$0xff]
    %v1176 = vld [vmem:[#allocation6 + $0x8] sm:$0xff]
    %v1177 = vld [vmem:[#allocation6 + $0x10] sm:$0xff]
    %v1178 = vld [vmem:[#allocation6 + $0x18] sm:$0xff]
    %v1179 = vld [vmem:[#allocation6 + $0x20] sm:$0xff]
    %v1180 = vld [vmem:[#allocation6 + $0x28] sm:$0xff]
    %v1181 = vld [vmem:[#allocation6 + $0x30] sm:$0xff]
    %v1182 = vld [vmem:[#allocation6 + $0x38] sm:$0xff]
    %v1183 = vld [vmem:[#allocation6 + $0x40] sm:$0xff]
    %v1184 = vld [vmem:[#allocation6 + $0x48] sm:$0xff]
    %v1185 = vld [vmem:[#allocation6 + $0x50] sm:$0xff]
    %v1186 = vld [vmem:[#allocation6 + $0x58] sm:$0xff]
    %v1187 = vld [vmem:[#allocation6 + $0x60] sm:$0xff]
    %v1188 = vld [vmem:[#allocation6 + $0x68] sm:$0xff]
    %v1189 = vld [vmem:[#allocation6 + $0x70] sm:$0xff]
    %v1190 = vld [vmem:[#allocation6 + $0x78] sm:$0xff]
    %v1191 = vld [vmem:[#allocation8] sm:$0xff]
    %v1192 = vld [vmem:[#allocation8 + $0x8] sm:$0xff]
    %v1193 = vld [vmem:[#allocation8 + $0x10] sm:$0xff]
    %v1194 = vld [vmem:[#allocation8 + $0x18] sm:$0xff]
    %v1195 = vld [vmem:[#allocation8 + $0x20] sm:$0xff]
    %v1196 = vld [vmem:[#allocation8 + $0x28] sm:$0xff]
    %v1197 = vld [vmem:[#allocation8 + $0x30] sm:$0xff]
    %v1198 = vld [vmem:[#allocation8 + $0x38] sm:$0xff]
    %v1199 = vld [vmem:[#allocation8 + $0x40] sm:$0xff]
    %v1200 = vld [vmem:[#allocation8 + $0x48] sm:$0xff]
    %v1201 = vld [vmem:[#allocation8 + $0x50] sm:$0xff]
    %v1202 = vld [vmem:[#allocation8 + $0x58] sm:$0xff]
    %v1203 = vld [vmem:[#allocation8 + $0x60] sm:$0xff]
    %v1204 = vld [vmem:[#allocation8 + $0x68] sm:$0xff]
    %v1205 = vld [vmem:[#allocation8 + $0x70] sm:$0xff]
    %v1206 = vld [vmem:[#allocation8 + $0x78] sm:$0xff]
    %v1207 = vld [vmem:[%s8] sm:$0x3]
    %v1209 = vperm.slane %v1207, 0
    %v1210 = vperm.slane %v1207, 1
    %1221 = vst [vmem:[#allocation1] ss:$4 sm:$0xff] %v1167
    %s1222 = scalar_lea.vmem [#allocation1], 1
    %1223 = vst [vmem:[%s1222] ss:$4 sm:$0xff] %v1168
    %s1224 = scalar_lea.vmem [#allocation1], 2
    %1225 = vst [vmem:[%s1224] ss:$4 sm:$0xff] %v1169
    %s1226 = scalar_lea.vmem [#allocation1], 3
    %1227 = vst [vmem:[%s1226] ss:$4 sm:$0xff] %v1170
    %s1228 = scalar_lea.vmem [#allocation1], 32
    %1229 = vst [vmem:[%s1228] ss:$4 sm:$0xff] %v1171
    %s1230 = scalar_lea.vmem [#allocation1], 33
    %1231 = vst [vmem:[%s1230] ss:$4 sm:$0xff] %v1172
    %s1232 = scalar_lea.vmem [#allocation1], 34
    %1233 = vst [vmem:[%s1232] ss:$4 sm:$0xff] %v1173
    %s1234 = scalar_lea.vmem [#allocation1], 35
    %1235 = vst [vmem:[%s1234] ss:$4 sm:$0xff] %v1174
    %v1236 = vld.sshfl [vmem:[#allocation1] sm:$0xff pattern:$0x73625140]
    %v1237 = vld.sshfl [vmem:[#allocation1 + $0x20] sm:$0xff pattern:$0x73625140]
    %v1238 = vsel %vm550, %v1236, 0
    %v1240 = vsel %vm550, %v1237, 0
    %1242 = vmatpush.msra.mxu0 0.0
    %1243 = vmatpush.msra.mxu0 0.0
    %1244 = vmatpush.msra.mxu0 0.0
    %1245 = vmatpush.msra.mxu0 0.0
    %1246 = vmatpush.msra.mxu0 0.0
    %1247 = vmatpush.msra.mxu0 0.0
    %1248 = vmatpush.msra.mxu0 0.0
    %1249 = vmatpush.msra.mxu0 0.0
    %1250 = vmatpush.msra.mxu0 %v1189
    %1251 = vmatpush.msra.mxu0 %v1187
    %1252 = vmatpush.msra.mxu0 %v1185
    %1253 = vmatpush.msra.mxu0 %v1183
    %1254 = vmatpush.msra.mxu0 %v1181
    %1255 = vmatpush.msra.mxu0 %v1179
    %1256 = vmatpush.msra.mxu0 %v1177
    %1257 = vmatpush.msra.mxu0 %v1175
    %1258 = vmatmul.f32.gmra.mxu0 %v1238
    %v1259 = vpop.f32.mrf.mxu0
    %v1260 = vadd.f32 %v1209, %v1259
    %1261 = vmatmul.f32.gmra.mxu0 %v1240
    %v1262 = vpop.f32.mrf.mxu0
    %v1263 = vadd.f32 %v1209, %v1262
    %1264 = vdwg.mxu0
    %1265 = vmatpush.msra.mxu0 0.0
    %1266 = vmatpush.msra.mxu0 0.0
    %1267 = vmatpush.msra.mxu0 0.0
    %1268 = vmatpush.msra.mxu0 0.0
    %1269 = vmatpush.msra.mxu0 0.0
    %1270 = vmatpush.msra.mxu0 0.0
    %1271 = vmatpush.msra.mxu0 0.0
    %1272 = vmatpush.msra.mxu0 0.0
    %1273 = vmatpush.msra.mxu0 %v1190
    %1274 = vmatpush.msra.mxu0 %v1188
    %1275 = vmatpush.msra.mxu0 %v1186
    %1276 = vmatpush.msra.mxu0 %v1184
    %1277 = vmatpush.msra.mxu0 %v1182
    %1278 = vmatpush.msra.mxu0 %v1180
    %1279 = vmatpush.msra.mxu0 %v1178
    %1280 = vmatpush.msra.mxu0 %v1176
    %1281 = vmatmul.f32.gmra.mxu0 %v1238
    %v1282 = vpop.f32.mrf.mxu0
    %v1283 = vadd.f32 %v1210, %v1282
    %1284 = vmatmul.f32.gmra.mxu0 %v1240
    %v1285 = vpop.f32.mrf.mxu0
    %v1286 = vadd.f32 %v1210, %v1285
    %1287 = vdwg.mxu0
    %v1292 = vrot.slane %v1283, 6
    %v1293 = vrot.slane %v1286, 6
    %v1294 = vsel %vm524, %v1260, %v1292
    %v1295 = vsel %vm526, %v1260, %v1292
    %v1296 = vrot.slane %v1295, 2
    %v1297 = vsel %vm529, %v1260, %v1292
    %v1298 = vrot.slane %v1297, 4
    %v1299 = vsel %vm532, %v1292, %v1260
    %v1300 = vrot.slane %v1299, 6
    %v1301 = vsel %vm524, %v1263, %v1293
    %v1302 = vsel %vm526, %v1263, %v1293
    %v1303 = vrot.slane %v1302, 2
    %v1304 = vsel %vm529, %v1263, %v1293
    %v1305 = vrot.slane %v1304, 4
    %v1306 = vsel %vm532, %v1293, %v1263
    %v1307 = vrot.slane %v1306, 6
    %1316 = vmatpush.msra.mxu0 0.0
    %1317 = vmatpush.msra.mxu0 0.0
    %1318 = vmatpush.msra.mxu0 0.0
    %1319 = vmatpush.msra.mxu0 0.0
    %1320 = vmatpush.msra.mxu0 0.0
    %1321 = vmatpush.msra.mxu0 0.0
    %1322 = vmatpush.msra.mxu0 0.0
    %1323 = vmatpush.msra.mxu0 0.0
    %1324 = vmatpush.msra.mxu0 %v1205
    %1325 = vmatpush.msra.mxu0 %v1203
    %1326 = vmatpush.msra.mxu0 %v1201
    %1327 = vmatpush.msra.mxu0 %v1199
    %1328 = vmatpush.msra.mxu0 %v1197
    %1329 = vmatpush.msra.mxu0 %v1195
    %1330 = vmatpush.msra.mxu0 %v1193
    %1331 = vmatpush.msra.mxu0 %v1191
    %1332 = vmatmul.f32.gmra.mxu0 %v552
    %v1333 = vpop.f32.mrf.mxu0
    %v1334 = vadd.f32 0.0, %v1333
    %1335 = vdwg.mxu0
    %1336 = vmatpush.msra.mxu0 0.0
    %1337 = vmatpush.msra.mxu0 0.0
    %1338 = vmatpush.msra.mxu0 0.0
    %1339 = vmatpush.msra.mxu0 0.0
    %1340 = vmatpush.msra.mxu0 0.0
    %1341 = vmatpush.msra.mxu0 0.0
    %1342 = vmatpush.msra.mxu0 0.0
    %1343 = vmatpush.msra.mxu0 0.0
    %1344 = vmatpush.msra.mxu0 %v1206
    %1345 = vmatpush.msra.mxu0 %v1204
    %1346 = vmatpush.msra.mxu0 %v1202
    %1347 = vmatpush.msra.mxu0 %v1200
    %1348 = vmatpush.msra.mxu0 %v1198
    %1349 = vmatpush.msra.mxu0 %v1196
    %1350 = vmatpush.msra.mxu0 %v1194
    %1351 = vmatpush.msra.mxu0 %v1192
    %1352 = vmatmul.f32.gmra.mxu0 %v552
    %v1353 = vpop.f32.mrf.mxu0
    %v1354 = vadd.f32 0.0, %v1353
    %1355 = vdwg.mxu0
    %v1358 = vrot.slane %v1354, 6
    %v1359 = vsel %vm524, %v1334, %v1358
    %v1361 = vadd.f32 %v1294, %v1359
    %v1362 = vmul.f32 %v1361, 0.5
    %v1363 = vtanh.pop %v1362
    %v1364 = vmul.f32 %v1363, 0.5
    %v1365 = vadd.f32 %v1364, 0.5
    %v1367 = vrot.slane %v1361, 2
    %v1369 = vtanh.pop %v1367
    %v1370 = vmul.f32 %v1365, 0.0
    %v1371 = vmul.f32 %v1365, %v1369
    %1373 = vrot.lane.b32.xlu0 %v1371, 64
    %v1374 = vpop.permute.xlu0 %1373
    %v1376 = vadd.f32 %v1370, %v1374
    %v1377 = vtanh.pop %v1376
    %1379 = vrot.lane.b32.xlu0 %v1365, 64
    %v1380 = vpop.permute.xlu0 %1379
    %v1381 = vrot.slane %v1380, 2
    %1384 = vrot.lane.b32.xlu0 %v1377, 64
    %v1385 = vpop.permute.xlu0 %1384
    %v1387 = vmul.f32 %v1381, %v1385
    %1388 = vst.msk [vmem:[#allocation2] sm:$0x3] %vm626, %v1387
    %v1390 = vsel %vm550, %v1387, 0
    %1392 = vmatpush.msra.mxu0 0.0
    %1393 = vmatpush.msra.mxu0 0.0
    %1394 = vmatpush.msra.mxu0 0.0
    %1395 = vmatpush.msra.mxu0 0.0
    %1396 = vmatpush.msra.mxu0 0.0
    %1397 = vmatpush.msra.mxu0 0.0
    %1398 = vmatpush.msra.mxu0 0.0
    %1399 = vmatpush.msra.mxu0 0.0
    %1400 = vmatpush.msra.mxu0 %v1205
    %1401 = vmatpush.msra.mxu0 %v1203
    %1402 = vmatpush.msra.mxu0 %v1201
    %1403 = vmatpush.msra.mxu0 %v1199
    %1404 = vmatpush.msra.mxu0 %v1197
    %1405 = vmatpush.msra.mxu0 %v1195
    %1406 = vmatpush.msra.mxu0 %v1193
    %1407 = vmatpush.msra.mxu0 %v1191
    %1408 = vmatmul.f32.gmra.mxu0 %v1390
    %v1409 = vpop.f32.mrf.mxu0
    %v1410 = vadd.f32 0.0, %v1409
    %1411 = vdwg.mxu0
    %1412 = vmatpush.msra.mxu0 0.0
    %1413 = vmatpush.msra.mxu0 0.0
    %1414 = vmatpush.msra.mxu0 0.0
    %1415 = vmatpush.msra.mxu0 0.0
    %1416 = vmatpush.msra.mxu0 0.0
    %1417 = vmatpush.msra.mxu0 0.0
    %1418 = vmatpush.msra.mxu0 0.0
    %1419 = vmatpush.msra.mxu0 0.0
    %1420 = vmatpush.msra.mxu0 %v1206
    %1421 = vmatpush.msra.mxu0 %v1204
    %1422 = vmatpush.msra.mxu0 %v1202
    %1423 = vmatpush.msra.mxu0 %v1200
    %1424 = vmatpush.msra.mxu0 %v1198
    %1425 = vmatpush.msra.mxu0 %v1196
    %1426 = vmatpush.msra.mxu0 %v1194
    %1427 = vmatpush.msra.mxu0 %v1192
    %1428 = vmatmul.f32.gmra.mxu0 %v1390
    %v1429 = vpop.f32.mrf.mxu0
    %v1430 = vadd.f32 0.0, %v1429
    %1431 = vdwg.mxu0
    %v1434 = vrot.slane %v1430, 6
    %v1435 = vsel %vm524, %v1410, %v1434
    %v1437 = vadd.f32 %v1296, %v1435
    %v1438 = vmul.f32 %v1437, 0.5
    %v1439 = vtanh.pop %v1438
    %v1440 = vmul.f32 %v1439, 0.5
    %v1441 = vadd.f32 %v1440, 0.5
    %v1443 = vrot.slane %v1437, 2
    %v1445 = vtanh.pop %v1443
    %v1446 = vmul.f32 %v1441, %v1376
    %v1447 = vmul.f32 %v1441, %v1445
    %1449 = vrot.lane.b32.xlu0 %v1447, 64
    %v1450 = vpop.permute.xlu0 %1449
    %v1452 = vadd.f32 %v1446, %v1450
    %v1453 = vtanh.pop %v1452
    %1455 = vrot.lane.b32.xlu0 %v1441, 64
    %v1456 = vpop.permute.xlu0 %1455
    %v1457 = vrot.slane %v1456, 2
    %1460 = vrot.lane.b32.xlu0 %v1453, 64
    %v1461 = vpop.permute.xlu0 %1460
    %v1463 = vmul.f32 %v1457, %v1461
    %1464 = vst.msk [vmem:[%s703] sm:$0x3] %vm626, %v1463
    %v1466 = vsel %vm550, %v1463, 0
    %1468 = vmatpush.msra.mxu0 0.0
    %1469 = vmatpush.msra.mxu0 0.0
    %1470 = vmatpush.msra.mxu0 0.0
    %1471 = vmatpush.msra.mxu0 0.0
    %1472 = vmatpush.msra.mxu0 0.0
    %1473 = vmatpush.msra.mxu0 0.0
    %1474 = vmatpush.msra.mxu0 0.0
    %1475 = vmatpush.msra.mxu0 0.0
    %1476 = vmatpush.msra.mxu0 %v1205
    %1477 = vmatpush.msra.mxu0 %v1203
    %1478 = vmatpush.msra.mxu0 %v1201
    %1479 = vmatpush.msra.mxu0 %v1199
    %1480 = vmatpush.msra.mxu0 %v1197
    %1481 = vmatpush.msra.mxu0 %v1195
    %1482 = vmatpush.msra.mxu0 %v1193
    %1483 = vmatpush.msra.mxu0 %v1191
    %1484 = vmatmul.f32.gmra.mxu0 %v1466
    %v1485 = vpop.f32.mrf.mxu0
    %v1486 = vadd.f32 0.0, %v1485
    %1487 = vdwg.mxu0
    %1488 = vmatpush.msra.mxu0 0.0
    %1489 = vmatpush.msra.mxu0 0.0
    %1490 = vmatpush.msra.mxu0 0.0
    %1491 = vmatpush.msra.mxu0 0.0
    %1492 = vmatpush.msra.mxu0 0.0
    %1493 = vmatpush.msra.mxu0 0.0
    %1494 = vmatpush.msra.mxu0 0.0
    %1495 = vmatpush.msra.mxu0 0.0
    %1496 = vmatpush.msra.mxu0 %v1206
    %1497 = vmatpush.msra.mxu0 %v1204
    %1498 = vmatpush.msra.mxu0 %v1202
    %1499 = vmatpush.msra.mxu0 %v1200
    %1500 = vmatpush.msra.mxu0 %v1198
    %1501 = vmatpush.msra.mxu0 %v1196
    %1502 = vmatpush.msra.mxu0 %v1194
    %1503 = vmatpush.msra.mxu0 %v1192
    %1504 = vmatmul.f32.gmra.mxu0 %v1466
    %v1505 = vpop.f32.mrf.mxu0
    %v1506 = vadd.f32 0.0, %v1505
    %1507 = vdwg.mxu0
    %v1510 = vrot.slane %v1506, 6
    %v1511 = vsel %vm524, %v1486, %v1510
    %v1513 = vadd.f32 %v1298, %v1511
    %v1514 = vmul.f32 %v1513, 0.5
    %v1515 = vtanh.pop %v1514
    %v1516 = vmul.f32 %v1515, 0.5
    %v1517 = vadd.f32 %v1516, 0.5
    %v1519 = vrot.slane %v1513, 2
    %v1521 = vtanh.pop %v1519
    %v1522 = vmul.f32 %v1517, %v1452
    %v1523 = vmul.f32 %v1517, %v1521
    %1525 = vrot.lane.b32.xlu0 %v1523, 64
    %v1526 = vpop.permute.xlu0 %1525
    %v1528 = vadd.f32 %v1522, %v1526
    %v1529 = vtanh.pop %v1528
    %1531 = vrot.lane.b32.xlu0 %v1517, 64
    %v1532 = vpop.permute.xlu0 %1531
    %v1533 = vrot.slane %v1532, 2
    %1536 = vrot.lane.b32.xlu0 %v1529, 64
    %v1537 = vpop.permute.xlu0 %1536
    %v1539 = vmul.f32 %v1533, %v1537
    %1540 = vst.msk [vmem:[%s780] sm:$0x3] %vm626, %v1539
    %v1542 = vsel %vm550, %v1539, 0
    %1544 = vmatpush.msra.mxu0 0.0
    %1545 = vmatpush.msra.mxu0 0.0
    %1546 = vmatpush.msra.mxu0 0.0
    %1547 = vmatpush.msra.mxu0 0.0
    %1548 = vmatpush.msra.mxu0 0.0
    %1549 = vmatpush.msra.mxu0 0.0
    %1550 = vmatpush.msra.mxu0 0.0
    %1551 = vmatpush.msra.mxu0 0.0
    %1552 = vmatpush.msra.mxu0 %v1205
    %1553 = vmatpush.msra.mxu0 %v1203
    %1554 = vmatpush.msra.mxu0 %v1201
    %1555 = vmatpush.msra.mxu0 %v1199
    %1556 = vmatpush.msra.mxu0 %v1197
    %1557 = vmatpush.msra.mxu0 %v1195
    %1558 = vmatpush.msra.mxu0 %v1193
    %1559 = vmatpush.msra.mxu0 %v1191
    %1560 = vmatmul.f32.gmra.mxu0 %v1542
    %v1561 = vpop.f32.mrf.mxu0
    %v1562 = vadd.f32 0.0, %v1561
    %1563 = vdwg.mxu0
    %1564 = vmatpush.msra.mxu0 0.0
    %1565 = vmatpush.msra.mxu0 0.0
    %1566 = vmatpush.msra.mxu0 0.0
    %1567 = vmatpush.msra.mxu0 0.0
    %1568 = vmatpush.msra.mxu0 0.0
    %1569 = vmatpush.msra.mxu0 0.0
    %1570 = vmatpush.msra.mxu0 0.0
    %1571 = vmatpush.msra.mxu0 0.0
    %1572 = vmatpush.msra.mxu0 %v1206
    %1573 = vmatpush.msra.mxu0 %v1204
    %1574 = vmatpush.msra.mxu0 %v1202
    %1575 = vmatpush.msra.mxu0 %v1200
    %1576 = vmatpush.msra.mxu0 %v1198
    %1577 = vmatpush.msra.mxu0 %v1196
    %1578 = vmatpush.msra.mxu0 %v1194
    %1579 = vmatpush.msra.mxu0 %v1192
    %1580 = vmatmul.f32.gmra.mxu0 %v1542
    %v1581 = vpop.f32.mrf.mxu0
    %v1582 = vadd.f32 0.0, %v1581
    %1583 = vdwg.mxu0
    %v1586 = vrot.slane %v1582, 6
    %v1587 = vsel %vm524, %v1562, %v1586
    %v1589 = vadd.f32 %v1300, %v1587
    %v1590 = vmul.f32 %v1589, 0.5
    %v1591 = vtanh.pop %v1590
    %v1592 = vmul.f32 %v1591, 0.5
    %v1593 = vadd.f32 %v1592, 0.5
    %v1595 = vrot.slane %v1589, 2
    %v1597 = vtanh.pop %v1595
    %v1598 = vmul.f32 %v1593, %v1528
    %v1599 = vmul.f32 %v1593, %v1597
    %1601 = vrot.lane.b32.xlu0 %v1599, 64
    %v1602 = vpop.permute.xlu0 %1601
    %v1604 = vadd.f32 %v1598, %v1602
    %v1605 = vtanh.pop %v1604
    %1607 = vrot.lane.b32.xlu0 %v1593, 64
    %v1608 = vpop.permute.xlu0 %1607
    %v1609 = vrot.slane %v1608, 2
    %1612 = vrot.lane.b32.xlu0 %v1605, 64
    %v1613 = vpop.permute.xlu0 %1612
    %v1615 = vmul.f32 %v1609, %v1613
    %1616 = vst.msk [vmem:[%s857] sm:$0x3] %vm626, %v1615
    %v1618 = vsel %vm550, %v1615, 0
    %1620 = vmatpush.msra.mxu0 0.0
    %1621 = vmatpush.msra.mxu0 0.0
    %1622 = vmatpush.msra.mxu0 0.0
    %1623 = vmatpush.msra.mxu0 0.0
    %1624 = vmatpush.msra.mxu0 0.0
    %1625 = vmatpush.msra.mxu0 0.0
    %1626 = vmatpush.msra.mxu0 0.0
    %1627 = vmatpush.msra.mxu0 0.0
    %1628 = vmatpush.msra.mxu0 %v1205
    %1629 = vmatpush.msra.mxu0 %v1203
    %1630 = vmatpush.msra.mxu0 %v1201
    %1631 = vmatpush.msra.mxu0 %v1199
    %1632 = vmatpush.msra.mxu0 %v1197
    %1633 = vmatpush.msra.mxu0 %v1195
    %1634 = vmatpush.msra.mxu0 %v1193
    %1635 = vmatpush.msra.mxu0 %v1191
    %1636 = vmatmul.f32.gmra.mxu0 %v1618
    %v1637 = vpop.f32.mrf.mxu0
    %v1638 = vadd.f32 0.0, %v1637
    %1639 = vdwg.mxu0
    %1640 = vmatpush.msra.mxu0 0.0
    %1641 = vmatpush.msra.mxu0 0.0
    %1642 = vmatpush.msra.mxu0 0.0
    %1643 = vmatpush.msra.mxu0 0.0
    %1644 = vmatpush.msra.mxu0 0.0
    %1645 = vmatpush.msra.mxu0 0.0
    %1646 = vmatpush.msra.mxu0 0.0
    %1647 = vmatpush.msra.mxu0 0.0
    %1648 = vmatpush.msra.mxu0 %v1206
    %1649 = vmatpush.msra.mxu0 %v1204
    %1650 = vmatpush.msra.mxu0 %v1202
    %1651 = vmatpush.msra.mxu0 %v1200
    %1652 = vmatpush.msra.mxu0 %v1198
    %1653 = vmatpush.msra.mxu0 %v1196
    %1654 = vmatpush.msra.mxu0 %v1194
    %1655 = vmatpush.msra.mxu0 %v1192
    %1656 = vmatmul.f32.gmra.mxu0 %v1618
    %v1657 = vpop.f32.mrf.mxu0
    %v1658 = vadd.f32 0.0, %v1657
    %1659 = vdwg.mxu0
    %v1662 = vrot.slane %v1658, 6
    %v1663 = vsel %vm524, %v1638, %v1662
    %v1665 = vadd.f32 %v1301, %v1663
    %v1666 = vmul.f32 %v1665, 0.5
    %v1667 = vtanh.pop %v1666
    %v1668 = vmul.f32 %v1667, 0.5
    %v1669 = vadd.f32 %v1668, 0.5
    %v1671 = vrot.slane %v1665, 2
    %v1673 = vtanh.pop %v1671
    %v1674 = vmul.f32 %v1669, %v1604
    %v1675 = vmul.f32 %v1669, %v1673
    %1677 = vrot.lane.b32.xlu0 %v1675, 64
    %v1678 = vpop.permute.xlu0 %1677
    %v1680 = vadd.f32 %v1674, %v1678
    %v1681 = vtanh.pop %v1680
    %1683 = vrot.lane.b32.xlu0 %v1669, 64
    %v1684 = vpop.permute.xlu0 %1683
    %v1685 = vrot.slane %v1684, 2
    %1688 = vrot.lane.b32.xlu0 %v1681, 64
    %v1689 = vpop.permute.xlu0 %1688
    %v1691 = vmul.f32 %v1685, %v1689
    %1692 = vst.msk [vmem:[%s934] sm:$0x3] %vm626, %v1691
    %v1694 = vsel %vm550, %v1691, 0
    %1696 = vmatpush.msra.mxu0 0.0
    %1697 = vmatpush.msra.mxu0 0.0
    %1698 = vmatpush.msra.mxu0 0.0
    %1699 = vmatpush.msra.mxu0 0.0
    %1700 = vmatpush.msra.mxu0 0.0
    %1701 = vmatpush.msra.mxu0 0.0
    %1702 = vmatpush.msra.mxu0 0.0
    %1703 = vmatpush.msra.mxu0 0.0
    %1704 = vmatpush.msra.mxu0 %v1205
    %1705 = vmatpush.msra.mxu0 %v1203
    %1706 = vmatpush.msra.mxu0 %v1201
    %1707 = vmatpush.msra.mxu0 %v1199
    %1708 = vmatpush.msra.mxu0 %v1197
    %1709 = vmatpush.msra.mxu0 %v1195
    %1710 = vmatpush.msra.mxu0 %v1193
    %1711 = vmatpush.msra.mxu0 %v1191
    %1712 = vmatmul.f32.gmra.mxu0 %v1694
    %v1713 = vpop.f32.mrf.mxu0
    %v1714 = vadd.f32 0.0, %v1713
    %1715 = vdwg.mxu0
    %1716 = vmatpush.msra.mxu0 0.0
    %1717 = vmatpush.msra.mxu0 0.0
    %1718 = vmatpush.msra.mxu0 0.0
    %1719 = vmatpush.msra.mxu0 0.0
    %1720 = vmatpush.msra.mxu0 0.0
    %1721 = vmatpush.msra.mxu0 0.0
    %1722 = vmatpush.msra.mxu0 0.0
    %1723 = vmatpush.msra.mxu0 0.0
    %1724 = vmatpush.msra.mxu0 %v1206
    %1725 = vmatpush.msra.mxu0 %v1204
    %1726 = vmatpush.msra.mxu0 %v1202
    %1727 = vmatpush.msra.mxu0 %v1200
    %1728 = vmatpush.msra.mxu0 %v1198
    %1729 = vmatpush.msra.mxu0 %v1196
    %1730 = vmatpush.msra.mxu0 %v1194
    %1731 = vmatpush.msra.mxu0 %v1192
    %1732 = vmatmul.f32.gmra.mxu0 %v1694
    %v1733 = vpop.f32.mrf.mxu0
    %v1734 = vadd.f32 0.0, %v1733
    %1735 = vdwg.mxu0
    %v1738 = vrot.slane %v1734, 6
    %v1739 = vsel %vm524, %v1714, %v1738
    %v1741 = vadd.f32 %v1303, %v1739
    %v1742 = vmul.f32 %v1741, 0.5
    %v1743 = vtanh.pop %v1742
    %v1744 = vmul.f32 %v1743, 0.5
    %v1745 = vadd.f32 %v1744, 0.5
    %v1747 = vrot.slane %v1741, 2
    %v1749 = vtanh.pop %v1747
    %v1750 = vmul.f32 %v1745, %v1680
    %v1751 = vmul.f32 %v1745, %v1749
    %1753 = vrot.lane.b32.xlu0 %v1751, 64
    %v1754 = vpop.permute.xlu0 %1753
    %v1756 = vadd.f32 %v1750, %v1754
    %v1757 = vtanh.pop %v1756
    %1759 = vrot.lane.b32.xlu0 %v1745, 64
    %v1760 = vpop.permute.xlu0 %1759
    %v1761 = vrot.slane %v1760, 2
    %1764 = vrot.lane.b32.xlu0 %v1757, 64
    %v1765 = vpop.permute.xlu0 %1764
    %v1767 = vmul.f32 %v1761, %v1765
    %1768 = vst.msk [vmem:[%s1011] sm:$0x3] %vm626, %v1767
    %v1770 = vsel %vm550, %v1767, 0
    %1772 = vmatpush.msra.mxu0 0.0
    %1773 = vmatpush.msra.mxu0 0.0
    %1774 = vmatpush.msra.mxu0 0.0
    %1775 = vmatpush.msra.mxu0 0.0
    %1776 = vmatpush.msra.mxu0 0.0
    %1777 = vmatpush.msra.mxu0 0.0
    %1778 = vmatpush.msra.mxu0 0.0
    %1779 = vmatpush.msra.mxu0 0.0
    %1780 = vmatpush.msra.mxu0 %v1205
    %1781 = vmatpush.msra.mxu0 %v1203
    %1782 = vmatpush.msra.mxu0 %v1201
    %1783 = vmatpush.msra.mxu0 %v1199
    %1784 = vmatpush.msra.mxu0 %v1197
    %1785 = vmatpush.msra.mxu0 %v1195
    %1786 = vmatpush.msra.mxu0 %v1193
    %1787 = vmatpush.msra.mxu0 %v1191
    %1788 = vmatmul.f32.gmra.mxu0 %v1770
    %v1789 = vpop.f32.mrf.mxu0
    %v1790 = vadd.f32 0.0, %v1789
    %1791 = vdwg.mxu0
    %1792 = vmatpush.msra.mxu0 0.0
    %1793 = vmatpush.msra.mxu0 0.0
    %1794 = vmatpush.msra.mxu0 0.0
    %1795 = vmatpush.msra.mxu0 0.0
    %1796 = vmatpush.msra.mxu0 0.0
    %1797 = vmatpush.msra.mxu0 0.0
    %1798 = vmatpush.msra.mxu0 0.0
    %1799 = vmatpush.msra.mxu0 0.0
    %1800 = vmatpush.msra.mxu0 %v1206
    %1801 = vmatpush.msra.mxu0 %v1204
    %1802 = vmatpush.msra.mxu0 %v1202
    %1803 = vmatpush.msra.mxu0 %v1200
    %1804 = vmatpush.msra.mxu0 %v1198
    %1805 = vmatpush.msra.mxu0 %v1196
    %1806 = vmatpush.msra.mxu0 %v1194
    %1807 = vmatpush.msra.mxu0 %v1192
    %1808 = vmatmul.f32.gmra.mxu0 %v1770
    %v1809 = vpop.f32.mrf.mxu0
    %v1810 = vadd.f32 0.0, %v1809
    %1811 = vdwg.mxu0
    %v1814 = vrot.slane %v1810, 6
    %v1815 = vsel %vm524, %v1790, %v1814
    %v1817 = vadd.f32 %v1305, %v1815
    %v1818 = vmul.f32 %v1817, 0.5
    %v1819 = vtanh.pop %v1818
    %v1820 = vmul.f32 %v1819, 0.5
    %v1821 = vadd.f32 %v1820, 0.5
    %v1823 = vrot.slane %v1817, 2
    %v1825 = vtanh.pop %v1823
    %v1826 = vmul.f32 %v1821, %v1756
    %v1827 = vmul.f32 %v1821, %v1825
    %1829 = vrot.lane.b32.xlu0 %v1827, 64
    %v1830 = vpop.permute.xlu0 %1829
    %v1832 = vadd.f32 %v1826, %v1830
    %v1833 = vtanh.pop %v1832
    %1835 = vrot.lane.b32.xlu0 %v1821, 64
    %v1836 = vpop.permute.xlu0 %1835
    %v1837 = vrot.slane %v1836, 2
    %1840 = vrot.lane.b32.xlu0 %v1833, 64
    %v1841 = vpop.permute.xlu0 %1840
    %v1843 = vmul.f32 %v1837, %v1841
    %1844 = vst.msk [vmem:[%s1088] sm:$0x3] %vm626, %v1843
    %v1846 = vsel %vm550, %v1843, 0
    %1848 = vmatpush.msra.mxu0 0.0
    %1849 = vmatpush.msra.mxu0 0.0
    %1850 = vmatpush.msra.mxu0 0.0
    %1851 = vmatpush.msra.mxu0 0.0
    %1852 = vmatpush.msra.mxu0 0.0
    %1853 = vmatpush.msra.mxu0 0.0
    %1854 = vmatpush.msra.mxu0 0.0
    %1855 = vmatpush.msra.mxu0 0.0
    %1856 = vmatpush.msra.mxu0 %v1205
    %1857 = vmatpush.msra.mxu0 %v1203
    %1858 = vmatpush.msra.mxu0 %v1201
    %1859 = vmatpush.msra.mxu0 %v1199
    %1860 = vmatpush.msra.mxu0 %v1197
    %1861 = vmatpush.msra.mxu0 %v1195
    %1862 = vmatpush.msra.mxu0 %v1193
    %1863 = vmatpush.msra.mxu0 %v1191
    %1864 = vmatmul.f32.gmra.mxu0 %v1846
    %v1865 = vpop.f32.mrf.mxu0
    %v1866 = vadd.f32 0.0, %v1865
    %1867 = vdwg.mxu0
    %1868 = vmatpush.msra.mxu0 0.0
    %1869 = vmatpush.msra.mxu0 0.0
    %1870 = vmatpush.msra.mxu0 0.0
    %1871 = vmatpush.msra.mxu0 0.0
    %1872 = vmatpush.msra.mxu0 0.0
    %1873 = vmatpush.msra.mxu0 0.0
    %1874 = vmatpush.msra.mxu0 0.0
    %1875 = vmatpush.msra.mxu0 0.0
    %1876 = vmatpush.msra.mxu0 %v1206
    %1877 = vmatpush.msra.mxu0 %v1204
    %1878 = vmatpush.msra.mxu0 %v1202
    %1879 = vmatpush.msra.mxu0 %v1200
    %1880 = vmatpush.msra.mxu0 %v1198
    %1881 = vmatpush.msra.mxu0 %v1196
    %1882 = vmatpush.msra.mxu0 %v1194
    %1883 = vmatpush.msra.mxu0 %v1192
    %1884 = vmatmul.f32.gmra.mxu0 %v1846
    %v1885 = vpop.f32.mrf.mxu0
    %v1886 = vadd.f32 0.0, %v1885
    %1887 = vdwg.mxu0
    %v1890 = vrot.slane %v1886, 6
    %v1891 = vsel %vm524, %v1866, %v1890
    %v1893 = vadd.f32 %v1307, %v1891
    %v1894 = vmul.f32 %v1893, 0.5
    %v1895 = vtanh.pop %v1894
    %v1896 = vmul.f32 %v1895, 0.5
    %v1897 = vadd.f32 %v1896, 0.5
    %v1899 = vrot.slane %v1893, 2
    %v1901 = vtanh.pop %v1899
    %v1902 = vmul.f32 %v1897, %v1832
    %v1903 = vmul.f32 %v1897, %v1901
    %1905 = vrot.lane.b32.xlu0 %v1903, 64
    %v1906 = vpop.permute.xlu0 %1905
    %v1908 = vadd.f32 %v1902, %v1906
    %v1909 = vtanh.pop %v1908
    %1911 = vrot.lane.b32.xlu0 %v1897, 64
    %v1912 = vpop.permute.xlu0 %1911
    %v1913 = vrot.slane %v1912, 2
    %1916 = vrot.lane.b32.xlu0 %v1909, 64
    %v1917 = vpop.permute.xlu0 %1916
    %v1919 = vmul.f32 %v1913, %v1917
    %1920 = vst.msk [vmem:[%s1165] sm:$0x3] %vm626, %v1919
    %v1921 = vld [vmem:[%s9] sm:$0xff]
    %v1922 = vld [vmem:[%s9 + $0x8] sm:$0xff]
    %v1923 = vld [vmem:[%s9 + $0x10] sm:$0xff]
    %v1924 = vld [vmem:[%s9 + $0x18] sm:$0xff]
    %v1925 = vld [vmem:[%s9 + $0x20] sm:$0xff]
    %v1926 = vld [vmem:[%s9 + $0x28] sm:$0xff]
    %v1927 = vld [vmem:[%s9 + $0x30] sm:$0xff]
    %v1928 = vld [vmem:[%s9 + $0x38] sm:$0xff]
    %v1929 = vld [vmem:[#allocation9] sm:$0x1]
    %v1931 = vperm.slane %v1929, 0
    %v1934 = vsel %vm550, %v1919, 0
    %1936 = vmatpush.msra.mxu0 0.0
    %1937 = vmatpush.msra.mxu0 0.0
    %1938 = vmatpush.msra.mxu0 0.0
    %1939 = vmatpush.msra.mxu0 0.0
    %1940 = vmatpush.msra.mxu0 0.0
    %1941 = vmatpush.msra.mxu0 0.0
    %1942 = vmatpush.msra.mxu0 0.0
    %1943 = vmatpush.msra.mxu0 0.0
    %1944 = vmatpush.msra.mxu0 %v1928
    %1945 = vmatpush.msra.mxu0 %v1927
    %1946 = vmatpush.msra.mxu0 %v1926
    %1947 = vmatpush.msra.mxu0 %v1925
    %1948 = vmatpush.msra.mxu0 %v1924
    %1949 = vmatpush.msra.mxu0 %v1923
    %1950 = vmatpush.msra.mxu0 %v1922
    %1951 = vmatpush.msra.mxu0 %v1921
    %1952 = vmatmul.f32.gmra.mxu0 %v1934
    %v1953 = vpop.f32.mrf.mxu0
    %v1954 = vadd.f32 %v1931, %v1953
    %1955 = vdwg.mxu0
    %v1956 = vmul.f32 %v1954, 0.5
    %v1957 = vtanh.pop %v1956
    %v1958 = vmul.f32 %v1957, 0.5
    %v1959 = vadd.f32 %v1958, 0.5
    %v1960 = vld [vmem:[#allocation11] sm:$0xff]
    %v1961 = vld [vmem:[#allocation11 + $0x8] sm:$0xff]
    %v1962 = vld [vmem:[#allocation11 + $0x10] sm:$0xff]
    %v1963 = vld [vmem:[#allocation11 + $0x18] sm:$0xff]
    %v1964 = vld [vmem:[#allocation11 + $0x20] sm:$0xff]
    %v1965 = vld [vmem:[#allocation11 + $0x28] sm:$0xff]
    %v1966 = vld [vmem:[#allocation11 + $0x30] sm:$0xff]
    %v1967 = vld [vmem:[#allocation11 + $0x38] sm:$0xff]
    %v1968 = vld [vmem:[#allocation12] sm:$0x1]
    %v1970 = vperm.slane %v1968, 0
    %v1973 = vsel %vm550, %v1959, 0
    %1975 = vmatpush.msra.mxu0 0.0
    %1976 = vmatpush.msra.mxu0 0.0
    %1977 = vmatpush.msra.mxu0 0.0
    %1978 = vmatpush.msra.mxu0 0.0
    %1979 = vmatpush.msra.mxu0 0.0
    %1980 = vmatpush.msra.mxu0 0.0
    %1981 = vmatpush.msra.mxu0 0.0
    %1982 = vmatpush.msra.mxu0 0.0
    %1983 = vmatpush.msra.mxu0 %v1967
    %1984 = vmatpush.msra.mxu0 %v1966
    %1985 = vmatpush.msra.mxu0 %v1965
    %1986 = vmatpush.msra.mxu0 %v1964
    %1987 = vmatpush.msra.mxu0 %v1963
    %1988 = vmatpush.msra.mxu0 %v1962
    %1989 = vmatpush.msra.mxu0 %v1961
    %1990 = vmatpush.msra.mxu0 %v1960
    %1991 = vmatmul.f32.gmra.mxu0 %v1973
    %v1992 = vpop.f32.mrf.mxu0
    %v1993 = vadd.f32 %v1970, %v1992
    %1994 = vdwg.mxu0
    %v1995 = vmul.f32 %v1993, 0.5
    %v1996 = vtanh.pop %v1995
    %v1997 = vmul.f32 %v1996, 0.5
    %v1998 = vadd.f32 %v1997, 0.5
    %v1999 = vld [vmem:[#allocation14] sm:$0xff]
    %v2000 = vld [vmem:[#allocation14 + $0x8] sm:$0xff]
    %v2001 = vld [vmem:[#allocation14 + $0x10] sm:$0xff]
    %v2002 = vld [vmem:[#allocation14 + $0x18] sm:$0xff]
    %v2003 = vld [vmem:[#allocation14 + $0x20] sm:$0xff]
    %v2004 = vld [vmem:[#allocation14 + $0x28] sm:$0xff]
    %v2005 = vld [vmem:[#allocation14 + $0x30] sm:$0xff]
    %v2006 = vld [vmem:[#allocation14 + $0x38] sm:$0xff]
    %v2007 = vld [vmem:[#allocation15] sm:$0x1]
    %v2009 = vperm.slane %v2007, 0
    %v2012 = vsel %vm550, %v1998, 0
    %2014 = vmatpush.msra.mxu0 0.0
    %2015 = vmatpush.msra.mxu0 0.0
    %2016 = vmatpush.msra.mxu0 0.0
    %2017 = vmatpush.msra.mxu0 0.0
    %2018 = vmatpush.msra.mxu0 0.0
    %2019 = vmatpush.msra.mxu0 0.0
    %2020 = vmatpush.msra.mxu0 0.0
    %2021 = vmatpush.msra.mxu0 0.0
    %2022 = vmatpush.msra.mxu0 %v2006
    %2023 = vmatpush.msra.mxu0 %v2005
    %2024 = vmatpush.msra.mxu0 %v2004
    %2025 = vmatpush.msra.mxu0 %v2003
    %2026 = vmatpush.msra.mxu0 %v2002
    %2027 = vmatpush.msra.mxu0 %v2001
    %2028 = vmatpush.msra.mxu0 %v2000
    %2029 = vmatpush.msra.mxu0 %v1999
    %2030 = vmatmul.f32.gmra.mxu0 %v2012
    %v2031 = vpop.f32.mrf.mxu0
    %v2032 = vadd.f32 %v2009, %v2031
    %2033 = vdwg.mxu0
    %v2034 = vmul.f32 %v2032, 0.5
    %v2035 = vtanh.pop %v2034
    %v2036 = vmul.f32 %v2035, 0.5
    %v2037 = vadd.f32 %v2036, 0.5
    %v2038 = vld [vmem:[#allocation17] sm:$0xff]
    %v2039 = vld [vmem:[#allocation17 + $0x8] sm:$0xff]
    %v2040 = vld [vmem:[#allocation17 + $0x10] sm:$0xff]
    %v2041 = vld [vmem:[#allocation17 + $0x18] sm:$0xff]
    %v2042 = vld [vmem:[#allocation17 + $0x20] sm:$0xff]
    %v2043 = vld [vmem:[#allocation17 + $0x28] sm:$0xff]
    %v2044 = vld [vmem:[#allocation17 + $0x30] sm:$0xff]
    %v2045 = vld [vmem:[#allocation17 + $0x38] sm:$0xff]
    %v2046 = vld [vmem:[#allocation18] sm:$0x1]
    %v2048 = vperm.slane %v2046, 0
    %v2051 = vsel %vm550, %v2037, 0
    %2053 = vmatpush.msra.mxu0 0.0
    %2054 = vmatpush.msra.mxu0 0.0
    %2055 = vmatpush.msra.mxu0 0.0
    %2056 = vmatpush.msra.mxu0 0.0
    %2057 = vmatpush.msra.mxu0 0.0
    %2058 = vmatpush.msra.mxu0 0.0
    %2059 = vmatpush.msra.mxu0 0.0
    %2060 = vmatpush.msra.mxu0 0.0
    %2061 = vmatpush.msra.mxu0 %v2045
    %2062 = vmatpush.msra.mxu0 %v2044
    %2063 = vmatpush.msra.mxu0 %v2043
    %2064 = vmatpush.msra.mxu0 %v2042
    %2065 = vmatpush.msra.mxu0 %v2041
    %2066 = vmatpush.msra.mxu0 %v2040
    %2067 = vmatpush.msra.mxu0 %v2039
    %2068 = vmatpush.msra.mxu0 %v2038
    %2069 = vmatmul.f32.gmra.mxu0 %v2051
    %v2070 = vpop.f32.mrf.mxu0
    %v2071 = vadd.f32 %v2048, %v2070
    %2072 = vdwg.mxu0
    %v2073 = vmul.f32 %v2071, 0.5
    %v2074 = vtanh.pop %v2073
    %v2075 = vmul.f32 %v2074, 0.5
    %v2076 = vadd.f32 %v2075, 0.5
    %v2077 = vld [vmem:[%s17] sm:$0xff]
    %v2078 = vld [vmem:[%s17 + $0x8] sm:$0xff]
    %v2079 = vld [vmem:[%s17 + $0x10] sm:$0xff]
    %v2080 = vld [vmem:[%s17 + $0x18] sm:$0xff]
    %v2081 = vld [vmem:[%s17 + $0x20] sm:$0xff]
    %v2082 = vld [vmem:[%s17 + $0x28] sm:$0xff]
    %v2083 = vld [vmem:[%s17 + $0x30] sm:$0xff]
    %v2084 = vld [vmem:[%s17 + $0x38] sm:$0xff]
    %v2085 = vld [vmem:[#allocation20] sm:$0x1]
    %v2087 = vperm.slane %v2085, 0
    %v2090 = vsel %vm550, %v2076, 0
    %2092 = vmatpush.msra.mxu0 0.0
    %2093 = vmatpush.msra.mxu0 0.0
    %2094 = vmatpush.msra.mxu0 0.0
    %2095 = vmatpush.msra.mxu0 0.0
    %2096 = vmatpush.msra.mxu0 0.0
    %2097 = vmatpush.msra.mxu0 0.0
    %2098 = vmatpush.msra.mxu0 0.0
    %2099 = vmatpush.msra.mxu0 0.0
    %2100 = vmatpush.msra.mxu0 %v2084
    %2101 = vmatpush.msra.mxu0 %v2083
    %2102 = vmatpush.msra.mxu0 %v2082
    %2103 = vmatpush.msra.mxu0 %v2081
    %2104 = vmatpush.msra.mxu0 %v2080
    %2105 = vmatpush.msra.mxu0 %v2079
    %2106 = vmatpush.msra.mxu0 %v2078
    %2107 = vmatpush.msra.mxu0 %v2077
    %2108 = vmatmul.f32.gmra.mxu0 %v2090
    %v2109 = vpop.f32.mrf.mxu0
    %v2110 = vadd.f32 %v2087, %v2109
    %2111 = vdwg.mxu0
    %v2112 = vmul.f32 %v2110, 0.5
    %v2113 = vtanh.pop %v2112
    %v2114 = vmul.f32 %v2113, 0.5
    %v2115 = vadd.f32 %v2114, 0.5
    %2117 = vrot.lane.b32.xlu0 %v2115, 124
    %v2118 = vpop.permute.xlu0 %2117
    %v2120 = vadd.f32 %v2115, %v2118
    %2121 = vst.msk [vmem:[#allocation21] sm:$0x3] %vm232, %v2120
    // Predicated region
    $region122: #{multi_lstm_forward.1} parent=1 // pred_check
      _
    $region123: #{multi_lstm_forward.1} parent=1 // pred_check_branch
      %2123 = sbr.rel (0) target = $region125
    $region124: #{multi_lstm_forward.1} parent=1 // pred_region
      %2125 = vsyncadd [#allocation5], 0
      %s2127 = sshll.u32 [#allocation21], 4
      %s2128 = int_to_ptr.vmem [resolvable:$true] %s2127
      %s2129 = sshll.u32 %s19, 4
      %s2130 = int_to_ptr.hbm [resolvable:$true] %s2129
      %2132 = dma.vmem_to_hbm [thread:$0]  %s2128, 32, %s2130, [#allocation5]
    $region125: #{multi_lstm_forward.1} parent=1 // pred_fallthru
      _
    // Predicated region
    $region126: #{multi_lstm_forward.1} parent=1 // pred_check
      _
    $region127: #{multi_lstm_forward.1} parent=1 // pred_check_branch
      %2134 = sbr.rel (0) target = $region129
    $region128: #{multi_lstm_forward.1} parent=1 // pred_region
      %2136 = dma.done [#allocation5], 32
    $region129: #{multi_lstm_forward.1} parent=1 // pred_fallthru
      _
    %2137 = vsyncpa [#allocation4], 1
    %2138 = vsyncpa [#allocation7], 1
    %2139 = vsyncpa [#allocation10], 1
    %2140 = vsyncpa [#allocation13], 1
    %2141 = vsyncpa [#allocation16], 1
    %2142 = vsyncpa [#allocation19], 1
    %2143 = vsyncpa [#allocation5], 1

</llo_original>
